<compile_context>
chip_gen: v7x
topology: tpu7x:2x2x1
jax: 0.10.0
libtpu: 0.0.40
codegen_flags: <defaults>
</compile_context>

<pallas_src>
import functools

import jax
import jax.numpy as jnp
from jax.experimental import pallas as pl
from jax.experimental.pallas import tpu as pltpu

FF_CHUNK = 512          # lane chunk for the FF hidden dim (multiple of 128)


def _layernorm(x, gamma, beta, eps=1e-5):
    mu = jnp.mean(x, axis=-1, keepdims=True)
    var = jnp.mean((x - mu) ** 2, axis=-1, keepdims=True)
    return (x - mu) * jax.lax.rsqrt(var + eps) * gamma + beta


def block_kernel(num_heads,
                 x_ref,
                 ln1g_ref, ln1b_ref,
                 wqkv_ref, wprojT_ref, bproj_ref,
                 ln2g_ref, ln2b_ref,
                 w1t_ref, b1_ref, w2t_ref, b2_ref,
                 o_ref):
    Bt, T, E = x_ref.shape
    hs = E // num_heads
    M = Bt * T
    cdt = wqkv_ref.dtype                        # MXU compute dtype (bf16)

    x = x_ref[...].reshape(M, E).astype(jnp.float32)

    # ---- LayerNorm 1 (f32) ----
    h = _layernorm(x, ln1g_ref[...], ln1b_ref[...]).astype(cdt)

    # ---- Fused QKV projection: one (M,E)@(E,3E) MXU matmul.
    # NOTE: the reference scales scores by 1/sqrt(embedding_size), NOT
    # 1/sqrt(head_size); that scale is pre-folded into the Q columns of wqkv
    # in the wrapper, so no score scaling is needed here.
    qkv = jnp.dot(h, wqkv_ref[...], preferred_element_type=jnp.float32)

    # Move heads into the leading batch dim: section of (M,E) -> (H*Bt, T, hs).
    def heads_of(sec):
        parts = [
            qkv[:, sec * E + hd * hs: sec * E + (hd + 1) * hs].reshape(Bt, T, hs)
            for hd in range(num_heads)
        ]
        return jnp.concatenate(parts, axis=0).astype(cdt)

    q = heads_of(0)
    k = heads_of(1)
    v = heads_of(2)

    # Causal additive bias, built once per grid step.  Keep it in f32: -1e30
    # would overflow to -inf if the score path were ever cast to bf16.
    row = jax.lax.broadcasted_iota(jnp.int32, (T, T), 0)
    col = jax.lax.broadcasted_iota(jnp.int32, (T, T), 1)
    bias = jnp.where(row >= col, jnp.float32(0.0), jnp.float32(-1e30))

    # ---- Attention: one batched einsum pair + one softmax over (H*Bt,T,T) ----
    s = jnp.einsum('bqd,bkd->bqk', q, k, preferred_element_type=jnp.float32)
    s = s + bias[None, :, :]
    m = jnp.max(s, axis=-1, keepdims=True)
    p = jnp.exp(s - m)
    denom = jnp.sum(p, axis=-1, keepdims=True)          # (H*Bt, T, 1) f32
    o_h = jnp.einsum('bqk,bkd->bqd', p.astype(cdt), v,
                     preferred_element_type=jnp.float32)  # (H*Bt, T, hs)
    o_h = (o_h * pl.reciprocal(denom, approx=True)).astype(cdt)

    # Re-concatenate heads along lanes -> (M, E), then one output projection.
    o_cat = jnp.concatenate(
        [o_h[hd * Bt:(hd + 1) * Bt] for hd in range(num_heads)], axis=-1)
    o2 = o_cat.reshape(M, E)

    attn = jnp.dot(o2, wprojT_ref[...], preferred_element_type=jnp.float32)
    attn = attn + bproj_ref[...]
    x1 = x + attn                               # residual 1 (f32)

    # ---- LayerNorm 2 + FeedForward (hidden dim processed in lane chunks) ----
    h2 = _layernorm(x1, ln2g_ref[...], ln2b_ref[...]).astype(cdt)
    Hf = w1t_ref.shape[1]                       # 4E
    ff = jnp.zeros((M, E), jnp.float32)
    for c0 in range(0, Hf, FF_CHUNK):
        cs = min(FF_CHUNK, Hf - c0)
        hc = jnp.dot(h2, w1t_ref[:, c0:c0 + cs],
                     preferred_element_type=jnp.float32) + b1_ref[:, c0:c0 + cs]
        hc = jnp.maximum(hc, 0.0).astype(cdt)
        ff = ff + jnp.dot(hc, w2t_ref[c0:c0 + cs, :],
                          preferred_element_type=jnp.float32)
    ff = ff + b2_ref[...]

    out = x1 + ff                               # residual 2
    o_ref[...] = out.reshape(Bt, T, E).astype(o_ref.dtype)


def _vmem_budget_bytes():
    """Generation-aware VMEM budget: ~75% of physical, clamped to [32,100] MiB."""
    mib = 1024 * 1024
    phys = 64 * mib                             # conservative default (v7x)
    try:
        info = pltpu.get_tpu_info()
        phys = int(getattr(info, "vmem_capacity_bytes", phys)) or phys
    except Exception:
        pass
    return int(max(32 * mib, min(phys * 3 // 4, 100 * mib)))


def transformer_block(x, params, *, num_heads, batch_tile=None,
                      compute_dtype=jnp.bfloat16):
    """x: (B, T, E) float32.  params: dict of weight arrays (see init_params)."""
    B, T, E = x.shape
    assert E % num_heads == 0
    cdt = compute_dtype

    # Pre-transpose / pre-stack all weights ONCE outside the kernel so every
    # matmul is a plain (M,K)@(K,N) contraction:
    #   wqkv = [wq.T * 1/sqrt(E) | wk.T | wv.T]   (NOTE: sqrt(embedding_size),
    #   matching the PyTorch reference — do NOT "fix" to sqrt(head_size)).
    scale = 1.0 / (E ** 0.5)
    wqkv = jnp.concatenate(
        [params["wq"].T * scale, params["wk"].T, params["wv"].T], axis=1)  # (E,3E)

    weight_args = (
        params["ln1_g"], params["ln1_b"],
        wqkv.astype(cdt), params["wproj"].T.astype(cdt), params["bproj"],
        params["ln2_g"], params["ln2_b"],
        params["w1"].T.astype(cdt), params["b1"],
        params["w2"].T.astype(cdt), params["b2"],
    )
    weight_bytes = sum(int(w.size) * w.dtype.itemsize for w in weight_args)
    vmem_budget = _vmem_budget_bytes()

    def _step_bytes(bt):
        # Rough per-grid-step VMEM estimate (f32 temporaries dominate).
        Mt = bt * T
        act_io = 2 * 2 * Mt * E * 4                    # x/out blocks, 2-buffered
        qkv_t = 2 * Mt * 3 * E * 4                     # qkv f32 + bf16 head copies
        scores = 3 * bt * num_heads * T * T * 4        # s / p / temporaries
        attn_t = 3 * Mt * E * 4                        # attn, residuals, LN temps
        ff_t = 2 * Mt * min(4 * E, FF_CHUNK) * 4       # chunked FF intermediate
        return act_io + qkv_t + scores + attn_t + ff_t

    if batch_tile is None:
        divisors = [d for d in range(1, B + 1) if B % d == 0]
        # Prefer grid length >= 2 so the "parallel" axis can feed both v7x TCs.
        candidates = [d for d in divisors if B // d >= 2] or divisors
        batch_tile = 1
        for d in sorted(candidates, reverse=True):
            if weight_bytes + _step_bytes(d) <= vmem_budget:
                batch_tile = d
                break
    assert B % batch_tile == 0

    grid = (B // batch_tile,)

    def _call(single_buffer_weights):
        # Resident weights: constant index maps => fetched once, stay resident.
        def _resident_spec(arr):
            nd = arr.ndim
            imap = lambda b, _nd=nd: (0,) * _nd
            if single_buffer_weights:
                return pl.BlockSpec(arr.shape, imap,
                                    pipeline_mode=pl.Buffered(1))
            return pl.BlockSpec(arr.shape, imap)

        weight_specs = [_resident_spec(w) for w in weight_args]
        return pl.pallas_call(
            functools.partial(block_kernel, num_heads),
            out_shape=jax.ShapeDtypeStruct((B, T, E), x.dtype),
            grid_spec=pltpu.PrefetchScalarGridSpec(
                num_scalar_prefetch=0,
                grid=grid,
                in_specs=[pl.BlockSpec((batch_tile, T, E), lambda b: (b, 0, 0))]
                         + weight_specs,
                out_specs=pl.BlockSpec((batch_tile, T, E), lambda b: (b, 0, 0)),
            ),
            compiler_params=pltpu.CompilerParams(
                dimension_semantics=("parallel",),
                vmem_limit_bytes=vmem_budget,
            ),
        )(x, *weight_args)

    try:
        return _call(True)
    except Exception:
        # pl.Buffered(1) unsupported on this jax version/path: fall back to
        # default double-buffered resident weights (identical semantics).
        return _call(False)


def init_params(key, embedding_size, num_heads):
    E = embedding_size
    H = 4 * E

    def linear(key, out_f, in_f, bias=True):
        k1, k2 = jax.random.split(key)
        bound = 1.0 / (in_f ** 0.5)
        w = jax.random.uniform(k1, (out_f, in_f), jnp.float32, -bound, bound)
        b = (jax.random.uniform(k2, (1, out_f), jnp.float32, -bound, bound)
             if bias else None)
        return w, b

    keys = jax.random.split(key, 8)
    wq, _ = linear(keys[0], E, E, bias=False)
    wk, _ = linear(keys[1], E, E, bias=False)
    wv, _ = linear(keys[2], E, E, bias=False)
    wproj, bproj = linear(keys[3], E, E)
    w1, b1 = linear(keys[4], H, E)
    w2, b2 = linear(keys[5], E, H)
    return {
        "ln1_g": jnp.ones((1, E), jnp.float32),
        "ln1_b": jnp.zeros((1, E), jnp.float32),
        "ln2_g": jnp.ones((1, E), jnp.float32),
        "ln2_b": jnp.zeros((1, E), jnp.float32),
        "wq": wq, "wk": wk, "wv": wv,
        "wproj": wproj, "bproj": bproj,
        "w1": w1, "b1": b1, "w2": w2, "b2": b2,
    }


def reference_block(x, params, *, num_heads):
    """Pure-JAX f32 reference mirroring the PyTorch module (eval mode)."""
    B, T, E = x.shape
    hs = E // num_heads
    h = _layernorm(x, params["ln1_g"][0], params["ln1_b"][0])
    q = h @ params["wq"].T
    k = h @ params["wk"].T
    v = h @ params["wv"].T
    mask = jnp.tril(jnp.ones((T, T), bool))
    outs = []
    for hd in range(num_heads):
        sl = slice(hd * hs, (hd + 1) * hs)
        s = (q[..., sl] @ jnp.swapaxes(k[..., sl], -2, -1)) / (E ** 0.5)
        s = jnp.where(mask, s, -jnp.inf)
        p = jax.nn.softmax(s, axis=-1)
        outs.append(p @ v[..., sl])
    attn = jnp.concatenate(outs, axis=-1) @ params["wproj"].T + params["bproj"][0]
    x1 = x + attn
    h2 = _layernorm(x1, params["ln2_g"][0], params["ln2_b"][0])
    ff = jnp.maximum(h2 @ params["w1"].T + params["b1"][0], 0.0)
    ff = ff @ params["w2"].T + params["b2"][0]
    return x1 + ff


if __name__ == "__main__":
    B, T, E, num_heads = 4, 8, 32, 4   # context_len = T = 8
    key = jax.random.PRNGKey(0)
    kx, kp = jax.random.split(key)
    x = jax.random.normal(kx, (B, T, E), jnp.float32)
    params = init_params(kp, E, num_heads)

    out = transformer_block(x, params, num_heads=num_heads)
    out = jax.block_until_ready(out)

    ref = reference_block(x, params, num_heads=num_heads)
    assert out.shape == (B, T, E)
    # bf16 MXU operands + approx reciprocal vs. f32 reference -> relaxed tol.
    max_diff = float(jnp.max(jnp.abs(out - ref)))
    assert jnp.allclose(out, ref, atol=5e-2, rtol=5e-2), (
        f"mismatch vs reference (max|diff|={max_diff})")
    print("KERNEL_OK")
</pallas_src>

<mosaic_0001>
module attributes {stable_mosaic.version = 11 : i64} {
  func.func @block_kernel(%arg0: i32, %arg1: memref<2x8x32xf32, #tpu.memory_space<vmem>>, %arg2: memref<1x32xf32, #tpu.memory_space<vmem>>, %arg3: memref<1x32xf32, #tpu.memory_space<vmem>>, %arg4: memref<32x96xbf16, #tpu.memory_space<vmem>>, %arg5: memref<32x32xbf16, #tpu.memory_space<vmem>>, %arg6: memref<1x32xf32, #tpu.memory_space<vmem>>, %arg7: memref<1x32xf32, #tpu.memory_space<vmem>>, %arg8: memref<1x32xf32, #tpu.memory_space<vmem>>, %arg9: memref<32x128xbf16, #tpu.memory_space<vmem>>, %arg10: memref<1x128xf32, #tpu.memory_space<vmem>>, %arg11: memref<128x32xbf16, #tpu.memory_space<vmem>>, %arg12: memref<1x32xf32, #tpu.memory_space<vmem>>, %arg13: memref<2x8x32xf32, #tpu.memory_space<vmem>>) attributes {dimension_semantics = [#tpu.dimension_semantics<parallel>], iteration_bounds = array<i64: 2>, scalar_prefetch = 0 : i64, scratch_operands = 0 : i64, tpu.core_type = #tpu.core_type<tc>, window_params = [{transform_indices = @transform_0, window_bounds = array<i64: 2, 8, 32>}, {pipeline_mode = #tpu.pipeline_mode<synchronous>, transform_indices = @transform_1, window_bounds = array<i64: 1, 32>}, {pipeline_mode = #tpu.pipeline_mode<synchronous>, transform_indices = @transform_2, window_bounds = array<i64: 1, 32>}, {pipeline_mode = #tpu.pipeline_mode<synchronous>, transform_indices = @transform_3, window_bounds = array<i64: 32, 96>}, {pipeline_mode = #tpu.pipeline_mode<synchronous>, transform_indices = @transform_4, window_bounds = array<i64: 32, 32>}, {pipeline_mode = #tpu.pipeline_mode<synchronous>, transform_indices = @transform_5, window_bounds = array<i64: 1, 32>}, {pipeline_mode = #tpu.pipeline_mode<synchronous>, transform_indices = @transform_6, window_bounds = array<i64: 1, 32>}, {pipeline_mode = #tpu.pipeline_mode<synchronous>, transform_indices = @transform_7, window_bounds = array<i64: 1, 32>}, {pipeline_mode = #tpu.pipeline_mode<synchronous>, transform_indices = @transform_8, window_bounds = array<i64: 32, 128>}, {pipeline_mode = #tpu.pipeline_mode<synchronous>, transform_indices = @transform_9, window_bounds = array<i64: 1, 128>}, {pipeline_mode = #tpu.pipeline_mode<synchronous>, transform_indices = @transform_10, window_bounds = array<i64: 128, 32>}, {pipeline_mode = #tpu.pipeline_mode<synchronous>, transform_indices = @transform_11, window_bounds = array<i64: 1, 32>}, {transform_indices = @transform_12, window_bounds = array<i64: 2, 8, 32>}]} {
    %c0 = arith.constant 0 : index
    %c0_0 = arith.constant 0 : index
    %c0_1 = arith.constant 0 : index
    %0 = vector.load %arg1[%c0, %c0_0, %c0_1] : memref<2x8x32xf32, #tpu.memory_space<vmem>>, vector<2x8x32xf32>
    %1 = vector.shape_cast %0 : vector<2x8x32xf32> to vector<16x32xf32>
    %c0_2 = arith.constant 0 : index
    %c0_3 = arith.constant 0 : index
    %2 = vector.load %arg2[%c0_2, %c0_3] : memref<1x32xf32, #tpu.memory_space<vmem>>, vector<1x32xf32>
    %c0_4 = arith.constant 0 : index
    %c0_5 = arith.constant 0 : index
    %3 = vector.load %arg3[%c0_4, %c0_5] : memref<1x32xf32, #tpu.memory_space<vmem>>, vector<1x32xf32>
    %cst = arith.constant dense<0.000000e+00> : vector<16xf32>
    %4 = vector.multi_reduction <add>, %1, %cst [1] : vector<16x32xf32> to vector<16xf32>
    %5 = vector.shape_cast %4 : vector<16xf32> to vector<16x1xf32>
    %cst_6 = arith.constant 3.200000e+01 : f32
    %6 = vector.broadcast %cst_6 : f32 to vector<16x1xf32>
    %7 = arith.divf %5, %6 : vector<16x1xf32>
    %8 = vector.broadcast %7 : vector<16x1xf32> to vector<16x32xf32>
    %9 = arith.subf %1, %8 : vector<16x32xf32>
    %10 = arith.mulf %9, %9 : vector<16x32xf32>
    %cst_7 = arith.constant dense<0.000000e+00> : vector<16xf32>
    %11 = vector.multi_reduction <add>, %10, %cst_7 [1] : vector<16x32xf32> to vector<16xf32>
    %12 = vector.shape_cast %11 : vector<16xf32> to vector<16x1xf32>
    %cst_8 = arith.constant 3.200000e+01 : f32
    %13 = vector.broadcast %cst_8 : f32 to vector<16x1xf32>
    %14 = arith.divf %12, %13 : vector<16x1xf32>
    %15 = vector.broadcast %7 : vector<16x1xf32> to vector<16x32xf32>
    %16 = arith.subf %1, %15 : vector<16x32xf32>
    %cst_9 = arith.constant 9.99999974E-6 : f32
    %17 = vector.broadcast %cst_9 : f32 to vector<16x1xf32>
    %18 = arith.addf %14, %17 : vector<16x1xf32>
    %19 = math.rsqrt %18 : vector<16x1xf32>
    %20 = vector.broadcast %19 : vector<16x1xf32> to vector<16x32xf32>
    %21 = arith.mulf %16, %20 : vector<16x32xf32>
    %22 = vector.broadcast %2 : vector<1x32xf32> to vector<16x32xf32>
    %23 = arith.mulf %21, %22 : vector<16x32xf32>
    %24 = vector.broadcast %3 : vector<1x32xf32> to vector<16x32xf32>
    %25 = arith.addf %23, %24 : vector<16x32xf32>
    %26 = arith.truncf %25 : vector<16x32xf32> to vector<16x32xbf16>
    %c0_10 = arith.constant 0 : index
    %c0_11 = arith.constant 0 : index
    %27 = vector.load %arg4[%c0_10, %c0_11] : memref<32x96xbf16, #tpu.memory_space<vmem>>, vector<32x96xbf16>
    %cst_12 = arith.constant dense<0.000000e+00> : vector<16x96xf32>
    %28 = tpu.matmul %26, %27, %cst_12 {dimension_numbers = #tpu.dot_dimension_numbers<[1], [0], [0], [1], [0, 0, 1, 1], [], []>} : vector<16x32xbf16>, vector<32x96xbf16>, vector<16x96xf32> -> vector<16x96xf32>
    %29 = vector.extract_strided_slice %28 {offsets = [0, 0], sizes = [16, 8], strides = [1, 1]} : vector<16x96xf32> to vector<16x8xf32>
    %30 = vector.shape_cast %29 : vector<16x8xf32> to vector<2x8x8xf32>
    %31 = vector.extract_strided_slice %28 {offsets = [0, 8], sizes = [16, 8], strides = [1, 1]} : vector<16x96xf32> to vector<16x8xf32>
    %32 = vector.shape_cast %31 : vector<16x8xf32> to vector<2x8x8xf32>
    %33 = vector.extract_strided_slice %28 {offsets = [0, 16], sizes = [16, 8], strides = [1, 1]} : vector<16x96xf32> to vector<16x8xf32>
    %34 = vector.shape_cast %33 : vector<16x8xf32> to vector<2x8x8xf32>
    %35 = vector.extract_strided_slice %28 {offsets = [0, 24], sizes = [16, 8], strides = [1, 1]} : vector<16x96xf32> to vector<16x8xf32>
    %36 = vector.shape_cast %35 : vector<16x8xf32> to vector<2x8x8xf32>
    %37 = tpu.concatenate %30, %32, %34, %36 in 0 : vector<2x8x8xf32>, vector<2x8x8xf32>, vector<2x8x8xf32>, vector<2x8x8xf32> -> vector<8x8x8xf32>
    %38 = arith.truncf %37 : vector<8x8x8xf32> to vector<8x8x8xbf16>
    %39 = vector.extract_strided_slice %28 {offsets = [0, 32], sizes = [16, 8], strides = [1, 1]} : vector<16x96xf32> to vector<16x8xf32>
    %40 = vector.shape_cast %39 : vector<16x8xf32> to vector<2x8x8xf32>
    %41 = vector.extract_strided_slice %28 {offsets = [0, 40], sizes = [16, 8], strides = [1, 1]} : vector<16x96xf32> to vector<16x8xf32>
    %42 = vector.shape_cast %41 : vector<16x8xf32> to vector<2x8x8xf32>
    %43 = vector.extract_strided_slice %28 {offsets = [0, 48], sizes = [16, 8], strides = [1, 1]} : vector<16x96xf32> to vector<16x8xf32>
    %44 = vector.shape_cast %43 : vector<16x8xf32> to vector<2x8x8xf32>
    %45 = vector.extract_strided_slice %28 {offsets = [0, 56], sizes = [16, 8], strides = [1, 1]} : vector<16x96xf32> to vector<16x8xf32>
    %46 = vector.shape_cast %45 : vector<16x8xf32> to vector<2x8x8xf32>
    %47 = tpu.concatenate %40, %42, %44, %46 in 0 : vector<2x8x8xf32>, vector<2x8x8xf32>, vector<2x8x8xf32>, vector<2x8x8xf32> -> vector<8x8x8xf32>
    %48 = arith.truncf %47 : vector<8x8x8xf32> to vector<8x8x8xbf16>
    %49 = vector.extract_strided_slice %28 {offsets = [0, 64], sizes = [16, 8], strides = [1, 1]} : vector<16x96xf32> to vector<16x8xf32>
    %50 = vector.shape_cast %49 : vector<16x8xf32> to vector<2x8x8xf32>
    %51 = vector.extract_strided_slice %28 {offsets = [0, 72], sizes = [16, 8], strides = [1, 1]} : vector<16x96xf32> to vector<16x8xf32>
    %52 = vector.shape_cast %51 : vector<16x8xf32> to vector<2x8x8xf32>
    %53 = vector.extract_strided_slice %28 {offsets = [0, 80], sizes = [16, 8], strides = [1, 1]} : vector<16x96xf32> to vector<16x8xf32>
    %54 = vector.shape_cast %53 : vector<16x8xf32> to vector<2x8x8xf32>
    %55 = vector.extract_strided_slice %28 {offsets = [0, 88], sizes = [16, 8], strides = [1, 1]} : vector<16x96xf32> to vector<16x8xf32>
    %56 = vector.shape_cast %55 : vector<16x8xf32> to vector<2x8x8xf32>
    %57 = tpu.concatenate %50, %52, %54, %56 in 0 : vector<2x8x8xf32>, vector<2x8x8xf32>, vector<2x8x8xf32>, vector<2x8x8xf32> -> vector<8x8x8xf32>
    %58 = arith.truncf %57 : vector<8x8x8xf32> to vector<8x8x8xbf16>
    %59 = tpu.iota {dimensions = array<i32: 0>} : vector<8x8xi32>
    %60 = tpu.iota {dimensions = array<i32: 1>} : vector<8x8xi32>
    %61 = arith.cmpi sge, %59, %60 : vector<8x8xi32>
    %cst_13 = arith.constant 0.000000e+00 : f32
    %cst_14 = arith.constant -1.000000e+30 : f32
    %62 = vector.broadcast %cst_13 : f32 to vector<8x8xf32>
    %63 = vector.broadcast %cst_14 : f32 to vector<8x8xf32>
    %64 = arith.select %61, %62, %63 : vector<8x8xi1>, vector<8x8xf32>
    "tpu.trace_start"() <{level = 10 : i32, message = "bqd,bkd->bqk"}> : () -> ()
    %cst_15 = arith.constant dense<0.000000e+00> : vector<8x8x8xf32>
    %65 = tpu.matmul %38, %48, %cst_15 {dimension_numbers = #tpu.dot_dimension_numbers<[2], [2], [1], [1], [0, 0, 0, 1, 1, 1], [0], [0]>} : vector<8x8x8xbf16>, vector<8x8x8xbf16>, vector<8x8x8xf32> -> vector<8x8x8xf32>
    "tpu.trace_stop"() : () -> ()
    %66 = vector.shape_cast %64 : vector<8x8xf32> to vector<1x8x8xf32>
    %67 = vector.broadcast %66 : vector<1x8x8xf32> to vector<8x8x8xf32>
    %68 = arith.addf %65, %67 : vector<8x8x8xf32>
    %cst_16 = arith.constant dense<0xFF800000> : vector<8x8xf32>
    %69 = vector.multi_reduction <maximumf>, %68, %cst_16 [2] : vector<8x8x8xf32> to vector<8x8xf32>
    %70 = vector.shape_cast %69 : vector<8x8xf32> to vector<8x8x1xf32>
    %71 = vector.broadcast %70 : vector<8x8x1xf32> to vector<8x8x8xf32>
    %72 = arith.subf %68, %71 : vector<8x8x8xf32>
    %73 = math.exp %72 : vector<8x8x8xf32>
    %cst_17 = arith.constant dense<0.000000e+00> : vector<8x8xf32>
    %74 = vector.multi_reduction <add>, %73, %cst_17 [2] : vector<8x8x8xf32> to vector<8x8xf32>
    %75 = vector.shape_cast %74 : vector<8x8xf32> to vector<8x8x1xf32>
    %76 = arith.truncf %73 : vector<8x8x8xf32> to vector<8x8x8xbf16>
    "tpu.trace_start"() <{level = 10 : i32, message = "bqk,bkd->bqd"}> : () -> ()
    %cst_18 = arith.constant dense<0.000000e+00> : vector<8x8x8xf32>
    %77 = tpu.matmul %76, %58, %cst_18 {dimension_numbers = #tpu.dot_dimension_numbers<[2], [1], [1], [2], [0, 0, 0, 1, 1, 2], [0], [0]>} : vector<8x8x8xbf16>, vector<8x8x8xbf16>, vector<8x8x8xf32> -> vector<8x8x8xf32>
    "tpu.trace_stop"() : () -> ()
    %78 = tpu.reciprocal %75 {approx = true} : vector<8x8x1xf32> -> vector<8x8x1xf32>
    %79 = vector.broadcast %78 : vector<8x8x1xf32> to vector<8x8x8xf32>
    %80 = arith.mulf %77, %79 : vector<8x8x8xf32>
    %81 = arith.truncf %80 : vector<8x8x8xf32> to vector<8x8x8xbf16>
    %82 = vector.extract_strided_slice %81 {offsets = [0, 0, 0], sizes = [2, 8, 8], strides = [1, 1, 1]} : vector<8x8x8xbf16> to vector<2x8x8xbf16>
    %83 = vector.extract_strided_slice %81 {offsets = [2, 0, 0], sizes = [2, 8, 8], strides = [1, 1, 1]} : vector<8x8x8xbf16> to vector<2x8x8xbf16>
    %84 = vector.extract_strided_slice %81 {offsets = [4, 0, 0], sizes = [2, 8, 8], strides = [1, 1, 1]} : vector<8x8x8xbf16> to vector<2x8x8xbf16>
    %85 = vector.extract_strided_slice %81 {offsets = [6, 0, 0], sizes = [2, 8, 8], strides = [1, 1, 1]} : vector<8x8x8xbf16> to vector<2x8x8xbf16>
    %86 = tpu.concatenate %82, %83, %84, %85 in 2 : vector<2x8x8xbf16>, vector<2x8x8xbf16>, vector<2x8x8xbf16>, vector<2x8x8xbf16> -> vector<2x8x32xbf16>
    %87 = vector.shape_cast %86 : vector<2x8x32xbf16> to vector<16x32xbf16>
    %c0_19 = arith.constant 0 : index
    %c0_20 = arith.constant 0 : index
    %88 = vector.load %arg5[%c0_19, %c0_20] : memref<32x32xbf16, #tpu.memory_space<vmem>>, vector<32x32xbf16>
    %cst_21 = arith.constant dense<0.000000e+00> : vector<16x32xf32>
    %89 = tpu.matmul %87, %88, %cst_21 {dimension_numbers = #tpu.dot_dimension_numbers<[1], [0], [0], [1], [0, 0, 1, 1], [], []>} : vector<16x32xbf16>, vector<32x32xbf16>, vector<16x32xf32> -> vector<16x32xf32>
    %c0_22 = arith.constant 0 : index
    %c0_23 = arith.constant 0 : index
    %90 = vector.load %arg6[%c0_22, %c0_23] : memref<1x32xf32, #tpu.memory_space<vmem>>, vector<1x32xf32>
    %91 = vector.broadcast %90 : vector<1x32xf32> to vector<16x32xf32>
    %92 = arith.addf %89, %91 : vector<16x32xf32>
    %93 = arith.addf %1, %92 : vector<16x32xf32>
    %c0_24 = arith.constant 0 : index
    %c0_25 = arith.constant 0 : index
    %94 = vector.load %arg7[%c0_24, %c0_25] : memref<1x32xf32, #tpu.memory_space<vmem>>, vector<1x32xf32>
    %c0_26 = arith.constant 0 : index
    %c0_27 = arith.constant 0 : index
    %95 = vector.load %arg8[%c0_26, %c0_27] : memref<1x32xf32, #tpu.memory_space<vmem>>, vector<1x32xf32>
    %cst_28 = arith.constant dense<0.000000e+00> : vector<16xf32>
    %96 = vector.multi_reduction <add>, %93, %cst_28 [1] : vector<16x32xf32> to vector<16xf32>
    %97 = vector.shape_cast %96 : vector<16xf32> to vector<16x1xf32>
    %cst_29 = arith.constant 3.200000e+01 : f32
    %98 = vector.broadcast %cst_29 : f32 to vector<16x1xf32>
    %99 = arith.divf %97, %98 : vector<16x1xf32>
    %100 = vector.broadcast %99 : vector<16x1xf32> to vector<16x32xf32>
    %101 = arith.subf %93, %100 : vector<16x32xf32>
    %102 = arith.mulf %101, %101 : vector<16x32xf32>
    %cst_30 = arith.constant dense<0.000000e+00> : vector<16xf32>
    %103 = vector.multi_reduction <add>, %102, %cst_30 [1] : vector<16x32xf32> to vector<16xf32>
    %104 = vector.shape_cast %103 : vector<16xf32> to vector<16x1xf32>
    %cst_31 = arith.constant 3.200000e+01 : f32
    %105 = vector.broadcast %cst_31 : f32 to vector<16x1xf32>
    %106 = arith.divf %104, %105 : vector<16x1xf32>
    %107 = vector.broadcast %99 : vector<16x1xf32> to vector<16x32xf32>
    %108 = arith.subf %93, %107 : vector<16x32xf32>
    %cst_32 = arith.constant 9.99999974E-6 : f32
    %109 = vector.broadcast %cst_32 : f32 to vector<16x1xf32>
    %110 = arith.addf %106, %109 : vector<16x1xf32>
    %111 = math.rsqrt %110 : vector<16x1xf32>
    %112 = vector.broadcast %111 : vector<16x1xf32> to vector<16x32xf32>
    %113 = arith.mulf %108, %112 : vector<16x32xf32>
    %114 = vector.broadcast %94 : vector<1x32xf32> to vector<16x32xf32>
    %115 = arith.mulf %113, %114 : vector<16x32xf32>
    %116 = vector.broadcast %95 : vector<1x32xf32> to vector<16x32xf32>
    %117 = arith.addf %115, %116 : vector<16x32xf32>
    %118 = arith.truncf %117 : vector<16x32xf32> to vector<16x32xbf16>
    %cst_33 = arith.constant 0.000000e+00 : f32
    %119 = vector.broadcast %cst_33 : f32 to vector<16x32xf32>
    %c0_34 = arith.constant 0 : index
    %c0_35 = arith.constant 0 : index
    %120 = vector.load %arg9[%c0_34, %c0_35] : memref<32x128xbf16, #tpu.memory_space<vmem>>, vector<32x128xbf16>
    %cst_36 = arith.constant dense<0.000000e+00> : vector<16x128xf32>
    %121 = tpu.matmul %118, %120, %cst_36 {dimension_numbers = #tpu.dot_dimension_numbers<[1], [0], [0], [1], [0, 0, 1, 1], [], []>} : vector<16x32xbf16>, vector<32x128xbf16>, vector<16x128xf32> -> vector<16x128xf32>
    %c0_37 = arith.constant 0 : index
    %c0_38 = arith.constant 0 : index
    %122 = vector.load %arg10[%c0_37, %c0_38] : memref<1x128xf32, #tpu.memory_space<vmem>>, vector<1x128xf32>
    %123 = vector.broadcast %122 : vector<1x128xf32> to vector<16x128xf32>
    %124 = arith.addf %121, %123 : vector<16x128xf32>
    %cst_39 = arith.constant 0.000000e+00 : f32
    %125 = vector.broadcast %cst_39 : f32 to vector<16x128xf32>
    %126 = arith.maximumf %124, %125 : vector<16x128xf32>
    %127 = arith.truncf %126 : vector<16x128xf32> to vector<16x128xbf16>
    %c0_40 = arith.constant 0 : index
    %c0_41 = arith.constant 0 : index
    %128 = vector.load %arg11[%c0_40, %c0_41] : memref<128x32xbf16, #tpu.memory_space<vmem>>, vector<128x32xbf16>
    %cst_42 = arith.constant dense<0.000000e+00> : vector<16x32xf32>
    %129 = tpu.matmul %127, %128, %cst_42 {dimension_numbers = #tpu.dot_dimension_numbers<[1], [0], [0], [1], [0, 0, 1, 1], [], []>} : vector<16x128xbf16>, vector<128x32xbf16>, vector<16x32xf32> -> vector<16x32xf32>
    %130 = arith.addf %119, %129 : vector<16x32xf32>
    %c0_43 = arith.constant 0 : index
    %c0_44 = arith.constant 0 : index
    %131 = vector.load %arg12[%c0_43, %c0_44] : memref<1x32xf32, #tpu.memory_space<vmem>>, vector<1x32xf32>
    %132 = vector.broadcast %131 : vector<1x32xf32> to vector<16x32xf32>
    %133 = arith.addf %130, %132 : vector<16x32xf32>
    %134 = arith.addf %93, %133 : vector<16x32xf32>
    %135 = vector.shape_cast %134 : vector<16x32xf32> to vector<2x8x32xf32>
    %c0_45 = arith.constant 0 : index
    %c0_46 = arith.constant 0 : index
    %c0_47 = arith.constant 0 : index
    %136 = vector.load %arg13[%c0_45, %c0_46, %c0_47] : memref<2x8x32xf32, #tpu.memory_space<vmem>>, vector<2x8x32xf32>
    tpu.vector_store %arg13[%c0_45, %c0_46, %c0_47], %135 {strides = array<i32>} : memref<2x8x32xf32, #tpu.memory_space<vmem>>, vector<2x8x32xf32>,
    return
  }
  func.func @transform_0(%arg0: i32) -> (i32, i32, i32) {
    %c0_i32 = arith.constant 0 : i32
    %c0_i32_0 = arith.constant 0 : i32
    %c0_i32_1 = arith.constant 0 : i32
    return %arg0, %c0_i32, %c0_i32_0 : i32, i32, i32
  }
  func.func @transform_1(%arg0: i32) -> (i32, i32) {
    %c0_i32 = arith.constant 0 : i32
    %c0_i32_0 = arith.constant 0 : i32
    %c0_i32_1 = arith.constant 0 : i32
    return %c0_i32, %c0_i32_0 : i32, i32
  }
  func.func @transform_2(%arg0: i32) -> (i32, i32) {
    %c0_i32 = arith.constant 0 : i32
    %c0_i32_0 = arith.constant 0 : i32
    %c0_i32_1 = arith.constant 0 : i32
    return %c0_i32, %c0_i32_0 : i32, i32
  }
  func.func @transform_3(%arg0: i32) -> (i32, i32) {
    %c0_i32 = arith.constant 0 : i32
    %c0_i32_0 = arith.constant 0 : i32
    %c0_i32_1 = arith.constant 0 : i32
    return %c0_i32, %c0_i32_0 : i32, i32
  }
  func.func @transform_4(%arg0: i32) -> (i32, i32) {
    %c0_i32 = arith.constant 0 : i32
    %c0_i32_0 = arith.constant 0 : i32
    %c0_i32_1 = arith.constant 0 : i32
    return %c0_i32, %c0_i32_0 : i32, i32
  }
  func.func @transform_5(%arg0: i32) -> (i32, i32) {
    %c0_i32 = arith.constant 0 : i32
    %c0_i32_0 = arith.constant 0 : i32
    %c0_i32_1 = arith.constant 0 : i32
    return %c0_i32, %c0_i32_0 : i32, i32
  }
  func.func @transform_6(%arg0: i32) -> (i32, i32) {
    %c0_i32 = arith.constant 0 : i32
    %c0_i32_0 = arith.constant 0 : i32
    %c0_i32_1 = arith.constant 0 : i32
    return %c0_i32, %c0_i32_0 : i32, i32
  }
  func.func @transform_7(%arg0: i32) -> (i32, i32) {
    %c0_i32 = arith.constant 0 : i32
    %c0_i32_0 = arith.constant 0 : i32
    %c0_i32_1 = arith.constant 0 : i32
    return %c0_i32, %c0_i32_0 : i32, i32
  }
  func.func @transform_8(%arg0: i32) -> (i32, i32) {
    %c0_i32 = arith.constant 0 : i32
    %c0_i32_0 = arith.constant 0 : i32
    %c0_i32_1 = arith.constant 0 : i32
    return %c0_i32, %c0_i32_0 : i32, i32
  }
  func.func @transform_9(%arg0: i32) -> (i32, i32) {
    %c0_i32 = arith.constant 0 : i32
    %c0_i32_0 = arith.constant 0 : i32
    %c0_i32_1 = arith.constant 0 : i32
    return %c0_i32, %c0_i32_0 : i32, i32
  }
  func.func @transform_10(%arg0: i32) -> (i32, i32) {
    %c0_i32 = arith.constant 0 : i32
    %c0_i32_0 = arith.constant 0 : i32
    %c0_i32_1 = arith.constant 0 : i32
    return %c0_i32, %c0_i32_0 : i32, i32
  }
  func.func @transform_11(%arg0: i32) -> (i32, i32) {
    %c0_i32 = arith.constant 0 : i32
    %c0_i32_0 = arith.constant 0 : i32
    %c0_i32_1 = arith.constant 0 : i32
    return %c0_i32, %c0_i32_0 : i32, i32
  }
  func.func @transform_12(%arg0: i32) -> (i32, i32, i32) {
    %c0_i32 = arith.constant 0 : i32
    %c0_i32_0 = arith.constant 0 : i32
    %c0_i32_1 = arith.constant 0 : i32
    return %arg0, %c0_i32, %c0_i32_0 : i32, i32, i32
  }
}

module attributes {stable_mosaic.version = 11 : i64} {
  func.func @block_kernel(%arg0: i32, %arg1: memref<2x8x32xf32, #tpu.memory_space<vmem>>, %arg2: memref<1x32xf32, #tpu.memory_space<vmem>>, %arg3: memref<1x32xf32, #tpu.memory_space<vmem>>, %arg4: memref<32x96xbf16, #tpu.memory_space<vmem>>, %arg5: memref<32x32xbf16, #tpu.memory_space<vmem>>, %arg6: memref<1x32xf32, #tpu.memory_space<vmem>>, %arg7: memref<1x32xf32, #tpu.memory_space<vmem>>, %arg8: memref<1x32xf32, #tpu.memory_space<vmem>>, %arg9: memref<32x128xbf16, #tpu.memory_space<vmem>>, %arg10: memref<1x128xf32, #tpu.memory_space<vmem>>, %arg11: memref<128x32xbf16, #tpu.memory_space<vmem>>, %arg12: memref<1x32xf32, #tpu.memory_space<vmem>>, %arg13: memref<2x8x32xf32, #tpu.memory_space<vmem>>) attributes {dimension_semantics = [#tpu.dimension_semantics<parallel>], iteration_bounds = array<i64: 2>, scalar_prefetch = 0 : i64, scratch_operands = 0 : i64, tpu.core_type = #tpu.core_type<tc>, window_params = [{transform_indices = @transform_0, window_bounds = array<i64: 2, 8, 32>}, {pipeline_mode = #tpu.pipeline_mode<synchronous>, transform_indices = @transform_1, window_bounds = array<i64: 1, 32>}, {pipeline_mode = #tpu.pipeline_mode<synchronous>, transform_indices = @transform_2, window_bounds = array<i64: 1, 32>}, {pipeline_mode = #tpu.pipeline_mode<synchronous>, transform_indices = @transform_3, window_bounds = array<i64: 32, 96>}, {pipeline_mode = #tpu.pipeline_mode<synchronous>, transform_indices = @transform_4, window_bounds = array<i64: 32, 32>}, {pipeline_mode = #tpu.pipeline_mode<synchronous>, transform_indices = @transform_5, window_bounds = array<i64: 1, 32>}, {pipeline_mode = #tpu.pipeline_mode<synchronous>, transform_indices = @transform_6, window_bounds = array<i64: 1, 32>}, {pipeline_mode = #tpu.pipeline_mode<synchronous>, transform_indices = @transform_7, window_bounds = array<i64: 1, 32>}, {pipeline_mode = #tpu.pipeline_mode<synchronous>, transform_indices = @transform_8, window_bounds = array<i64: 32, 128>}, {pipeline_mode = #tpu.pipeline_mode<synchronous>, transform_indices = @transform_9, window_bounds = array<i64: 1, 128>}, {pipeline_mode = #tpu.pipeline_mode<synchronous>, transform_indices = @transform_10, window_bounds = array<i64: 128, 32>}, {pipeline_mode = #tpu.pipeline_mode<synchronous>, transform_indices = @transform_11, window_bounds = array<i64: 1, 32>}, {transform_indices = @transform_12, window_bounds = array<i64: 2, 8, 32>}]} {
    %c0 = arith.constant 0 : index
    %c0_0 = arith.constant 0 : index
    %c0_1 = arith.constant 0 : index
    %0 = vector.load %arg1[%c0, %c0_0, %c0_1] : memref<2x8x32xf32, #tpu.memory_space<vmem>>, vector<2x8x32xf32>
    %1 = vector.shape_cast %0 : vector<2x8x32xf32> to vector<16x32xf32>
    %c0_2 = arith.constant 0 : index
    %c0_3 = arith.constant 0 : index
    %2 = vector.load %arg2[%c0_2, %c0_3] : memref<1x32xf32, #tpu.memory_space<vmem>>, vector<1x32xf32>
    %c0_4 = arith.constant 0 : index
    %c0_5 = arith.constant 0 : index
    %3 = vector.load %arg3[%c0_4, %c0_5] : memref<1x32xf32, #tpu.memory_space<vmem>>, vector<1x32xf32>
    %cst = arith.constant dense<0.000000e+00> : vector<16xf32>
    %4 = vector.multi_reduction <add>, %1, %cst [1] : vector<16x32xf32> to vector<16xf32>
    %5 = vector.shape_cast %4 : vector<16xf32> to vector<16x1xf32>
    %cst_6 = arith.constant 3.200000e+01 : f32
    %6 = vector.broadcast %cst_6 : f32 to vector<16x1xf32>
    %7 = arith.divf %5, %6 : vector<16x1xf32>
    %8 = vector.broadcast %7 : vector<16x1xf32> to vector<16x32xf32>
    %9 = arith.subf %1, %8 : vector<16x32xf32>
    %10 = arith.mulf %9, %9 : vector<16x32xf32>
    %cst_7 = arith.constant dense<0.000000e+00> : vector<16xf32>
    %11 = vector.multi_reduction <add>, %10, %cst_7 [1] : vector<16x32xf32> to vector<16xf32>
    %12 = vector.shape_cast %11 : vector<16xf32> to vector<16x1xf32>
    %cst_8 = arith.constant 3.200000e+01 : f32
    %13 = vector.broadcast %cst_8 : f32 to vector<16x1xf32>
    %14 = arith.divf %12, %13 : vector<16x1xf32>
    %15 = vector.broadcast %7 : vector<16x1xf32> to vector<16x32xf32>
    %16 = arith.subf %1, %15 : vector<16x32xf32>
    %cst_9 = arith.constant 9.99999974E-6 : f32
    %17 = vector.broadcast %cst_9 : f32 to vector<16x1xf32>
    %18 = arith.addf %14, %17 : vector<16x1xf32>
    %19 = math.rsqrt %18 : vector<16x1xf32>
    %20 = vector.broadcast %19 : vector<16x1xf32> to vector<16x32xf32>
    %21 = arith.mulf %16, %20 : vector<16x32xf32>
    %22 = vector.broadcast %2 : vector<1x32xf32> to vector<16x32xf32>
    %23 = arith.mulf %21, %22 : vector<16x32xf32>
    %24 = vector.broadcast %3 : vector<1x32xf32> to vector<16x32xf32>
    %25 = arith.addf %23, %24 : vector<16x32xf32>
    %26 = arith.truncf %25 : vector<16x32xf32> to vector<16x32xbf16>
    %c0_10 = arith.constant 0 : index
    %c0_11 = arith.constant 0 : index
    %27 = vector.load %arg4[%c0_10, %c0_11] : memref<32x96xbf16, #tpu.memory_space<vmem>>, vector<32x96xbf16>
    %cst_12 = arith.constant dense<0.000000e+00> : vector<16x96xf32>
    %28 = tpu.matmul %26, %27, %cst_12 {dimension_numbers = #tpu.dot_dimension_numbers<[1], [0], [0], [1], [0, 0, 1, 1], [], []>} : vector<16x32xbf16>, vector<32x96xbf16>, vector<16x96xf32> -> vector<16x96xf32>
    %29 = vector.extract_strided_slice %28 {offsets = [0, 0], sizes = [16, 8], strides = [1, 1]} : vector<16x96xf32> to vector<16x8xf32>
    %30 = vector.shape_cast %29 : vector<16x8xf32> to vector<2x8x8xf32>
    %31 = vector.extract_strided_slice %28 {offsets = [0, 8], sizes = [16, 8], strides = [1, 1]} : vector<16x96xf32> to vector<16x8xf32>
    %32 = vector.shape_cast %31 : vector<16x8xf32> to vector<2x8x8xf32>
    %33 = vector.extract_strided_slice %28 {offsets = [0, 16], sizes = [16, 8], strides = [1, 1]} : vector<16x96xf32> to vector<16x8xf32>
    %34 = vector.shape_cast %33 : vector<16x8xf32> to vector<2x8x8xf32>
    %35 = vector.extract_strided_slice %28 {offsets = [0, 24], sizes = [16, 8], strides = [1, 1]} : vector<16x96xf32> to vector<16x8xf32>
    %36 = vector.shape_cast %35 : vector<16x8xf32> to vector<2x8x8xf32>
    %37 = tpu.concatenate %30, %32, %34, %36 in 0 : vector<2x8x8xf32>, vector<2x8x8xf32>, vector<2x8x8xf32>, vector<2x8x8xf32> -> vector<8x8x8xf32>
    %38 = arith.truncf %37 : vector<8x8x8xf32> to vector<8x8x8xbf16>
    %39 = vector.extract_strided_slice %28 {offsets = [0, 32], sizes = [16, 8], strides = [1, 1]} : vector<16x96xf32> to vector<16x8xf32>
    %40 = vector.shape_cast %39 : vector<16x8xf32> to vector<2x8x8xf32>
    %41 = vector.extract_strided_slice %28 {offsets = [0, 40], sizes = [16, 8], strides = [1, 1]} : vector<16x96xf32> to vector<16x8xf32>
    %42 = vector.shape_cast %41 : vector<16x8xf32> to vector<2x8x8xf32>
    %43 = vector.extract_strided_slice %28 {offsets = [0, 48], sizes = [16, 8], strides = [1, 1]} : vector<16x96xf32> to vector<16x8xf32>
    %44 = vector.shape_cast %43 : vector<16x8xf32> to vector<2x8x8xf32>
    %45 = vector.extract_strided_slice %28 {offsets = [0, 56], sizes = [16, 8], strides = [1, 1]} : vector<16x96xf32> to vector<16x8xf32>
    %46 = vector.shape_cast %45 : vector<16x8xf32> to vector<2x8x8xf32>
    %47 = tpu.concatenate %40, %42, %44, %46 in 0 : vector<2x8x8xf32>, vector<2x8x8xf32>, vector<2x8x8xf32>, vector<2x8x8xf32> -> vector<8x8x8xf32>
    %48 = arith.truncf %47 : vector<8x8x8xf32> to vector<8x8x8xbf16>
    %49 = vector.extract_strided_slice %28 {offsets = [0, 64], sizes = [16, 8], strides = [1, 1]} : vector<16x96xf32> to vector<16x8xf32>
    %50 = vector.shape_cast %49 : vector<16x8xf32> to vector<2x8x8xf32>
    %51 = vector.extract_strided_slice %28 {offsets = [0, 72], sizes = [16, 8], strides = [1, 1]} : vector<16x96xf32> to vector<16x8xf32>
    %52 = vector.shape_cast %51 : vector<16x8xf32> to vector<2x8x8xf32>
    %53 = vector.extract_strided_slice %28 {offsets = [0, 80], sizes = [16, 8], strides = [1, 1]} : vector<16x96xf32> to vector<16x8xf32>
    %54 = vector.shape_cast %53 : vector<16x8xf32> to vector<2x8x8xf32>
    %55 = vector.extract_strided_slice %28 {offsets = [0, 88], sizes = [16, 8], strides = [1, 1]} : vector<16x96xf32> to vector<16x8xf32>
    %56 = vector.shape_cast %55 : vector<16x8xf32> to vector<2x8x8xf32>
    %57 = tpu.concatenate %50, %52, %54, %56 in 0 : vector<2x8x8xf32>, vector<2x8x8xf32>, vector<2x8x8xf32>, vector<2x8x8xf32> -> vector<8x8x8xf32>
    %58 = arith.truncf %57 : vector<8x8x8xf32> to vector<8x8x8xbf16>
    %59 = tpu.iota {dimensions = array<i32: 0>} : vector<8x8xi32>
    %60 = tpu.iota {dimensions = array<i32: 1>} : vector<8x8xi32>
    %61 = arith.cmpi sge, %59, %60 : vector<8x8xi32>
    %cst_13 = arith.constant 0.000000e+00 : f32
    %cst_14 = arith.constant -1.000000e+30 : f32
    %62 = vector.broadcast %cst_13 : f32 to vector<8x8xf32>
    %63 = vector.broadcast %cst_14 : f32 to vector<8x8xf32>
    %64 = arith.select %61, %62, %63 : vector<8x8xi1>, vector<8x8xf32>
    "tpu.trace_start"() <{level = 10 : i32, message = "bqd,bkd->bqk"}> : () -> ()
    %cst_15 = arith.constant dense<0.000000e+00> : vector<8x8x8xf32>
    %65 = tpu.matmul %38, %48, %cst_15 {dimension_numbers = #tpu.dot_dimension_numbers<[2], [2], [1], [1], [0, 0, 0, 1, 1, 1], [0], [0]>} : vector<8x8x8xbf16>, vector<8x8x8xbf16>, vector<8x8x8xf32> -> vector<8x8x8xf32>
    "tpu.trace_stop"() : () -> ()
    %66 = vector.shape_cast %64 : vector<8x8xf32> to vector<1x8x8xf32>
    %67 = vector.broadcast %66 : vector<1x8x8xf32> to vector<8x8x8xf32>
    %68 = arith.addf %65, %67 : vector<8x8x8xf32>
    %cst_16 = arith.constant dense<0xFF800000> : vector<8x8xf32>
    %69 = vector.multi_reduction <maximumf>, %68, %cst_16 [2] : vector<8x8x8xf32> to vector<8x8xf32>
    %70 = vector.shape_cast %69 : vector<8x8xf32> to vector<8x8x1xf32>
    %71 = vector.broadcast %70 : vector<8x8x1xf32> to vector<8x8x8xf32>
    %72 = arith.subf %68, %71 : vector<8x8x8xf32>
    %73 = math.exp %72 : vector<8x8x8xf32>
    %cst_17 = arith.constant dense<0.000000e+00> : vector<8x8xf32>
    %74 = vector.multi_reduction <add>, %73, %cst_17 [2] : vector<8x8x8xf32> to vector<8x8xf32>
    %75 = vector.shape_cast %74 : vector<8x8xf32> to vector<8x8x1xf32>
    %76 = arith.truncf %73 : vector<8x8x8xf32> to vector<8x8x8xbf16>
    "tpu.trace_start"() <{level = 10 : i32, message = "bqk,bkd->bqd"}> : () -> ()
    %cst_18 = arith.constant dense<0.000000e+00> : vector<8x8x8xf32>
    %77 = tpu.matmul %76, %58, %cst_18 {dimension_numbers = #tpu.dot_dimension_numbers<[2], [1], [1], [2], [0, 0, 0, 1, 1, 2], [0], [0]>} : vector<8x8x8xbf16>, vector<8x8x8xbf16>, vector<8x8x8xf32> -> vector<8x8x8xf32>
    "tpu.trace_stop"() : () -> ()
    %78 = tpu.reciprocal %75 {approx = true} : vector<8x8x1xf32> -> vector<8x8x1xf32>
    %79 = vector.broadcast %78 : vector<8x8x1xf32> to vector<8x8x8xf32>
    %80 = arith.mulf %77, %79 : vector<8x8x8xf32>
    %81 = arith.truncf %80 : vector<8x8x8xf32> to vector<8x8x8xbf16>
    %82 = vector.extract_strided_slice %81 {offsets = [0, 0, 0], sizes = [2, 8, 8], strides = [1, 1, 1]} : vector<8x8x8xbf16> to vector<2x8x8xbf16>
    %83 = vector.extract_strided_slice %81 {offsets = [2, 0, 0], sizes = [2, 8, 8], strides = [1, 1, 1]} : vector<8x8x8xbf16> to vector<2x8x8xbf16>
    %84 = vector.extract_strided_slice %81 {offsets = [4, 0, 0], sizes = [2, 8, 8], strides = [1, 1, 1]} : vector<8x8x8xbf16> to vector<2x8x8xbf16>
    %85 = vector.extract_strided_slice %81 {offsets = [6, 0, 0], sizes = [2, 8, 8], strides = [1, 1, 1]} : vector<8x8x8xbf16> to vector<2x8x8xbf16>
    %86 = tpu.concatenate %82, %83, %84, %85 in 2 : vector<2x8x8xbf16>, vector<2x8x8xbf16>, vector<2x8x8xbf16>, vector<2x8x8xbf16> -> vector<2x8x32xbf16>
    %87 = vector.shape_cast %86 : vector<2x8x32xbf16> to vector<16x32xbf16>
    %c0_19 = arith.constant 0 : index
    %c0_20 = arith.constant 0 : index
    %88 = vector.load %arg5[%c0_19, %c0_20] : memref<32x32xbf16, #tpu.memory_space<vmem>>, vector<32x32xbf16>
    %cst_21 = arith.constant dense<0.000000e+00> : vector<16x32xf32>
    %89 = tpu.matmul %87, %88, %cst_21 {dimension_numbers = #tpu.dot_dimension_numbers<[1], [0], [0], [1], [0, 0, 1, 1], [], []>} : vector<16x32xbf16>, vector<32x32xbf16>, vector<16x32xf32> -> vector<16x32xf32>
    %c0_22 = arith.constant 0 : index
    %c0_23 = arith.constant 0 : index
    %90 = vector.load %arg6[%c0_22, %c0_23] : memref<1x32xf32, #tpu.memory_space<vmem>>, vector<1x32xf32>
    %91 = vector.broadcast %90 : vector<1x32xf32> to vector<16x32xf32>
    %92 = arith.addf %89, %91 : vector<16x32xf32>
    %93 = arith.addf %1, %92 : vector<16x32xf32>
    %c0_24 = arith.constant 0 : index
    %c0_25 = arith.constant 0 : index
    %94 = vector.load %arg7[%c0_24, %c0_25] : memref<1x32xf32, #tpu.memory_space<vmem>>, vector<1x32xf32>
    %c0_26 = arith.constant 0 : index
    %c0_27 = arith.constant 0 : index
    %95 = vector.load %arg8[%c0_26, %c0_27] : memref<1x32xf32, #tpu.memory_space<vmem>>, vector<1x32xf32>
    %cst_28 = arith.constant dense<0.000000e+00> : vector<16xf32>
    %96 = vector.multi_reduction <add>, %93, %cst_28 [1] : vector<16x32xf32> to vector<16xf32>
    %97 = vector.shape_cast %96 : vector<16xf32> to vector<16x1xf32>
    %cst_29 = arith.constant 3.200000e+01 : f32
    %98 = vector.broadcast %cst_29 : f32 to vector<16x1xf32>
    %99 = arith.divf %97, %98 : vector<16x1xf32>
    %100 = vector.broadcast %99 : vector<16x1xf32> to vector<16x32xf32>
    %101 = arith.subf %93, %100 : vector<16x32xf32>
    %102 = arith.mulf %101, %101 : vector<16x32xf32>
    %cst_30 = arith.constant dense<0.000000e+00> : vector<16xf32>
    %103 = vector.multi_reduction <add>, %102, %cst_30 [1] : vector<16x32xf32> to vector<16xf32>
    %104 = vector.shape_cast %103 : vector<16xf32> to vector<16x1xf32>
    %cst_31 = arith.constant 3.200000e+01 : f32
    %105 = vector.broadcast %cst_31 : f32 to vector<16x1xf32>
    %106 = arith.divf %104, %105 : vector<16x1xf32>
    %107 = vector.broadcast %99 : vector<16x1xf32> to vector<16x32xf32>
    %108 = arith.subf %93, %107 : vector<16x32xf32>
    %cst_32 = arith.constant 9.99999974E-6 : f32
    %109 = vector.broadcast %cst_32 : f32 to vector<16x1xf32>
    %110 = arith.addf %106, %109 : vector<16x1xf32>
    %111 = math.rsqrt %110 : vector<16x1xf32>
    %112 = vector.broadcast %111 : vector<16x1xf32> to vector<16x32xf32>
    %113 = arith.mulf %108, %112 : vector<16x32xf32>
    %114 = vector.broadcast %94 : vector<1x32xf32> to vector<16x32xf32>
    %115 = arith.mulf %113, %114 : vector<16x32xf32>
    %116 = vector.broadcast %95 : vector<1x32xf32> to vector<16x32xf32>
    %117 = arith.addf %115, %116 : vector<16x32xf32>
    %118 = arith.truncf %117 : vector<16x32xf32> to vector<16x32xbf16>
    %cst_33 = arith.constant 0.000000e+00 : f32
    %119 = vector.broadcast %cst_33 : f32 to vector<16x32xf32>
    %c0_34 = arith.constant 0 : index
    %c0_35 = arith.constant 0 : index
    %120 = vector.load %arg9[%c0_34, %c0_35] : memref<32x128xbf16, #tpu.memory_space<vmem>>, vector<32x128xbf16>
    %cst_36 = arith.constant dense<0.000000e+00> : vector<16x128xf32>
    %121 = tpu.matmul %118, %120, %cst_36 {dimension_numbers = #tpu.dot_dimension_numbers<[1], [0], [0], [1], [0, 0, 1, 1], [], []>} : vector<16x32xbf16>, vector<32x128xbf16>, vector<16x128xf32> -> vector<16x128xf32>
    %c0_37 = arith.constant 0 : index
    %c0_38 = arith.constant 0 : index
    %122 = vector.load %arg10[%c0_37, %c0_38] : memref<1x128xf32, #tpu.memory_space<vmem>>, vector<1x128xf32>
    %123 = vector.broadcast %122 : vector<1x128xf32> to vector<16x128xf32>
    %124 = arith.addf %121, %123 : vector<16x128xf32>
    %cst_39 = arith.constant 0.000000e+00 : f32
    %125 = vector.broadcast %cst_39 : f32 to vector<16x128xf32>
    %126 = arith.maximumf %124, %125 : vector<16x128xf32>
    %127 = arith.truncf %126 : vector<16x128xf32> to vector<16x128xbf16>
    %c0_40 = arith.constant 0 : index
    %c0_41 = arith.constant 0 : index
    %128 = vector.load %arg11[%c0_40, %c0_41] : memref<128x32xbf16, #tpu.memory_space<vmem>>, vector<128x32xbf16>
    %cst_42 = arith.constant dense<0.000000e+00> : vector<16x32xf32>
    %129 = tpu.matmul %127, %128, %cst_42 {dimension_numbers = #tpu.dot_dimension_numbers<[1], [0], [0], [1], [0, 0, 1, 1], [], []>} : vector<16x128xbf16>, vector<128x32xbf16>, vector<16x32xf32> -> vector<16x32xf32>
    %130 = arith.addf %119, %129 : vector<16x32xf32>
    %c0_43 = arith.constant 0 : index
    %c0_44 = arith.constant 0 : index
    %131 = vector.load %arg12[%c0_43, %c0_44] : memref<1x32xf32, #tpu.memory_space<vmem>>, vector<1x32xf32>
    %132 = vector.broadcast %131 : vector<1x32xf32> to vector<16x32xf32>
    %133 = arith.addf %130, %132 : vector<16x32xf32>
    %134 = arith.addf %93, %133 : vector<16x32xf32>
    %135 = vector.shape_cast %134 : vector<16x32xf32> to vector<2x8x32xf32>
    %c0_45 = arith.constant 0 : index
    %c0_46 = arith.constant 0 : index
    %c0_47 = arith.constant 0 : index
    %136 = vector.load %arg13[%c0_45, %c0_46, %c0_47] : memref<2x8x32xf32, #tpu.memory_space<vmem>>, vector<2x8x32xf32>
    tpu.vector_store %arg13[%c0_45, %c0_46, %c0_47], %135 {strides = array<i32>} : memref<2x8x32xf32, #tpu.memory_space<vmem>>, vector<2x8x32xf32>,
    return
  }
  func.func @transform_0(%arg0: i32) -> (i32, i32, i32) {
    %c0_i32 = arith.constant 0 : i32
    %c0_i32_0 = arith.constant 0 : i32
    %c0_i32_1 = arith.constant 0 : i32
    return %arg0, %c0_i32, %c0_i32_0 : i32, i32, i32
  }
  func.func @transform_1(%arg0: i32) -> (i32, i32) {
    %c0_i32 = arith.constant 0 : i32
    %c0_i32_0 = arith.constant 0 : i32
    %c0_i32_1 = arith.constant 0 : i32
    return %c0_i32, %c0_i32_0 : i32, i32
  }
  func.func @transform_2(%arg0: i32) -> (i32, i32) {
    %c0_i32 = arith.constant 0 : i32
    %c0_i32_0 = arith.constant 0 : i32
    %c0_i32_1 = arith.constant 0 : i32
    return %c0_i32, %c0_i32_0 : i32, i32
  }
  func.func @transform_3(%arg0: i32) -> (i32, i32) {
    %c0_i32 = arith.constant 0 : i32
    %c0_i32_0 = arith.constant 0 : i32
    %c0_i32_1 = arith.constant 0 : i32
    return %c0_i32, %c0_i32_0 : i32, i32
  }
  func.func @transform_4(%arg0: i32) -> (i32, i32) {
    %c0_i32 = arith.constant 0 : i32
    %c0_i32_0 = arith.constant 0 : i32
    %c0_i32_1 = arith.constant 0 : i32
    return %c0_i32, %c0_i32_0 : i32, i32
  }
  func.func @transform_5(%arg0: i32) -> (i32, i32) {
    %c0_i32 = arith.constant 0 : i32
    %c0_i32_0 = arith.constant 0 : i32
    %c0_i32_1 = arith.constant 0 : i32
    return %c0_i32, %c0_i32_0 : i32, i32
  }
  func.func @transform_6(%arg0: i32) -> (i32, i32) {
    %c0_i32 = arith.constant 0 : i32
    %c0_i32_0 = arith.constant 0 : i32
    %c0_i32_1 = arith.constant 0 : i32
    return %c0_i32, %c0_i32_0 : i32, i32
  }
  func.func @transform_7(%arg0: i32) -> (i32, i32) {
    %c0_i32 = arith.constant 0 : i32
    %c0_i32_0 = arith.constant 0 : i32
    %c0_i32_1 = arith.constant 0 : i32
    return %c0_i32, %c0_i32_0 : i32, i32
  }
  func.func @transform_8(%arg0: i32) -> (i32, i32) {
    %c0_i32 = arith.constant 0 : i32
    %c0_i32_0 = arith.constant 0 : i32
    %c0_i32_1 = arith.constant 0 : i32
    return %c0_i32, %c0_i32_0 : i32, i32
  }
  func.func @transform_9(%arg0: i32) -> (i32, i32) {
    %c0_i32 = arith.constant 0 : i32
    %c0_i32_0 = arith.constant 0 : i32
    %c0_i32_1 = arith.constant 0 : i32
    return %c0_i32, %c0_i32_0 : i32, i32
  }
  func.func @transform_10(%arg0: i32) -> (i32, i32) {
    %c0_i32 = arith.constant 0 : i32
    %c0_i32_0 = arith.constant 0 : i32
    %c0_i32_1 = arith.constant 0 : i32
    return %c0_i32, %c0_i32_0 : i32, i32
  }
  func.func @transform_11(%arg0: i32) -> (i32, i32) {
    %c0_i32 = arith.constant 0 : i32
    %c0_i32_0 = arith.constant 0 : i32
    %c0_i32_1 = arith.constant 0 : i32
    return %c0_i32, %c0_i32_0 : i32, i32
  }
  func.func @transform_12(%arg0: i32) -> (i32, i32, i32) {
    %c0_i32 = arith.constant 0 : i32
    %c0_i32_0 = arith.constant 0 : i32
    %c0_i32_1 = arith.constant 0 : i32
    return %arg0, %c0_i32, %c0_i32_0 : i32, i32, i32
  }
}

</mosaic_0001>

<llo_original>
// kernel: tpu_custom_call.1
$region0: #{tpu_custom_call.1}
  #allocation0 [shape = 'u32[]', space=smem, size = 0x4, offset = 0x4, fixed_abs, tag = 'smem constant byte address 0x4 - core index']
  #allocation1 [shape = 'u32[144,128]{1,0:T(1,128)}', space=vmem, size = 0x12000, scoped, tag = 'internal scratch']
  %s0 = inlined_call_operand.vmem [shape: f32[4,8,32], index: 0, kind: input, shape index: {}]
  %s1 = inlined_call_operand.vmem [shape: f32[1,32], index: 1, kind: input, shape index: {}]
  %s2 = inlined_call_operand.vmem [shape: f32[1,32], index: 2, kind: input, shape index: {}]
  %s3 = inlined_call_operand.vmem [shape: bf16[32,96], index: 3, kind: input, shape index: {}]
  %s4 = inlined_call_operand.vmem [shape: bf16[32,32], index: 4, kind: input, shape index: {}]
  %s5 = inlined_call_operand.vmem [shape: f32[1,32], index: 5, kind: input, shape index: {}]
  %s6 = inlined_call_operand.vmem [shape: f32[1,32], index: 6, kind: input, shape index: {}]
  %s7 = inlined_call_operand.vmem [shape: f32[1,32], index: 7, kind: input, shape index: {}]
  %s8 = inlined_call_operand.vmem [shape: bf16[32,128], index: 8, kind: input, shape index: {}]
  %s9 = inlined_call_operand.vmem [shape: f32[1,128], index: 9, kind: input, shape index: {}]
  %s10 = inlined_call_operand.vmem [shape: bf16[128,32], index: 10, kind: input, shape index: {}]
  %s11 = inlined_call_operand.vmem [shape: f32[1,32], index: 11, kind: input, shape index: {}]
  %s12 = inlined_call_operand.hbm [shape: f32[4,8,32], index: 12, kind: output, shape index: {}]
  %s13 = sld [smem:[#allocation0]]
  $region81: #{tpu_custom_call.1} parent=0
    _
  %s15 = ssub.s32 1, %s13
  %s16 = scalar_select 0, %s15, %s13
  $region1: #{tpu_custom_call.1} parent=0
    #allocation2 [shape = 'u8[16384]{0}', space=vmem, size = 0x4000, scoped, tag = 'output window, operand 0']
    #allocation3 [shape = 's32[2]{0}', space=sflag, size = 0x8, scoped, tag = 'scoped memory for tpu_custom_call.1']
    %17 = vsyncpa [#allocation3], 0
    %s18 = scalar_lea.sflag [#allocation3], 1
    %19 = vsyncpa %s18, 0
    loop: start=0, step=1, limit=4
    $region2: #{tpu_custom_call.1} parent=1 // loop_pre_header
      _
    $region3: #{tpu_custom_call.1} parent=1 // loop_header
      %s21 = sphi 0, %s25
      %p22 = scmp.ge.s32.totalorder %s21, 4
      %s31 = sphi 0, %s33
      %s34 = sphi 0, %s31
      %s35 = sphi 0, %s34
      %s51 = sphi 0, %s35
      %s55 = sphi 0, %s55
      %s57 = sphi 0, %s55
      %s58 = sphi 0, %s57
      %s72 = sphi 0, %s58
      %s76 = sphi 0, %s76
      %s78 = sphi 0, %s76
      %s79 = sphi 0, %s78
      %s93 = sphi 0, %s79
      %s97 = sphi 0, %s97
      %s99 = sphi 0, %s97
      %s100 = sphi 0, %s99
      %s114 = sphi 0, %s100
      %s118 = sphi 0, %s118
      %s120 = sphi 0, %s118
      %s121 = sphi 0, %s120
      %s135 = sphi 0, %s121
      %s139 = sphi 0, %s139
      %s141 = sphi 0, %s139
      %s142 = sphi 0, %s141
      %s156 = sphi 0, %s142
      %s160 = sphi 0, %s160
      %s162 = sphi 0, %s160
      %s163 = sphi 0, %s162
      %s177 = sphi 0, %s163
      %s181 = sphi 0, %s181
      %s183 = sphi 0, %s181
      %s184 = sphi 0, %s183
      %s198 = sphi 0, %s184
      %s202 = sphi 0, %s202
      %s204 = sphi 0, %s202
      %s205 = sphi 0, %s204
      %s219 = sphi 0, %s205
      %s223 = sphi 0, %s223
      %s225 = sphi 0, %s223
      %s226 = sphi 0, %s225
      %s240 = sphi 0, %s226
      %s244 = sphi 0, %s244
      %s246 = sphi 0, %s244
      %s247 = sphi 0, %s246
      %s261 = sphi 0, %s247
      %s265 = sphi 0, %s265
      %s267 = sphi 0, %s265
      %s268 = sphi 0, %s267
      %s282 = sphi 0, %s268
      %s288 = sphi 0, %s290
      %s291 = sphi 0, %s288
      %s292 = sphi 0, %s291
      %s308 = sphi 0, %s292
    $region4: #{tpu_custom_call.1} parent=1 // loop_header_branch
      %24 = sbr.rel (%p22) target = $region8
    $region5: #{tpu_custom_call.1} parent=1 // loop_body
      %s26 = ssub.s32 %s21, 1
      %s27 = ssub.s32 %s21, 2
      %s28 = sadd.s32 %s21, 1
      %s29 = ssub.s32 %s21, %s28
      %p30 = scmp.eq.s32.totalorder %s29, 0
      %s32 = sadd.s32 %s31, 1
      %s33 = scalar_select %p30, %s31, %s32
      %p36 = pneg %p30
      %p37 = scmp.eq.s32.totalorder %s21, 1
      %p38 = por %p36, %p37
      %p39 = scmp.ne.s32.totalorder %s31, %s34
      %p40 = scmp.eq.s32.totalorder %s21, 0
      %p41 = por %p39, %p40
      %p42 = scmp.ne.s32.totalorder %s31, %s34
      %p43 = scmp.eq.s32.totalorder %s26, 1
      %p44 = por %p42, %p43
      %p45 = scmp.ne.s32.totalorder %s34, %s35
      %p46 = scmp.eq.s32.totalorder %s26, 0
      %p47 = por %p45, %p46
      %p48 = scmp.ne.s32.totalorder %s34, %s35
      %p49 = scmp.eq.s32.totalorder %s27, 1
      %p50 = por %p48, %p49
      %p52 = scmp.ne.s32.totalorder %s35, %s51
      %p53 = scmp.eq.s32.totalorder %s27, 0
      %p54 = por %p52, %p53
      %s56 = sadd.s32 %s55, 1
      %p59 = scmp.eq.s32.totalorder %s21, 1
      %p60 = scmp.ne.s32.totalorder %s55, %s57
      %p61 = scmp.eq.s32.totalorder %s21, 0
      %p62 = por %p60, %p61
      %p63 = scmp.ne.s32.totalorder %s55, %s57
      %p64 = scmp.eq.s32.totalorder %s26, 1
      %p65 = por %p63, %p64
      %p66 = scmp.ne.s32.totalorder %s57, %s58
      %p67 = scmp.eq.s32.totalorder %s26, 0
      %p68 = por %p66, %p67
      %p69 = scmp.ne.s32.totalorder %s57, %s58
      %p70 = scmp.eq.s32.totalorder %s27, 1
      %p71 = por %p69, %p70
      %p73 = scmp.ne.s32.totalorder %s58, %s72
      %p74 = scmp.eq.s32.totalorder %s27, 0
      %p75 = por %p73, %p74
      %s77 = sadd.s32 %s76, 1
      %p80 = scmp.eq.s32.totalorder %s21, 1
      %p81 = scmp.ne.s32.totalorder %s76, %s78
      %p82 = scmp.eq.s32.totalorder %s21, 0
      %p83 = por %p81, %p82
      %p84 = scmp.ne.s32.totalorder %s76, %s78
      %p85 = scmp.eq.s32.totalorder %s26, 1
      %p86 = por %p84, %p85
      %p87 = scmp.ne.s32.totalorder %s78, %s79
      %p88 = scmp.eq.s32.totalorder %s26, 0
      %p89 = por %p87, %p88
      %p90 = scmp.ne.s32.totalorder %s78, %s79
      %p91 = scmp.eq.s32.totalorder %s27, 1
      %p92 = por %p90, %p91
      %p94 = scmp.ne.s32.totalorder %s79, %s93
      %p95 = scmp.eq.s32.totalorder %s27, 0
      %p96 = por %p94, %p95
      %s98 = sadd.s32 %s97, 1
      %p101 = scmp.eq.s32.totalorder %s21, 1
      %p102 = scmp.ne.s32.totalorder %s97, %s99
      %p103 = scmp.eq.s32.totalorder %s21, 0
      %p104 = por %p102, %p103
      %p105 = scmp.ne.s32.totalorder %s97, %s99
      %p106 = scmp.eq.s32.totalorder %s26, 1
      %p107 = por %p105, %p106
      %p108 = scmp.ne.s32.totalorder %s99, %s100
      %p109 = scmp.eq.s32.totalorder %s26, 0
      %p110 = por %p108, %p109
      %p111 = scmp.ne.s32.totalorder %s99, %s100
      %p112 = scmp.eq.s32.totalorder %s27, 1
      %p113 = por %p111, %p112
      %p115 = scmp.ne.s32.totalorder %s100, %s114
      %p116 = scmp.eq.s32.totalorder %s27, 0
      %p117 = por %p115, %p116
      %s119 = sadd.s32 %s118, 1
      %p122 = scmp.eq.s32.totalorder %s21, 1
      %p123 = scmp.ne.s32.totalorder %s118, %s120
      %p124 = scmp.eq.s32.totalorder %s21, 0
      %p125 = por %p123, %p124
      %p126 = scmp.ne.s32.totalorder %s118, %s120
      %p127 = scmp.eq.s32.totalorder %s26, 1
      %p128 = por %p126, %p127
      %p129 = scmp.ne.s32.totalorder %s120, %s121
      %p130 = scmp.eq.s32.totalorder %s26, 0
      %p131 = por %p129, %p130
      %p132 = scmp.ne.s32.totalorder %s120, %s121
      %p133 = scmp.eq.s32.totalorder %s27, 1
      %p134 = por %p132, %p133
      %p136 = scmp.ne.s32.totalorder %s121, %s135
      %p137 = scmp.eq.s32.totalorder %s27, 0
      %p138 = por %p136, %p137
      %s140 = sadd.s32 %s139, 1
      %p143 = scmp.eq.s32.totalorder %s21, 1
      %p144 = scmp.ne.s32.totalorder %s139, %s141
      %p145 = scmp.eq.s32.totalorder %s21, 0
      %p146 = por %p144, %p145
      %p147 = scmp.ne.s32.totalorder %s139, %s141
      %p148 = scmp.eq.s32.totalorder %s26, 1
      %p149 = por %p147, %p148
      %p150 = scmp.ne.s32.totalorder %s141, %s142
      %p151 = scmp.eq.s32.totalorder %s26, 0
      %p152 = por %p150, %p151
      %p153 = scmp.ne.s32.totalorder %s141, %s142
      %p154 = scmp.eq.s32.totalorder %s27, 1
      %p155 = por %p153, %p154
      %p157 = scmp.ne.s32.totalorder %s142, %s156
      %p158 = scmp.eq.s32.totalorder %s27, 0
      %p159 = por %p157, %p158
      %s161 = sadd.s32 %s160, 1
      %p164 = scmp.eq.s32.totalorder %s21, 1
      %p165 = scmp.ne.s32.totalorder %s160, %s162
      %p166 = scmp.eq.s32.totalorder %s21, 0
      %p167 = por %p165, %p166
      %p168 = scmp.ne.s32.totalorder %s160, %s162
      %p169 = scmp.eq.s32.totalorder %s26, 1
      %p170 = por %p168, %p169
      %p171 = scmp.ne.s32.totalorder %s162, %s163
      %p172 = scmp.eq.s32.totalorder %s26, 0
      %p173 = por %p171, %p172
      %p174 = scmp.ne.s32.totalorder %s162, %s163
      %p175 = scmp.eq.s32.totalorder %s27, 1
      %p176 = por %p174, %p175
      %p178 = scmp.ne.s32.totalorder %s163, %s177
      %p179 = scmp.eq.s32.totalorder %s27, 0
      %p180 = por %p178, %p179
      %s182 = sadd.s32 %s181, 1
      %p185 = scmp.eq.s32.totalorder %s21, 1
      %p186 = scmp.ne.s32.totalorder %s181, %s183
      %p187 = scmp.eq.s32.totalorder %s21, 0
      %p188 = por %p186, %p187
      %p189 = scmp.ne.s32.totalorder %s181, %s183
      %p190 = scmp.eq.s32.totalorder %s26, 1
      %p191 = por %p189, %p190
      %p192 = scmp.ne.s32.totalorder %s183, %s184
      %p193 = scmp.eq.s32.totalorder %s26, 0
      %p194 = por %p192, %p193
      %p195 = scmp.ne.s32.totalorder %s183, %s184
      %p196 = scmp.eq.s32.totalorder %s27, 1
      %p197 = por %p195, %p196
      %p199 = scmp.ne.s32.totalorder %s184, %s198
      %p200 = scmp.eq.s32.totalorder %s27, 0
      %p201 = por %p199, %p200
      %s203 = sadd.s32 %s202, 1
      %p206 = scmp.eq.s32.totalorder %s21, 1
      %p207 = scmp.ne.s32.totalorder %s202, %s204
      %p208 = scmp.eq.s32.totalorder %s21, 0
      %p209 = por %p207, %p208
      %p210 = scmp.ne.s32.totalorder %s202, %s204
      %p211 = scmp.eq.s32.totalorder %s26, 1
      %p212 = por %p210, %p211
      %p213 = scmp.ne.s32.totalorder %s204, %s205
      %p214 = scmp.eq.s32.totalorder %s26, 0
      %p215 = por %p213, %p214
      %p216 = scmp.ne.s32.totalorder %s204, %s205
      %p217 = scmp.eq.s32.totalorder %s27, 1
      %p218 = por %p216, %p217
      %p220 = scmp.ne.s32.totalorder %s205, %s219
      %p221 = scmp.eq.s32.totalorder %s27, 0
      %p222 = por %p220, %p221
      %s224 = sadd.s32 %s223, 1
      %p227 = scmp.eq.s32.totalorder %s21, 1
      %p228 = scmp.ne.s32.totalorder %s223, %s225
      %p229 = scmp.eq.s32.totalorder %s21, 0
      %p230 = por %p228, %p229
      %p231 = scmp.ne.s32.totalorder %s223, %s225
      %p232 = scmp.eq.s32.totalorder %s26, 1
      %p233 = por %p231, %p232
      %p234 = scmp.ne.s32.totalorder %s225, %s226
      %p235 = scmp.eq.s32.totalorder %s26, 0
      %p236 = por %p234, %p235
      %p237 = scmp.ne.s32.totalorder %s225, %s226
      %p238 = scmp.eq.s32.totalorder %s27, 1
      %p239 = por %p237, %p238
      %p241 = scmp.ne.s32.totalorder %s226, %s240
      %p242 = scmp.eq.s32.totalorder %s27, 0
      %p243 = por %p241, %p242
      %s245 = sadd.s32 %s244, 1
      %p248 = scmp.eq.s32.totalorder %s21, 1
      %p249 = scmp.ne.s32.totalorder %s244, %s246
      %p250 = scmp.eq.s32.totalorder %s21, 0
      %p251 = por %p249, %p250
      %p252 = scmp.ne.s32.totalorder %s244, %s246
      %p253 = scmp.eq.s32.totalorder %s26, 1
      %p254 = por %p252, %p253
      %p255 = scmp.ne.s32.totalorder %s246, %s247
      %p256 = scmp.eq.s32.totalorder %s26, 0
      %p257 = por %p255, %p256
      %p258 = scmp.ne.s32.totalorder %s246, %s247
      %p259 = scmp.eq.s32.totalorder %s27, 1
      %p260 = por %p258, %p259
      %p262 = scmp.ne.s32.totalorder %s247, %s261
      %p263 = scmp.eq.s32.totalorder %s27, 0
      %p264 = por %p262, %p263
      %s266 = sadd.s32 %s265, 1
      %p269 = scmp.eq.s32.totalorder %s21, 1
      %p270 = scmp.ne.s32.totalorder %s265, %s267
      %p271 = scmp.eq.s32.totalorder %s21, 0
      %p272 = por %p270, %p271
      %p273 = scmp.ne.s32.totalorder %s265, %s267
      %p274 = scmp.eq.s32.totalorder %s26, 1
      %p275 = por %p273, %p274
      %p276 = scmp.ne.s32.totalorder %s267, %s268
      %p277 = scmp.eq.s32.totalorder %s26, 0
      %p278 = por %p276, %p277
      %p279 = scmp.ne.s32.totalorder %s267, %s268
      %p280 = scmp.eq.s32.totalorder %s27, 1
      %p281 = por %p279, %p280
      %p283 = scmp.ne.s32.totalorder %s268, %s282
      %p284 = scmp.eq.s32.totalorder %s27, 0
      %p285 = por %p283, %p284
      %s286 = ssub.s32 %s21, %s28
      %p287 = scmp.eq.s32.totalorder %s286, 0
      %s289 = sadd.s32 %s288, 1
      %s290 = scalar_select %p287, %s288, %s289
      %p293 = pneg %p287
      %p294 = scmp.eq.s32.totalorder %s21, 1
      %p295 = por %p293, %p294
      %p296 = scmp.ne.s32.totalorder %s288, %s291
      %p297 = scmp.eq.s32.totalorder %s21, 0
      %p298 = por %p296, %p297
      %p299 = scmp.ne.s32.totalorder %s288, %s291
      %p300 = scmp.eq.s32.totalorder %s26, 1
      %p301 = por %p299, %p300
      %p302 = scmp.ne.s32.totalorder %s291, %s292
      %p303 = scmp.eq.s32.totalorder %s26, 0
      %p304 = por %p302, %p303
      %p305 = scmp.ne.s32.totalorder %s291, %s292
      %p306 = scmp.eq.s32.totalorder %s27, 1
      %p307 = por %p305, %p306
      %p309 = scmp.ne.s32.totalorder %s292, %s308
      %p310 = scmp.eq.s32.totalorder %s27, 0
      %p311 = por %p309, %p310
      %p312 = scmp.le.s32.totalorder 1, %s21
      %p313 = scmp.lt.s32.totalorder %s21, 3
      %p314 = pnand %p312, %p313
      %p315 = pneg %p314
      // Predicated region
      $region9: #{tpu_custom_call.1} parent=5 // pred_check
        _
      $region10: #{tpu_custom_call.1} parent=5 // pred_check_branch
        %317 = sbr.rel (%p314) target = $region12
      $region11: #{tpu_custom_call.1} parent=5 // pred_region
        %s318 = ssub.s32 %s21, 1
        // Predicated region
        $region13: #{tpu_custom_call.1} parent=11 // pred_check
          %p319 = pneg %p68
        $region14: #{tpu_custom_call.1} parent=11 // pred_check_branch
          %321 = sbr.rel (%p319) target = $region16
        $region15: #{tpu_custom_call.1} parent=11 // pred_region
          _
        $region16: #{tpu_custom_call.1} parent=11 // pred_fallthru
          _
        // Predicated region
        $region17: #{tpu_custom_call.1} parent=11 // pred_check
          %p322 = pneg %p89
        $region18: #{tpu_custom_call.1} parent=11 // pred_check_branch
          %324 = sbr.rel (%p322) target = $region20
        $region19: #{tpu_custom_call.1} parent=11 // pred_region
          _
        $region20: #{tpu_custom_call.1} parent=11 // pred_fallthru
          _
        // Predicated region
        $region21: #{tpu_custom_call.1} parent=11 // pred_check
          %p325 = pneg %p110
        $region22: #{tpu_custom_call.1} parent=11 // pred_check_branch
          %327 = sbr.rel (%p325) target = $region24
        $region23: #{tpu_custom_call.1} parent=11 // pred_region
          _
        $region24: #{tpu_custom_call.1} parent=11 // pred_fallthru
          _
        // Predicated region
        $region25: #{tpu_custom_call.1} parent=11 // pred_check
          %p328 = pneg %p131
        $region26: #{tpu_custom_call.1} parent=11 // pred_check_branch
          %330 = sbr.rel (%p328) target = $region28
        $region27: #{tpu_custom_call.1} parent=11 // pred_region
          _
        $region28: #{tpu_custom_call.1} parent=11 // pred_fallthru
          _
        // Predicated region
        $region29: #{tpu_custom_call.1} parent=11 // pred_check
          %p331 = pneg %p152
        $region30: #{tpu_custom_call.1} parent=11 // pred_check_branch
          %333 = sbr.rel (%p331) target = $region32
        $region31: #{tpu_custom_call.1} parent=11 // pred_region
          _
        $region32: #{tpu_custom_call.1} parent=11 // pred_fallthru
          _
        // Predicated region
        $region33: #{tpu_custom_call.1} parent=11 // pred_check
          %p334 = pneg %p173
        $region34: #{tpu_custom_call.1} parent=11 // pred_check_branch
          %336 = sbr.rel (%p334) target = $region36
        $region35: #{tpu_custom_call.1} parent=11 // pred_region
          _
        $region36: #{tpu_custom_call.1} parent=11 // pred_fallthru
          _
        // Predicated region
        $region37: #{tpu_custom_call.1} parent=11 // pred_check
          %p337 = pneg %p194
        $region38: #{tpu_custom_call.1} parent=11 // pred_check_branch
          %339 = sbr.rel (%p337) target = $region40
        $region39: #{tpu_custom_call.1} parent=11 // pred_region
          _
        $region40: #{tpu_custom_call.1} parent=11 // pred_fallthru
          _
        // Predicated region
        $region41: #{tpu_custom_call.1} parent=11 // pred_check
          %p340 = pneg %p215
        $region42: #{tpu_custom_call.1} parent=11 // pred_check_branch
          %342 = sbr.rel (%p340) target = $region44
        $region43: #{tpu_custom_call.1} parent=11 // pred_region
          _
        $region44: #{tpu_custom_call.1} parent=11 // pred_fallthru
          _
        // Predicated region
        $region45: #{tpu_custom_call.1} parent=11 // pred_check
          %p343 = pneg %p236
        $region46: #{tpu_custom_call.1} parent=11 // pred_check_branch
          %345 = sbr.rel (%p343) target = $region48
        $region47: #{tpu_custom_call.1} parent=11 // pred_region
          _
        $region48: #{tpu_custom_call.1} parent=11 // pred_fallthru
          _
        // Predicated region
        $region49: #{tpu_custom_call.1} parent=11 // pred_check
          %p346 = pneg %p257
        $region50: #{tpu_custom_call.1} parent=11 // pred_check_branch
          %348 = sbr.rel (%p346) target = $region52
        $region51: #{tpu_custom_call.1} parent=11 // pred_region
          _
        $region52: #{tpu_custom_call.1} parent=11 // pred_fallthru
          _
        // Predicated region
        $region53: #{tpu_custom_call.1} parent=11 // pred_check
          %p349 = pneg %p278
        $region54: #{tpu_custom_call.1} parent=11 // pred_check_branch
          %351 = sbr.rel (%p349) target = $region56
        $region55: #{tpu_custom_call.1} parent=11 // pred_region
          _
        $region56: #{tpu_custom_call.1} parent=11 // pred_fallthru
          _
      $region12: #{tpu_custom_call.1} parent=5 // pred_fallthru
        _
      %p352 = scmp.lt.s32.totalorder %s21, 2
      // Predicated region
      $region57: #{tpu_custom_call.1} parent=5 // pred_check
        %p353 = pneg %p352
      $region58: #{tpu_custom_call.1} parent=5 // pred_check_branch
        %355 = sbr.rel (%p353) target = $region60
      $region59: #{tpu_custom_call.1} parent=5 // pred_region
        // Predicated region
        $region61: #{tpu_custom_call.1} parent=59 // pred_check
          %p356 = pneg %p41
        $region62: #{tpu_custom_call.1} parent=59 // pred_check_branch
          %358 = sbr.rel (%p356) target = $region64
        $region63: #{tpu_custom_call.1} parent=59 // pred_region
          %s359 = smul.u32 2, %s21
          %p360 = scmp.lt.s32.totalorder %s359, 3
          %s361 = scalar_select %p360, %s359, 3
          %s362 = smul.addr %s361, 8
          %s363 = scalar_lea.vmem %s0, %s362
          %s364 = smul.u32 2, %s21
        $region64: #{tpu_custom_call.1} parent=59 // pred_fallthru
          _
      $region60: #{tpu_custom_call.1} parent=5 // pred_fallthru
        _
      %p365 = scmp.le.s32.totalorder 1, %s21
      %p366 = scmp.lt.s32.totalorder %s21, 3
      %p367 = pnand %p365, %p366
      %p368 = pneg %p367
      // Predicated region
      $region65: #{tpu_custom_call.1} parent=5 // pred_check
        _
      $region66: #{tpu_custom_call.1} parent=5 // pred_check_branch
        %370 = sbr.rel (%p367) target = $region68
      $region67: #{tpu_custom_call.1} parent=5 // pred_region
        %s371 = ssub.s32 %s21, 1
        %s372 = smul.u32 2, %s26
        %p373 = scmp.lt.s32.totalorder %s372, 3
        %s374 = scalar_select %p373, %s372, 3
        %s375 = smul.addr %s374, 8
        %s376 = scalar_lea.vmem %s0, %s375
        %p377 = pneg %p47
        %p378 = pneg %p44
        %p379 = pneg %p68
        %p380 = pneg %p65
        %p381 = pneg %p89
        %p382 = pneg %p86
        %p383 = pneg %p110
        %p384 = pneg %p107
        %p385 = pneg %p131
        %p386 = pneg %p128
        %p387 = pneg %p152
        %p388 = pneg %p149
        %p389 = pneg %p173
        %p390 = pneg %p170
        %p391 = pneg %p194
        %p392 = pneg %p191
        %p393 = pneg %p215
        %p394 = pneg %p212
        %p395 = pneg %p236
        %p396 = pneg %p233
        %p397 = pneg %p257
        %p398 = pneg %p254
        %p399 = pneg %p278
        %p400 = pneg %p275
        %p401 = pneg %p304
        %p402 = pneg %p301
        %s403 = sand.u32 %s291, 1
        %s404 = scalar_lea.sflag [#allocation3], %s403
        %s405 = sand.u32 %s291, 1
        %s406 = smul.addr %s405, 16
        %s407 = scalar_lea.vmem [#allocation2], %s406
        %s408 = smul.u32 2, %s26
        %p409 = scmp.lt.s32.totalorder %s408, 3
        %s410 = scalar_select %p409, %s408, 3
        %s411 = smul.addr %s410, 8
        %s412 = scalar_lea.vmem %s0, %s411
        %s413 = smul.u32 2, %s26
        %s414 = smul.u32 2, %s26
        %v416 = vld [vmem:[%s412] sm:$0xff]
        %v417 = vld [vmem:[%s412 + $0x8] sm:$0xff]
        %v418 = vld [vmem:[%s1] sm:$0x1]
        %v419 = vld [vmem:[%s2] sm:$0x1]
        %vm420 = vcmask 261120
        %v421 = vsel %vm420, %v416, 0.0
        %422 = vadd.xlane.f32.xlu0 %v421
        %v423 = vpop.xlane.xlu0 %422
        %v424 = vsel %vm420, %v417, 0.0
        %425 = vadd.xlane.f32.xlu0 %v424
        %v426 = vpop.xlane.xlu0 %425
        %v427 = vrcp.pop 32.0
        %v428 = vmul.f32 %v423, %v427
        %v429 = vmul.f32 %v426, %v427
        %v430 = vsub.f32 %v416, %v428
        %v431 = vsub.f32 %v417, %v429
        %v432 = vmul.f32 %v430, %v430
        %v433 = vmul.f32 %v431, %v431
        %v434 = vsel %vm420, %v432, 0.0
        %435 = vadd.xlane.f32.xlu0 %v434
        %v436 = vpop.xlane.xlu0 %435
        %v437 = vsel %vm420, %v433, 0.0
        %438 = vadd.xlane.f32.xlu0 %v437
        %v439 = vpop.xlane.xlu0 %438
        %v440 = vmul.f32 %v436, %v427
        %v441 = vmul.f32 %v439, %v427
        %v442 = vadd.f32 %v440, 1e-05
        %v443 = vadd.f32 %v441, 1e-05
        %v444 = vrsqrt.pop %v442
        %v445 = vrsqrt.pop %v443
        %v446 = vmul.f32 %v430, %v444
        %v447 = vmul.f32 %v431, %v445
        %v449 = vlaneseq
        %v450 = vshrl.u32 %v449, 7
        %v451 = vsub.s32 0, %v450
        %v452 = vrot.slane %v418, %v451
        %v454 = vmul.f32 %v446, %v452
        %v455 = vmul.f32 %v447, %v452
        %v457 = vlaneseq
        %v458 = vshrl.u32 %v457, 7
        %v459 = vsub.s32 0, %v458
        %v460 = vrot.slane %v419, %v459
        %v462 = vadd.f32 %v454, %v460
        %v463 = vadd.f32 %v455, %v460
        %v464 = vpack.c.bf16 %v463, %v462
        %v465 = vld [vmem:[%s3] sm:$0xf]
        %v466 = vld [vmem:[%s3 + $0x4] sm:$0xf]
        %v467 = vld [vmem:[%s3 + $0x8] sm:$0xf]
        %v468 = vld [vmem:[%s3 + $0xc] sm:$0xf]
        %v473 = vunpack.c.l.b16 %v465
        %v474 = vunpack.c.l.b16 %v466
        %v475 = vunpack.c.l.b16 %v467
        %v476 = vunpack.c.l.b16 %v468
        %v477 = vpack.c.b16 %v474, %v473
        %v478 = vpack.c.b16 %v476, %v475
        %v482 = vsel %vm420, %v464, 0
        %484 = vmatprep.subr.bf16.mxu0 0
        %485 = vmatpush1.bf16.msra.mxu0 %v477
        %486 = vmatprep.subr.bf16.mxu0 0
        %487 = vmatpush1.bf16.msra.mxu0 %v478
        %488 = vmatprep.subr.bf16.mxu0 0
        %489 = vmatpush1.bf16.msra.mxu0 0
        %490 = vmatprep.subr.bf16.mxu0 0
        %491 = vmatpush1.bf16.msra.mxu0 0
        %492 = vmatprep.subr.bf16.mxu0 0
        %493 = vmatpush1.bf16.msra.mxu0 0
        %494 = vmatprep.subr.bf16.mxu0 0
        %495 = vmatpush1.bf16.msra.mxu0 0
        %496 = vmatprep.subr.bf16.mxu0 0
        %497 = vmatpush1.bf16.msra.mxu0 0
        %498 = vmatprep.subr.bf16.mxu0 0
        %499 = vmatpush1.bf16.msra.mxu0 0
        %500 = vmatprep.subr.bf16.mxu0 0
        %501 = vmatpush1.bf16.msra.mxu0 0
        %502 = vmatprep.subr.bf16.mxu0 0
        %503 = vmatpush1.bf16.msra.mxu0 0
        %504 = vmatprep.subr.bf16.mxu0 0
        %505 = vmatpush1.bf16.msra.mxu0 0
        %506 = vmatprep.subr.bf16.mxu0 0
        %507 = vmatpush1.bf16.msra.mxu0 0
        %508 = vmatprep.subr.bf16.mxu0 0
        %509 = vmatpush1.bf16.msra.mxu0 0
        %510 = vmatprep.subr.bf16.mxu0 0
        %511 = vmatpush1.bf16.msra.mxu0 0
        %512 = vmatprep.subr.bf16.mxu0 0
        %513 = vmatpush1.bf16.msra.mxu0 0
        %514 = vmatprep.subr.bf16.mxu0 0
        %515 = vmatpush1.bf16.msra.mxu0 0
        %516 = vmatprep.mubr.bf16.mxu0 0
        %517 = vmatmul.mubr.bf16.gmra.mrb[0].mxu0 %v482
        %v518 = vpop.f32.mrb[0].mxu0
        %v519 = vadd.f32 0.0, %v518
        %v520 = vpop.f32.mrb[0].mxu0
        %v521 = vpop.f32.mrb[0].mxu0
        %v522 = vadd.f32 0.0, %v521
        %v523 = vpop.f32.mrb[0].mxu0
        %524 = vdwg.mxu0
        %527 = vrot.lane.b32.xlu0 %v519, 120
        %v528 = vpop.permute.xlu0 %527
        %529 = vrot.lane.b32.xlu0 %v522, 120
        %v530 = vpop.permute.xlu0 %529
        %533 = vrot.lane.b32.xlu0 %v519, 112
        %v534 = vpop.permute.xlu0 %533
        %535 = vrot.lane.b32.xlu0 %v522, 112
        %v536 = vpop.permute.xlu0 %535
        %539 = vrot.lane.b32.xlu0 %v519, 104
        %v540 = vpop.permute.xlu0 %539
        %541 = vrot.lane.b32.xlu0 %v522, 104
        %v542 = vpop.permute.xlu0 %541
        %v545 = vpack.c.bf16 %v519, %v519
        %v546 = vpack.c.bf16 %v522, %v522
        %v547 = vpack.c.bf16 %v528, %v528
        %v548 = vpack.c.bf16 %v530, %v530
        %v549 = vpack.c.bf16 %v534, %v534
        %v550 = vpack.c.bf16 %v536, %v536
        %v551 = vpack.c.bf16 %v540, %v540
        %v552 = vpack.c.bf16 %v542, %v542
        %v553 = vlaneseq
        %v554 = vshrl.u32 %v553, 7
        %v555 = vlaneseq
        %v556 = vand.u32 %v555, 127
        %vm557 = vcmp.ge.s32.totalorder %v554, %v556
        %v558 = vsel %vm557, 0.0, -1e+30
        %560 = vrot.lane.b32.xlu0 %v545, 96
        %v561 = vpop.permute.xlu0 %560
        %vm562 = vcmask 64512
        %v564 = vsel %vm562, %v545, 0
        %v567 = vsel %vm562, %v561, 0
        %569 = vmatprep.subr.bf16.mxu0 0
        %570 = vmatpush1.bf16.xpose.msra.mxu0 %v567
        %571 = vmatprep.subr.bf16.mxu0 0
        %572 = vmatpush1.bf16.xpose.msra.mxu0 0
        %573 = vmatprep.subr.bf16.mxu0 0
        %574 = vmatpush1.bf16.xpose.msra.mxu0 0
        %575 = vmatprep.subr.bf16.mxu0 0
        %576 = vmatpush1.bf16.xpose.msra.mxu0 0
        %577 = vmatprep.subr.bf16.mxu0 0
        %578 = vmatpush1.bf16.xpose.msra.mxu0 0
        %579 = vmatprep.subr.bf16.mxu0 0
        %580 = vmatpush1.bf16.xpose.msra.mxu0 0
        %581 = vmatprep.subr.bf16.mxu0 0
        %582 = vmatpush1.bf16.xpose.msra.mxu0 0
        %583 = vmatprep.subr.bf16.mxu0 0
        %584 = vmatpush1.bf16.xpose.msra.mxu0 0
        %585 = vmatprep.subr.bf16.mxu0 0
        %586 = vmatpush1.bf16.xpose.msra.mxu0 0
        %587 = vmatprep.subr.bf16.mxu0 0
        %588 = vmatpush1.bf16.xpose.msra.mxu0 0
        %589 = vmatprep.subr.bf16.mxu0 0
        %590 = vmatpush1.bf16.xpose.msra.mxu0 0
        %591 = vmatprep.subr.bf16.mxu0 0
        %592 = vmatpush1.bf16.xpose.msra.mxu0 0
        %593 = vmatprep.subr.bf16.mxu0 0
        %594 = vmatpush1.bf16.xpose.msra.mxu0 0
        %595 = vmatprep.subr.bf16.mxu0 0
        %596 = vmatpush1.bf16.xpose.msra.mxu0 0
        %597 = vmatprep.subr.bf16.mxu0 0
        %598 = vmatpush1.bf16.xpose.msra.mxu0 0
        %599 = vmatprep.subr.bf16.mxu0 0
        %600 = vmatpush1.bf16.xpose.msra.mxu0 0
        %601 = vmatprep.mubr.bf16.mxu0 0
        %602 = vmatmul.mubr.bf16.gmra.mrb[0].mxu0 %v564
        %v603 = vpop.f32.mrb[0].mxu0
        %v604 = vadd.f32 %v558, %v603
        %v605 = vpop.f32.mrb[0].mxu0
        %v606 = vpop.f32.mrb[0].mxu0
        %v607 = vpop.f32.mrb[0].mxu0
        %608 = vdwg.mxu0
        %610 = vrot.lane.b32.xlu0 %v546, 96
        %v611 = vpop.permute.xlu0 %610
        %v613 = vsel %vm562, %v546, 0
        %v616 = vsel %vm562, %v611, 0
        %618 = vmatprep.subr.bf16.mxu0 0
        %619 = vmatpush1.bf16.xpose.msra.mxu0 %v616
        %620 = vmatprep.subr.bf16.mxu0 0
        %621 = vmatpush1.bf16.xpose.msra.mxu0 0
        %622 = vmatprep.subr.bf16.mxu0 0
        %623 = vmatpush1.bf16.xpose.msra.mxu0 0
        %624 = vmatprep.subr.bf16.mxu0 0
        %625 = vmatpush1.bf16.xpose.msra.mxu0 0
        %626 = vmatprep.subr.bf16.mxu0 0
        %627 = vmatpush1.bf16.xpose.msra.mxu0 0
        %628 = vmatprep.subr.bf16.mxu0 0
        %629 = vmatpush1.bf16.xpose.msra.mxu0 0
        %630 = vmatprep.subr.bf16.mxu0 0
        %631 = vmatpush1.bf16.xpose.msra.mxu0 0
        %632 = vmatprep.subr.bf16.mxu0 0
        %633 = vmatpush1.bf16.xpose.msra.mxu0 0
        %634 = vmatprep.subr.bf16.mxu0 0
        %635 = vmatpush1.bf16.xpose.msra.mxu0 0
        %636 = vmatprep.subr.bf16.mxu0 0
        %637 = vmatpush1.bf16.xpose.msra.mxu0 0
        %638 = vmatprep.subr.bf16.mxu0 0
        %639 = vmatpush1.bf16.xpose.msra.mxu0 0
        %640 = vmatprep.subr.bf16.mxu0 0
        %641 = vmatpush1.bf16.xpose.msra.mxu0 0
        %642 = vmatprep.subr.bf16.mxu0 0
        %643 = vmatpush1.bf16.xpose.msra.mxu0 0
        %644 = vmatprep.subr.bf16.mxu0 0
        %645 = vmatpush1.bf16.xpose.msra.mxu0 0
        %646 = vmatprep.subr.bf16.mxu0 0
        %647 = vmatpush1.bf16.xpose.msra.mxu0 0
        %648 = vmatprep.subr.bf16.mxu0 0
        %649 = vmatpush1.bf16.xpose.msra.mxu0 0
        %650 = vmatprep.mubr.bf16.mxu0 0
        %651 = vmatmul.mubr.bf16.gmra.mrb[0].mxu0 %v613
        %v652 = vpop.f32.mrb[0].mxu0
        %v653 = vadd.f32 %v558, %v652
        %v654 = vpop.f32.mrb[0].mxu0
        %v655 = vpop.f32.mrb[0].mxu0
        %v656 = vpop.f32.mrb[0].mxu0
        %657 = vdwg.mxu0
        %659 = vrot.lane.b32.xlu0 %v547, 96
        %v660 = vpop.permute.xlu0 %659
        %v662 = vsel %vm562, %v547, 0
        %v665 = vsel %vm562, %v660, 0
        %667 = vmatprep.subr.bf16.mxu0 0
        %668 = vmatpush1.bf16.xpose.msra.mxu0 %v665
        %669 = vmatprep.subr.bf16.mxu0 0
        %670 = vmatpush1.bf16.xpose.msra.mxu0 0
        %671 = vmatprep.subr.bf16.mxu0 0
        %672 = vmatpush1.bf16.xpose.msra.mxu0 0
        %673 = vmatprep.subr.bf16.mxu0 0
        %674 = vmatpush1.bf16.xpose.msra.mxu0 0
        %675 = vmatprep.subr.bf16.mxu0 0
        %676 = vmatpush1.bf16.xpose.msra.mxu0 0
        %677 = vmatprep.subr.bf16.mxu0 0
        %678 = vmatpush1.bf16.xpose.msra.mxu0 0
        %679 = vmatprep.subr.bf16.mxu0 0
        %680 = vmatpush1.bf16.xpose.msra.mxu0 0
        %681 = vmatprep.subr.bf16.mxu0 0
        %682 = vmatpush1.bf16.xpose.msra.mxu0 0
        %683 = vmatprep.subr.bf16.mxu0 0
        %684 = vmatpush1.bf16.xpose.msra.mxu0 0
        %685 = vmatprep.subr.bf16.mxu0 0
        %686 = vmatpush1.bf16.xpose.msra.mxu0 0
        %687 = vmatprep.subr.bf16.mxu0 0
        %688 = vmatpush1.bf16.xpose.msra.mxu0 0
        %689 = vmatprep.subr.bf16.mxu0 0
        %690 = vmatpush1.bf16.xpose.msra.mxu0 0
        %691 = vmatprep.subr.bf16.mxu0 0
        %692 = vmatpush1.bf16.xpose.msra.mxu0 0
        %693 = vmatprep.subr.bf16.mxu0 0
        %694 = vmatpush1.bf16.xpose.msra.mxu0 0
        %695 = vmatprep.subr.bf16.mxu0 0
        %696 = vmatpush1.bf16.xpose.msra.mxu0 0
        %697 = vmatprep.subr.bf16.mxu0 0
        %698 = vmatpush1.bf16.xpose.msra.mxu0 0
        %699 = vmatprep.mubr.bf16.mxu0 0
        %700 = vmatmul.mubr.bf16.gmra.mrb[0].mxu0 %v662
        %v701 = vpop.f32.mrb[0].mxu0
        %v702 = vadd.f32 %v558, %v701
        %v703 = vpop.f32.mrb[0].mxu0
        %v704 = vpop.f32.mrb[0].mxu0
        %v705 = vpop.f32.mrb[0].mxu0
        %706 = vdwg.mxu0
        %708 = vrot.lane.b32.xlu0 %v548, 96
        %v709 = vpop.permute.xlu0 %708
        %v711 = vsel %vm562, %v548, 0
        %v714 = vsel %vm562, %v709, 0
        %716 = vmatprep.subr.bf16.mxu0 0
        %717 = vmatpush1.bf16.xpose.msra.mxu0 %v714
        %718 = vmatprep.subr.bf16.mxu0 0
        %719 = vmatpush1.bf16.xpose.msra.mxu0 0
        %720 = vmatprep.subr.bf16.mxu0 0
        %721 = vmatpush1.bf16.xpose.msra.mxu0 0
        %722 = vmatprep.subr.bf16.mxu0 0
        %723 = vmatpush1.bf16.xpose.msra.mxu0 0
        %724 = vmatprep.subr.bf16.mxu0 0
        %725 = vmatpush1.bf16.xpose.msra.mxu0 0
        %726 = vmatprep.subr.bf16.mxu0 0
        %727 = vmatpush1.bf16.xpose.msra.mxu0 0
        %728 = vmatprep.subr.bf16.mxu0 0
        %729 = vmatpush1.bf16.xpose.msra.mxu0 0
        %730 = vmatprep.subr.bf16.mxu0 0
        %731 = vmatpush1.bf16.xpose.msra.mxu0 0
        %732 = vmatprep.subr.bf16.mxu0 0
        %733 = vmatpush1.bf16.xpose.msra.mxu0 0
        %734 = vmatprep.subr.bf16.mxu0 0
        %735 = vmatpush1.bf16.xpose.msra.mxu0 0
        %736 = vmatprep.subr.bf16.mxu0 0
        %737 = vmatpush1.bf16.xpose.msra.mxu0 0
        %738 = vmatprep.subr.bf16.mxu0 0
        %739 = vmatpush1.bf16.xpose.msra.mxu0 0
        %740 = vmatprep.subr.bf16.mxu0 0
        %741 = vmatpush1.bf16.xpose.msra.mxu0 0
        %742 = vmatprep.subr.bf16.mxu0 0
        %743 = vmatpush1.bf16.xpose.msra.mxu0 0
        %744 = vmatprep.subr.bf16.mxu0 0
        %745 = vmatpush1.bf16.xpose.msra.mxu0 0
        %746 = vmatprep.subr.bf16.mxu0 0
        %747 = vmatpush1.bf16.xpose.msra.mxu0 0
        %748 = vmatprep.mubr.bf16.mxu0 0
        %749 = vmatmul.mubr.bf16.gmra.mrb[0].mxu0 %v711
        %v750 = vpop.f32.mrb[0].mxu0
        %v751 = vadd.f32 %v558, %v750
        %v752 = vpop.f32.mrb[0].mxu0
        %v753 = vpop.f32.mrb[0].mxu0
        %v754 = vpop.f32.mrb[0].mxu0
        %755 = vdwg.mxu0
        %757 = vrot.lane.b32.xlu0 %v549, 96
        %v758 = vpop.permute.xlu0 %757
        %v760 = vsel %vm562, %v549, 0
        %v763 = vsel %vm562, %v758, 0
        %765 = vmatprep.subr.bf16.mxu0 0
        %766 = vmatpush1.bf16.xpose.msra.mxu0 %v763
        %767 = vmatprep.subr.bf16.mxu0 0
        %768 = vmatpush1.bf16.xpose.msra.mxu0 0
        %769 = vmatprep.subr.bf16.mxu0 0
        %770 = vmatpush1.bf16.xpose.msra.mxu0 0
        %771 = vmatprep.subr.bf16.mxu0 0
        %772 = vmatpush1.bf16.xpose.msra.mxu0 0
        %773 = vmatprep.subr.bf16.mxu0 0
        %774 = vmatpush1.bf16.xpose.msra.mxu0 0
        %775 = vmatprep.subr.bf16.mxu0 0
        %776 = vmatpush1.bf16.xpose.msra.mxu0 0
        %777 = vmatprep.subr.bf16.mxu0 0
        %778 = vmatpush1.bf16.xpose.msra.mxu0 0
        %779 = vmatprep.subr.bf16.mxu0 0
        %780 = vmatpush1.bf16.xpose.msra.mxu0 0
        %781 = vmatprep.subr.bf16.mxu0 0
        %782 = vmatpush1.bf16.xpose.msra.mxu0 0
        %783 = vmatprep.subr.bf16.mxu0 0
        %784 = vmatpush1.bf16.xpose.msra.mxu0 0
        %785 = vmatprep.subr.bf16.mxu0 0
        %786 = vmatpush1.bf16.xpose.msra.mxu0 0
        %787 = vmatprep.subr.bf16.mxu0 0
        %788 = vmatpush1.bf16.xpose.msra.mxu0 0
        %789 = vmatprep.subr.bf16.mxu0 0
        %790 = vmatpush1.bf16.xpose.msra.mxu0 0
        %791 = vmatprep.subr.bf16.mxu0 0
        %792 = vmatpush1.bf16.xpose.msra.mxu0 0
        %793 = vmatprep.subr.bf16.mxu0 0
        %794 = vmatpush1.bf16.xpose.msra.mxu0 0
        %795 = vmatprep.subr.bf16.mxu0 0
        %796 = vmatpush1.bf16.xpose.msra.mxu0 0
        %797 = vmatprep.mubr.bf16.mxu0 0
        %798 = vmatmul.mubr.bf16.gmra.mrb[0].mxu0 %v760
        %v799 = vpop.f32.mrb[0].mxu0
        %v800 = vadd.f32 %v558, %v799
        %v801 = vpop.f32.mrb[0].mxu0
        %v802 = vpop.f32.mrb[0].mxu0
        %v803 = vpop.f32.mrb[0].mxu0
        %804 = vdwg.mxu0
        %806 = vrot.lane.b32.xlu0 %v550, 96
        %v807 = vpop.permute.xlu0 %806
        %v809 = vsel %vm562, %v550, 0
        %v812 = vsel %vm562, %v807, 0
        %814 = vmatprep.subr.bf16.mxu0 0
        %815 = vmatpush1.bf16.xpose.msra.mxu0 %v812
        %816 = vmatprep.subr.bf16.mxu0 0
        %817 = vmatpush1.bf16.xpose.msra.mxu0 0
        %818 = vmatprep.subr.bf16.mxu0 0
        %819 = vmatpush1.bf16.xpose.msra.mxu0 0
        %820 = vmatprep.subr.bf16.mxu0 0
        %821 = vmatpush1.bf16.xpose.msra.mxu0 0
        %822 = vmatprep.subr.bf16.mxu0 0
        %823 = vmatpush1.bf16.xpose.msra.mxu0 0
        %824 = vmatprep.subr.bf16.mxu0 0
        %825 = vmatpush1.bf16.xpose.msra.mxu0 0
        %826 = vmatprep.subr.bf16.mxu0 0
        %827 = vmatpush1.bf16.xpose.msra.mxu0 0
        %828 = vmatprep.subr.bf16.mxu0 0
        %829 = vmatpush1.bf16.xpose.msra.mxu0 0
        %830 = vmatprep.subr.bf16.mxu0 0
        %831 = vmatpush1.bf16.xpose.msra.mxu0 0
        %832 = vmatprep.subr.bf16.mxu0 0
        %833 = vmatpush1.bf16.xpose.msra.mxu0 0
        %834 = vmatprep.subr.bf16.mxu0 0
        %835 = vmatpush1.bf16.xpose.msra.mxu0 0
        %836 = vmatprep.subr.bf16.mxu0 0
        %837 = vmatpush1.bf16.xpose.msra.mxu0 0
        %838 = vmatprep.subr.bf16.mxu0 0
        %839 = vmatpush1.bf16.xpose.msra.mxu0 0
        %840 = vmatprep.subr.bf16.mxu0 0
        %841 = vmatpush1.bf16.xpose.msra.mxu0 0
        %842 = vmatprep.subr.bf16.mxu0 0
        %843 = vmatpush1.bf16.xpose.msra.mxu0 0
        %844 = vmatprep.subr.bf16.mxu0 0
        %845 = vmatpush1.bf16.xpose.msra.mxu0 0
        %846 = vmatprep.mubr.bf16.mxu0 0
        %847 = vmatmul.mubr.bf16.gmra.mrb[0].mxu0 %v809
        %v848 = vpop.f32.mrb[0].mxu0
        %v849 = vadd.f32 %v558, %v848
        %v850 = vpop.f32.mrb[0].mxu0
        %v851 = vpop.f32.mrb[0].mxu0
        %v852 = vpop.f32.mrb[0].mxu0
        %853 = vdwg.mxu0
        %855 = vrot.lane.b32.xlu0 %v551, 96
        %v856 = vpop.permute.xlu0 %855
        %v858 = vsel %vm562, %v551, 0
        %v861 = vsel %vm562, %v856, 0
        %863 = vmatprep.subr.bf16.mxu0 0
        %864 = vmatpush1.bf16.xpose.msra.mxu0 %v861
        %865 = vmatprep.subr.bf16.mxu0 0
        %866 = vmatpush1.bf16.xpose.msra.mxu0 0
        %867 = vmatprep.subr.bf16.mxu0 0
        %868 = vmatpush1.bf16.xpose.msra.mxu0 0
        %869 = vmatprep.subr.bf16.mxu0 0
        %870 = vmatpush1.bf16.xpose.msra.mxu0 0
        %871 = vmatprep.subr.bf16.mxu0 0
        %872 = vmatpush1.bf16.xpose.msra.mxu0 0
        %873 = vmatprep.subr.bf16.mxu0 0
        %874 = vmatpush1.bf16.xpose.msra.mxu0 0
        %875 = vmatprep.subr.bf16.mxu0 0
        %876 = vmatpush1.bf16.xpose.msra.mxu0 0
        %877 = vmatprep.subr.bf16.mxu0 0
        %878 = vmatpush1.bf16.xpose.msra.mxu0 0
        %879 = vmatprep.subr.bf16.mxu0 0
        %880 = vmatpush1.bf16.xpose.msra.mxu0 0
        %881 = vmatprep.subr.bf16.mxu0 0
        %882 = vmatpush1.bf16.xpose.msra.mxu0 0
        %883 = vmatprep.subr.bf16.mxu0 0
        %884 = vmatpush1.bf16.xpose.msra.mxu0 0
        %885 = vmatprep.subr.bf16.mxu0 0
        %886 = vmatpush1.bf16.xpose.msra.mxu0 0
        %887 = vmatprep.subr.bf16.mxu0 0
        %888 = vmatpush1.bf16.xpose.msra.mxu0 0
        %889 = vmatprep.subr.bf16.mxu0 0
        %890 = vmatpush1.bf16.xpose.msra.mxu0 0
        %891 = vmatprep.subr.bf16.mxu0 0
        %892 = vmatpush1.bf16.xpose.msra.mxu0 0
        %893 = vmatprep.subr.bf16.mxu0 0
        %894 = vmatpush1.bf16.xpose.msra.mxu0 0
        %895 = vmatprep.mubr.bf16.mxu0 0
        %896 = vmatmul.mubr.bf16.gmra.mrb[0].mxu0 %v858
        %v897 = vpop.f32.mrb[0].mxu0
        %v898 = vadd.f32 %v558, %v897
        %v899 = vpop.f32.mrb[0].mxu0
        %v900 = vpop.f32.mrb[0].mxu0
        %v901 = vpop.f32.mrb[0].mxu0
        %902 = vdwg.mxu0
        %904 = vrot.lane.b32.xlu0 %v552, 96
        %v905 = vpop.permute.xlu0 %904
        %v907 = vsel %vm562, %v552, 0
        %v910 = vsel %vm562, %v905, 0
        %912 = vmatprep.subr.bf16.mxu0 0
        %913 = vmatpush1.bf16.xpose.msra.mxu0 %v910
        %914 = vmatprep.subr.bf16.mxu0 0
        %915 = vmatpush1.bf16.xpose.msra.mxu0 0
        %916 = vmatprep.subr.bf16.mxu0 0
        %917 = vmatpush1.bf16.xpose.msra.mxu0 0
        %918 = vmatprep.subr.bf16.mxu0 0
        %919 = vmatpush1.bf16.xpose.msra.mxu0 0
        %920 = vmatprep.subr.bf16.mxu0 0
        %921 = vmatpush1.bf16.xpose.msra.mxu0 0
        %922 = vmatprep.subr.bf16.mxu0 0
        %923 = vmatpush1.bf16.xpose.msra.mxu0 0
        %924 = vmatprep.subr.bf16.mxu0 0
        %925 = vmatpush1.bf16.xpose.msra.mxu0 0
        %926 = vmatprep.subr.bf16.mxu0 0
        %927 = vmatpush1.bf16.xpose.msra.mxu0 0
        %928 = vmatprep.subr.bf16.mxu0 0
        %929 = vmatpush1.bf16.xpose.msra.mxu0 0
        %930 = vmatprep.subr.bf16.mxu0 0
        %931 = vmatpush1.bf16.xpose.msra.mxu0 0
        %932 = vmatprep.subr.bf16.mxu0 0
        %933 = vmatpush1.bf16.xpose.msra.mxu0 0
        %934 = vmatprep.subr.bf16.mxu0 0
        %935 = vmatpush1.bf16.xpose.msra.mxu0 0
        %936 = vmatprep.subr.bf16.mxu0 0
        %937 = vmatpush1.bf16.xpose.msra.mxu0 0
        %938 = vmatprep.subr.bf16.mxu0 0
        %939 = vmatpush1.bf16.xpose.msra.mxu0 0
        %940 = vmatprep.subr.bf16.mxu0 0
        %941 = vmatpush1.bf16.xpose.msra.mxu0 0
        %942 = vmatprep.subr.bf16.mxu0 0
        %943 = vmatpush1.bf16.xpose.msra.mxu0 0
        %944 = vmatprep.mubr.bf16.mxu0 0
        %945 = vmatmul.mubr.bf16.gmra.mrb[0].mxu0 %v907
        %v946 = vpop.f32.mrb[0].mxu0
        %v947 = vadd.f32 %v558, %v946
        %v948 = vpop.f32.mrb[0].mxu0
        %v949 = vpop.f32.mrb[0].mxu0
        %v950 = vpop.f32.mrb[0].mxu0
        %951 = vdwg.mxu0
        %v952 = vsel %vm562, %v604, -inf
        %953 = vmax.xlane.f32.xlu0 %v952
        %v954 = vpop.xlane.xlu0 %953
        %v955 = vsel %vm562, %v653, -inf
        %956 = vmax.xlane.f32.xlu0 %v955
        %v957 = vpop.xlane.xlu0 %956
        %v958 = vsel %vm562, %v702, -inf
        %959 = vmax.xlane.f32.xlu0 %v958
        %v960 = vpop.xlane.xlu0 %959
        %v961 = vsel %vm562, %v751, -inf
        %962 = vmax.xlane.f32.xlu0 %v961
        %v963 = vpop.xlane.xlu0 %962
        %v964 = vsel %vm562, %v800, -inf
        %965 = vmax.xlane.f32.xlu0 %v964
        %v966 = vpop.xlane.xlu0 %965
        %v967 = vsel %vm562, %v849, -inf
        %968 = vmax.xlane.f32.xlu0 %v967
        %v969 = vpop.xlane.xlu0 %968
        %v970 = vsel %vm562, %v898, -inf
        %971 = vmax.xlane.f32.xlu0 %v970
        %v972 = vpop.xlane.xlu0 %971
        %v973 = vsel %vm562, %v947, -inf
        %974 = vmax.xlane.f32.xlu0 %v973
        %v975 = vpop.xlane.xlu0 %974
        %v976 = vsub.f32 %v604, %v954
        %v977 = vsub.f32 %v653, %v957
        %v978 = vsub.f32 %v702, %v960
        %v979 = vsub.f32 %v751, %v963
        %v980 = vsub.f32 %v800, %v966
        %v981 = vsub.f32 %v849, %v969
        %v982 = vsub.f32 %v898, %v972
        %v983 = vsub.f32 %v947, %v975
        %v984 = vmul.f32 %v976, 1.442695
        %v985 = vpow.pop %v984
        %v986 = vmul.f32 %v977, 1.442695
        %v987 = vpow.pop %v986
        %v988 = vmul.f32 %v978, 1.442695
        %v989 = vpow.pop %v988
        %v990 = vmul.f32 %v979, 1.442695
        %v991 = vpow.pop %v990
        %v992 = vmul.f32 %v980, 1.442695
        %v993 = vpow.pop %v992
        %v994 = vmul.f32 %v981, 1.442695
        %v995 = vpow.pop %v994
        %v996 = vmul.f32 %v982, 1.442695
        %v997 = vpow.pop %v996
        %v998 = vmul.f32 %v983, 1.442695
        %v999 = vpow.pop %v998
        %v1000 = vsel %vm562, %v985, 0.0
        %1001 = vadd.xlane.f32.xlu0 %v1000
        %v1002 = vpop.xlane.xlu0 %1001
        %v1003 = vsel %vm562, %v987, 0.0
        %1004 = vadd.xlane.f32.xlu0 %v1003
        %v1005 = vpop.xlane.xlu0 %1004
        %v1006 = vsel %vm562, %v989, 0.0
        %1007 = vadd.xlane.f32.xlu0 %v1006
        %v1008 = vpop.xlane.xlu0 %1007
        %v1009 = vsel %vm562, %v991, 0.0
        %1010 = vadd.xlane.f32.xlu0 %v1009
        %v1011 = vpop.xlane.xlu0 %1010
        %v1012 = vsel %vm562, %v993, 0.0
        %1013 = vadd.xlane.f32.xlu0 %v1012
        %v1014 = vpop.xlane.xlu0 %1013
        %v1015 = vsel %vm562, %v995, 0.0
        %1016 = vadd.xlane.f32.xlu0 %v1015
        %v1017 = vpop.xlane.xlu0 %1016
        %v1018 = vsel %vm562, %v997, 0.0
        %1019 = vadd.xlane.f32.xlu0 %v1018
        %v1020 = vpop.xlane.xlu0 %1019
        %v1021 = vsel %vm562, %v999, 0.0
        %1022 = vadd.xlane.f32.xlu0 %v1021
        %v1023 = vpop.xlane.xlu0 %1022
        %v1024 = vpack.c.bf16 %v985, %v985
        %v1025 = vpack.c.bf16 %v987, %v987
        %v1026 = vpack.c.bf16 %v989, %v989
        %v1027 = vpack.c.bf16 %v991, %v991
        %v1028 = vpack.c.bf16 %v993, %v993
        %v1029 = vpack.c.bf16 %v995, %v995
        %v1030 = vpack.c.bf16 %v997, %v997
        %v1031 = vpack.c.bf16 %v999, %v999
        %1032 = vrot.lane.b32.xlu0 %v545, 64
        %v1033 = vpop.permute.xlu0 %1032
        %v1035 = vsel %vm562, %v1024, 0
        %vm1037 = vcmask 1043456
        %v1039 = vsel %vm1037, %v1033, 0
        %1041 = vmatprep.subr.bf16.mxu0 0
        %1042 = vmatpush1.bf16.msra.mxu0 %v1039
        %1043 = vmatprep.subr.bf16.mxu0 0
        %1044 = vmatpush1.bf16.msra.mxu0 0
        %1045 = vmatprep.subr.bf16.mxu0 0
        %1046 = vmatpush1.bf16.msra.mxu0 0
        %1047 = vmatprep.subr.bf16.mxu0 0
        %1048 = vmatpush1.bf16.msra.mxu0 0
        %1049 = vmatprep.subr.bf16.mxu0 0
        %1050 = vmatpush1.bf16.msra.mxu0 0
        %1051 = vmatprep.subr.bf16.mxu0 0
        %1052 = vmatpush1.bf16.msra.mxu0 0
        %1053 = vmatprep.subr.bf16.mxu0 0
        %1054 = vmatpush1.bf16.msra.mxu0 0
        %1055 = vmatprep.subr.bf16.mxu0 0
        %1056 = vmatpush1.bf16.msra.mxu0 0
        %1057 = vmatprep.subr.bf16.mxu0 0
        %1058 = vmatpush1.bf16.msra.mxu0 0
        %1059 = vmatprep.subr.bf16.mxu0 0
        %1060 = vmatpush1.bf16.msra.mxu0 0
        %1061 = vmatprep.subr.bf16.mxu0 0
        %1062 = vmatpush1.bf16.msra.mxu0 0
        %1063 = vmatprep.subr.bf16.mxu0 0
        %1064 = vmatpush1.bf16.msra.mxu0 0
        %1065 = vmatprep.subr.bf16.mxu0 0
        %1066 = vmatpush1.bf16.msra.mxu0 0
        %1067 = vmatprep.subr.bf16.mxu0 0
        %1068 = vmatpush1.bf16.msra.mxu0 0
        %1069 = vmatprep.subr.bf16.mxu0 0
        %1070 = vmatpush1.bf16.msra.mxu0 0
        %1071 = vmatprep.subr.bf16.mxu0 0
        %1072 = vmatpush1.bf16.msra.mxu0 0
        %1073 = vmatprep.mubr.bf16.mxu0 0
        %1074 = vmatmul.mubr.bf16.gmra.mrb[0].mxu0 %v1035
        %v1075 = vpop.f32.mrb[0].mxu0
        %v1076 = vadd.f32 0.0, %v1075
        %v1077 = vpop.f32.mrb[0].mxu0
        %v1078 = vpop.f32.mrb[0].mxu0
        %v1079 = vpop.f32.mrb[0].mxu0
        %1080 = vdwg.mxu0
        %1081 = vrot.lane.b32.xlu0 %v546, 64
        %v1082 = vpop.permute.xlu0 %1081
        %v1084 = vsel %vm562, %v1025, 0
        %v1087 = vsel %vm1037, %v1082, 0
        %1089 = vmatprep.subr.bf16.mxu0 0
        %1090 = vmatpush1.bf16.msra.mxu0 %v1087
        %1091 = vmatprep.subr.bf16.mxu0 0
        %1092 = vmatpush1.bf16.msra.mxu0 0
        %1093 = vmatprep.subr.bf16.mxu0 0
        %1094 = vmatpush1.bf16.msra.mxu0 0
        %1095 = vmatprep.subr.bf16.mxu0 0
        %1096 = vmatpush1.bf16.msra.mxu0 0
        %1097 = vmatprep.subr.bf16.mxu0 0
        %1098 = vmatpush1.bf16.msra.mxu0 0
        %1099 = vmatprep.subr.bf16.mxu0 0
        %1100 = vmatpush1.bf16.msra.mxu0 0
        %1101 = vmatprep.subr.bf16.mxu0 0
        %1102 = vmatpush1.bf16.msra.mxu0 0
        %1103 = vmatprep.subr.bf16.mxu0 0
        %1104 = vmatpush1.bf16.msra.mxu0 0
        %1105 = vmatprep.subr.bf16.mxu0 0
        %1106 = vmatpush1.bf16.msra.mxu0 0
        %1107 = vmatprep.subr.bf16.mxu0 0
        %1108 = vmatpush1.bf16.msra.mxu0 0
        %1109 = vmatprep.subr.bf16.mxu0 0
        %1110 = vmatpush1.bf16.msra.mxu0 0
        %1111 = vmatprep.subr.bf16.mxu0 0
        %1112 = vmatpush1.bf16.msra.mxu0 0
        %1113 = vmatprep.subr.bf16.mxu0 0
        %1114 = vmatpush1.bf16.msra.mxu0 0
        %1115 = vmatprep.subr.bf16.mxu0 0
        %1116 = vmatpush1.bf16.msra.mxu0 0
        %1117 = vmatprep.subr.bf16.mxu0 0
        %1118 = vmatpush1.bf16.msra.mxu0 0
        %1119 = vmatprep.subr.bf16.mxu0 0
        %1120 = vmatpush1.bf16.msra.mxu0 0
        %1121 = vmatprep.mubr.bf16.mxu0 0
        %1122 = vmatmul.mubr.bf16.gmra.mrb[0].mxu0 %v1084
        %v1123 = vpop.f32.mrb[0].mxu0
        %v1124 = vadd.f32 0.0, %v1123
        %v1125 = vpop.f32.mrb[0].mxu0
        %v1126 = vpop.f32.mrb[0].mxu0
        %v1127 = vpop.f32.mrb[0].mxu0
        %1128 = vdwg.mxu0
        %1129 = vrot.lane.b32.xlu0 %v547, 64
        %v1130 = vpop.permute.xlu0 %1129
        %v1132 = vsel %vm562, %v1026, 0
        %v1135 = vsel %vm1037, %v1130, 0
        %1137 = vmatprep.subr.bf16.mxu0 0
        %1138 = vmatpush1.bf16.msra.mxu0 %v1135
        %1139 = vmatprep.subr.bf16.mxu0 0
        %1140 = vmatpush1.bf16.msra.mxu0 0
        %1141 = vmatprep.subr.bf16.mxu0 0
        %1142 = vmatpush1.bf16.msra.mxu0 0
        %1143 = vmatprep.subr.bf16.mxu0 0
        %1144 = vmatpush1.bf16.msra.mxu0 0
        %1145 = vmatprep.subr.bf16.mxu0 0
        %1146 = vmatpush1.bf16.msra.mxu0 0
        %1147 = vmatprep.subr.bf16.mxu0 0
        %1148 = vmatpush1.bf16.msra.mxu0 0
        %1149 = vmatprep.subr.bf16.mxu0 0
        %1150 = vmatpush1.bf16.msra.mxu0 0
        %1151 = vmatprep.subr.bf16.mxu0 0
        %1152 = vmatpush1.bf16.msra.mxu0 0
        %1153 = vmatprep.subr.bf16.mxu0 0
        %1154 = vmatpush1.bf16.msra.mxu0 0
        %1155 = vmatprep.subr.bf16.mxu0 0
        %1156 = vmatpush1.bf16.msra.mxu0 0
        %1157 = vmatprep.subr.bf16.mxu0 0
        %1158 = vmatpush1.bf16.msra.mxu0 0
        %1159 = vmatprep.subr.bf16.mxu0 0
        %1160 = vmatpush1.bf16.msra.mxu0 0
        %1161 = vmatprep.subr.bf16.mxu0 0
        %1162 = vmatpush1.bf16.msra.mxu0 0
        %1163 = vmatprep.subr.bf16.mxu0 0
        %1164 = vmatpush1.bf16.msra.mxu0 0
        %1165 = vmatprep.subr.bf16.mxu0 0
        %1166 = vmatpush1.bf16.msra.mxu0 0
        %1167 = vmatprep.subr.bf16.mxu0 0
        %1168 = vmatpush1.bf16.msra.mxu0 0
        %1169 = vmatprep.mubr.bf16.mxu0 0
        %1170 = vmatmul.mubr.bf16.gmra.mrb[0].mxu0 %v1132
        %v1171 = vpop.f32.mrb[0].mxu0
        %v1172 = vadd.f32 0.0, %v1171
        %v1173 = vpop.f32.mrb[0].mxu0
        %v1174 = vpop.f32.mrb[0].mxu0
        %v1175 = vpop.f32.mrb[0].mxu0
        %1176 = vdwg.mxu0
        %1177 = vrot.lane.b32.xlu0 %v548, 64
        %v1178 = vpop.permute.xlu0 %1177
        %v1180 = vsel %vm562, %v1027, 0
        %v1183 = vsel %vm1037, %v1178, 0
        %1185 = vmatprep.subr.bf16.mxu0 0
        %1186 = vmatpush1.bf16.msra.mxu0 %v1183
        %1187 = vmatprep.subr.bf16.mxu0 0
        %1188 = vmatpush1.bf16.msra.mxu0 0
        %1189 = vmatprep.subr.bf16.mxu0 0
        %1190 = vmatpush1.bf16.msra.mxu0 0
        %1191 = vmatprep.subr.bf16.mxu0 0
        %1192 = vmatpush1.bf16.msra.mxu0 0
        %1193 = vmatprep.subr.bf16.mxu0 0
        %1194 = vmatpush1.bf16.msra.mxu0 0
        %1195 = vmatprep.subr.bf16.mxu0 0
        %1196 = vmatpush1.bf16.msra.mxu0 0
        %1197 = vmatprep.subr.bf16.mxu0 0
        %1198 = vmatpush1.bf16.msra.mxu0 0
        %1199 = vmatprep.subr.bf16.mxu0 0
        %1200 = vmatpush1.bf16.msra.mxu0 0
        %1201 = vmatprep.subr.bf16.mxu0 0
        %1202 = vmatpush1.bf16.msra.mxu0 0
        %1203 = vmatprep.subr.bf16.mxu0 0
        %1204 = vmatpush1.bf16.msra.mxu0 0
        %1205 = vmatprep.subr.bf16.mxu0 0
        %1206 = vmatpush1.bf16.msra.mxu0 0
        %1207 = vmatprep.subr.bf16.mxu0 0
        %1208 = vmatpush1.bf16.msra.mxu0 0
        %1209 = vmatprep.subr.bf16.mxu0 0
        %1210 = vmatpush1.bf16.msra.mxu0 0
        %1211 = vmatprep.subr.bf16.mxu0 0
        %1212 = vmatpush1.bf16.msra.mxu0 0
        %1213 = vmatprep.subr.bf16.mxu0 0
        %1214 = vmatpush1.bf16.msra.mxu0 0
        %1215 = vmatprep.subr.bf16.mxu0 0
        %1216 = vmatpush1.bf16.msra.mxu0 0
        %1217 = vmatprep.mubr.bf16.mxu0 0
        %1218 = vmatmul.mubr.bf16.gmra.mrb[0].mxu0 %v1180
        %v1219 = vpop.f32.mrb[0].mxu0
        %v1220 = vadd.f32 0.0, %v1219
        %v1221 = vpop.f32.mrb[0].mxu0
        %v1222 = vpop.f32.mrb[0].mxu0
        %v1223 = vpop.f32.mrb[0].mxu0
        %1224 = vdwg.mxu0
        %1225 = vrot.lane.b32.xlu0 %v549, 64
        %v1226 = vpop.permute.xlu0 %1225
        %v1228 = vsel %vm562, %v1028, 0
        %v1231 = vsel %vm1037, %v1226, 0
        %1233 = vmatprep.subr.bf16.mxu0 0
        %1234 = vmatpush1.bf16.msra.mxu0 %v1231
        %1235 = vmatprep.subr.bf16.mxu0 0
        %1236 = vmatpush1.bf16.msra.mxu0 0
        %1237 = vmatprep.subr.bf16.mxu0 0
        %1238 = vmatpush1.bf16.msra.mxu0 0
        %1239 = vmatprep.subr.bf16.mxu0 0
        %1240 = vmatpush1.bf16.msra.mxu0 0
        %1241 = vmatprep.subr.bf16.mxu0 0
        %1242 = vmatpush1.bf16.msra.mxu0 0
        %1243 = vmatprep.subr.bf16.mxu0 0
        %1244 = vmatpush1.bf16.msra.mxu0 0
        %1245 = vmatprep.subr.bf16.mxu0 0
        %1246 = vmatpush1.bf16.msra.mxu0 0
        %1247 = vmatprep.subr.bf16.mxu0 0
        %1248 = vmatpush1.bf16.msra.mxu0 0
        %1249 = vmatprep.subr.bf16.mxu0 0
        %1250 = vmatpush1.bf16.msra.mxu0 0
        %1251 = vmatprep.subr.bf16.mxu0 0
        %1252 = vmatpush1.bf16.msra.mxu0 0
        %1253 = vmatprep.subr.bf16.mxu0 0
        %1254 = vmatpush1.bf16.msra.mxu0 0
        %1255 = vmatprep.subr.bf16.mxu0 0
        %1256 = vmatpush1.bf16.msra.mxu0 0
        %1257 = vmatprep.subr.bf16.mxu0 0
        %1258 = vmatpush1.bf16.msra.mxu0 0
        %1259 = vmatprep.subr.bf16.mxu0 0
        %1260 = vmatpush1.bf16.msra.mxu0 0
        %1261 = vmatprep.subr.bf16.mxu0 0
        %1262 = vmatpush1.bf16.msra.mxu0 0
        %1263 = vmatprep.subr.bf16.mxu0 0
        %1264 = vmatpush1.bf16.msra.mxu0 0
        %1265 = vmatprep.mubr.bf16.mxu0 0
        %1266 = vmatmul.mubr.bf16.gmra.mrb[0].mxu0 %v1228
        %v1267 = vpop.f32.mrb[0].mxu0
        %v1268 = vadd.f32 0.0, %v1267
        %v1269 = vpop.f32.mrb[0].mxu0
        %v1270 = vpop.f32.mrb[0].mxu0
        %v1271 = vpop.f32.mrb[0].mxu0
        %1272 = vdwg.mxu0
        %1273 = vrot.lane.b32.xlu0 %v550, 64
        %v1274 = vpop.permute.xlu0 %1273
        %v1276 = vsel %vm562, %v1029, 0
        %v1279 = vsel %vm1037, %v1274, 0
        %1281 = vmatprep.subr.bf16.mxu0 0
        %1282 = vmatpush1.bf16.msra.mxu0 %v1279
        %1283 = vmatprep.subr.bf16.mxu0 0
        %1284 = vmatpush1.bf16.msra.mxu0 0
        %1285 = vmatprep.subr.bf16.mxu0 0
        %1286 = vmatpush1.bf16.msra.mxu0 0
        %1287 = vmatprep.subr.bf16.mxu0 0
        %1288 = vmatpush1.bf16.msra.mxu0 0
        %1289 = vmatprep.subr.bf16.mxu0 0
        %1290 = vmatpush1.bf16.msra.mxu0 0
        %1291 = vmatprep.subr.bf16.mxu0 0
        %1292 = vmatpush1.bf16.msra.mxu0 0
        %1293 = vmatprep.subr.bf16.mxu0 0
        %1294 = vmatpush1.bf16.msra.mxu0 0
        %1295 = vmatprep.subr.bf16.mxu0 0
        %1296 = vmatpush1.bf16.msra.mxu0 0
        %1297 = vmatprep.subr.bf16.mxu0 0
        %1298 = vmatpush1.bf16.msra.mxu0 0
        %1299 = vmatprep.subr.bf16.mxu0 0
        %1300 = vmatpush1.bf16.msra.mxu0 0
        %1301 = vmatprep.subr.bf16.mxu0 0
        %1302 = vmatpush1.bf16.msra.mxu0 0
        %1303 = vmatprep.subr.bf16.mxu0 0
        %1304 = vmatpush1.bf16.msra.mxu0 0
        %1305 = vmatprep.subr.bf16.mxu0 0
        %1306 = vmatpush1.bf16.msra.mxu0 0
        %1307 = vmatprep.subr.bf16.mxu0 0
        %1308 = vmatpush1.bf16.msra.mxu0 0
        %1309 = vmatprep.subr.bf16.mxu0 0
        %1310 = vmatpush1.bf16.msra.mxu0 0
        %1311 = vmatprep.subr.bf16.mxu0 0
        %1312 = vmatpush1.bf16.msra.mxu0 0
        %1313 = vmatprep.mubr.bf16.mxu0 0
        %1314 = vmatmul.mubr.bf16.gmra.mrb[0].mxu0 %v1276
        %v1315 = vpop.f32.mrb[0].mxu0
        %v1316 = vadd.f32 0.0, %v1315
        %v1317 = vpop.f32.mrb[0].mxu0
        %v1318 = vpop.f32.mrb[0].mxu0
        %v1319 = vpop.f32.mrb[0].mxu0
        %1320 = vdwg.mxu0
        %1321 = vrot.lane.b32.xlu0 %v551, 64
        %v1322 = vpop.permute.xlu0 %1321
        %v1324 = vsel %vm562, %v1030, 0
        %v1327 = vsel %vm1037, %v1322, 0
        %1329 = vmatprep.subr.bf16.mxu0 0
        %1330 = vmatpush1.bf16.msra.mxu0 %v1327
        %1331 = vmatprep.subr.bf16.mxu0 0
        %1332 = vmatpush1.bf16.msra.mxu0 0
        %1333 = vmatprep.subr.bf16.mxu0 0
        %1334 = vmatpush1.bf16.msra.mxu0 0
        %1335 = vmatprep.subr.bf16.mxu0 0
        %1336 = vmatpush1.bf16.msra.mxu0 0
        %1337 = vmatprep.subr.bf16.mxu0 0
        %1338 = vmatpush1.bf16.msra.mxu0 0
        %1339 = vmatprep.subr.bf16.mxu0 0
        %1340 = vmatpush1.bf16.msra.mxu0 0
        %1341 = vmatprep.subr.bf16.mxu0 0
        %1342 = vmatpush1.bf16.msra.mxu0 0
        %1343 = vmatprep.subr.bf16.mxu0 0
        %1344 = vmatpush1.bf16.msra.mxu0 0
        %1345 = vmatprep.subr.bf16.mxu0 0
        %1346 = vmatpush1.bf16.msra.mxu0 0
        %1347 = vmatprep.subr.bf16.mxu0 0
        %1348 = vmatpush1.bf16.msra.mxu0 0
        %1349 = vmatprep.subr.bf16.mxu0 0
        %1350 = vmatpush1.bf16.msra.mxu0 0
        %1351 = vmatprep.subr.bf16.mxu0 0
        %1352 = vmatpush1.bf16.msra.mxu0 0
        %1353 = vmatprep.subr.bf16.mxu0 0
        %1354 = vmatpush1.bf16.msra.mxu0 0
        %1355 = vmatprep.subr.bf16.mxu0 0
        %1356 = vmatpush1.bf16.msra.mxu0 0
        %1357 = vmatprep.subr.bf16.mxu0 0
        %1358 = vmatpush1.bf16.msra.mxu0 0
        %1359 = vmatprep.subr.bf16.mxu0 0
        %1360 = vmatpush1.bf16.msra.mxu0 0
        %1361 = vmatprep.mubr.bf16.mxu0 0
        %1362 = vmatmul.mubr.bf16.gmra.mrb[0].mxu0 %v1324
        %v1363 = vpop.f32.mrb[0].mxu0
        %v1364 = vadd.f32 0.0, %v1363
        %v1365 = vpop.f32.mrb[0].mxu0
        %v1366 = vpop.f32.mrb[0].mxu0
        %v1367 = vpop.f32.mrb[0].mxu0
        %1368 = vdwg.mxu0
        %1369 = vrot.lane.b32.xlu0 %v552, 64
        %v1370 = vpop.permute.xlu0 %1369
        %v1372 = vsel %vm562, %v1031, 0
        %v1375 = vsel %vm1037, %v1370, 0
        %1377 = vmatprep.subr.bf16.mxu0 0
        %1378 = vmatpush1.bf16.msra.mxu0 %v1375
        %1379 = vmatprep.subr.bf16.mxu0 0
        %1380 = vmatpush1.bf16.msra.mxu0 0
        %1381 = vmatprep.subr.bf16.mxu0 0
        %1382 = vmatpush1.bf16.msra.mxu0 0
        %1383 = vmatprep.subr.bf16.mxu0 0
        %1384 = vmatpush1.bf16.msra.mxu0 0
        %1385 = vmatprep.subr.bf16.mxu0 0
        %1386 = vmatpush1.bf16.msra.mxu0 0
        %1387 = vmatprep.subr.bf16.mxu0 0
        %1388 = vmatpush1.bf16.msra.mxu0 0
        %1389 = vmatprep.subr.bf16.mxu0 0
        %1390 = vmatpush1.bf16.msra.mxu0 0
        %1391 = vmatprep.subr.bf16.mxu0 0
        %1392 = vmatpush1.bf16.msra.mxu0 0
        %1393 = vmatprep.subr.bf16.mxu0 0
        %1394 = vmatpush1.bf16.msra.mxu0 0
        %1395 = vmatprep.subr.bf16.mxu0 0
        %1396 = vmatpush1.bf16.msra.mxu0 0
        %1397 = vmatprep.subr.bf16.mxu0 0
        %1398 = vmatpush1.bf16.msra.mxu0 0
        %1399 = vmatprep.subr.bf16.mxu0 0
        %1400 = vmatpush1.bf16.msra.mxu0 0
        %1401 = vmatprep.subr.bf16.mxu0 0
        %1402 = vmatpush1.bf16.msra.mxu0 0
        %1403 = vmatprep.subr.bf16.mxu0 0
        %1404 = vmatpush1.bf16.msra.mxu0 0
        %1405 = vmatprep.subr.bf16.mxu0 0
        %1406 = vmatpush1.bf16.msra.mxu0 0
        %1407 = vmatprep.subr.bf16.mxu0 0
        %1408 = vmatpush1.bf16.msra.mxu0 0
        %1409 = vmatprep.mubr.bf16.mxu0 0
        %1410 = vmatmul.mubr.bf16.gmra.mrb[0].mxu0 %v1372
        %v1411 = vpop.f32.mrb[0].mxu0
        %v1412 = vadd.f32 0.0, %v1411
        %v1413 = vpop.f32.mrb[0].mxu0
        %v1414 = vpop.f32.mrb[0].mxu0
        %v1415 = vpop.f32.mrb[0].mxu0
        %1416 = vdwg.mxu0
        %v1417 = vrcp.pop %v1002
        %v1418 = vrcp.pop %v1005
        %v1419 = vrcp.pop %v1008
        %v1420 = vrcp.pop %v1011
        %v1421 = vrcp.pop %v1014
        %v1422 = vrcp.pop %v1017
        %v1423 = vrcp.pop %v1020
        %v1424 = vrcp.pop %v1023
        %v1425 = vmul.f32 %v1076, %v1417
        %v1426 = vmul.f32 %v1124, %v1418
        %v1427 = vmul.f32 %v1172, %v1419
        %v1428 = vmul.f32 %v1220, %v1420
        %v1429 = vmul.f32 %v1268, %v1421
        %v1430 = vmul.f32 %v1316, %v1422
        %v1431 = vmul.f32 %v1364, %v1423
        %v1432 = vmul.f32 %v1412, %v1424
        %v1433 = vpack.c.bf16 %v1425, %v1425
        %v1434 = vpack.c.bf16 %v1426, %v1426
        %v1435 = vpack.c.bf16 %v1427, %v1427
        %v1436 = vpack.c.bf16 %v1428, %v1428
        %v1437 = vpack.c.bf16 %v1429, %v1429
        %v1438 = vpack.c.bf16 %v1430, %v1430
        %v1439 = vpack.c.bf16 %v1431, %v1431
        %v1440 = vpack.c.bf16 %v1432, %v1432
        %1443 = vrot.lane.b32.xlu0 %v1435, 8
        %v1444 = vpop.permute.xlu0 %1443
        %1445 = vrot.lane.b32.xlu0 %v1436, 8
        %v1446 = vpop.permute.xlu0 %1445
        %1449 = vrot.lane.b32.xlu0 %v1437, 16
        %v1450 = vpop.permute.xlu0 %1449
        %1451 = vrot.lane.b32.xlu0 %v1438, 16
        %v1452 = vpop.permute.xlu0 %1451
        %1455 = vrot.lane.b32.xlu0 %v1439, 24
        %v1456 = vpop.permute.xlu0 %1455
        %1457 = vrot.lane.b32.xlu0 %v1440, 24
        %v1458 = vpop.permute.xlu0 %1457
        %v1461 = vsel %vm562, %v1433, %v1444
        %v1464 = vsel %vm562, %v1434, %v1446
        %vm1465 = vcmask 130048
        %v1467 = vsel %vm1465, %v1461, %v1450
        %v1469 = vsel %vm1465, %v1464, %v1452
        %vm1470 = vcmask 195584
        %v1472 = vsel %vm1470, %v1467, %v1456
        %v1474 = vsel %vm1470, %v1469, %v1458
        %v1475 = vld [vmem:[%s4] sm:$0xf]
        %v1476 = vld [vmem:[%s4 + $0x4] sm:$0xf]
        %v1477 = vld [vmem:[%s4 + $0x8] sm:$0xf]
        %v1478 = vld [vmem:[%s4 + $0xc] sm:$0xf]
        %v1479 = vld [vmem:[%s5] sm:$0x1]
        %v1481 = vlaneseq
        %v1482 = vshrl.u32 %v1481, 7
        %v1483 = vsub.s32 0, %v1482
        %v1484 = vrot.slane %v1479, %v1483
        %v1488 = vunpack.c.l.b16 %v1472
        %v1489 = vunpack.c.l.b16 %v1474
        %v1490 = vpack.c.b16 %v1489, %v1488
        %v1495 = vunpack.c.l.b16 %v1475
        %v1496 = vunpack.c.l.b16 %v1476
        %v1497 = vunpack.c.l.b16 %v1477
        %v1498 = vunpack.c.l.b16 %v1478
        %v1499 = vpack.c.b16 %v1496, %v1495
        %v1500 = vpack.c.b16 %v1498, %v1497
        %v1504 = vsel %vm420, %v1490, 0
        %1506 = vmatprep.subr.bf16.mxu0 0
        %1507 = vmatpush1.bf16.msra.mxu0 %v1499
        %1508 = vmatprep.subr.bf16.mxu0 0
        %1509 = vmatpush1.bf16.msra.mxu0 %v1500
        %1510 = vmatprep.subr.bf16.mxu0 0
        %1511 = vmatpush1.bf16.msra.mxu0 0
        %1512 = vmatprep.subr.bf16.mxu0 0
        %1513 = vmatpush1.bf16.msra.mxu0 0
        %1514 = vmatprep.subr.bf16.mxu0 0
        %1515 = vmatpush1.bf16.msra.mxu0 0
        %1516 = vmatprep.subr.bf16.mxu0 0
        %1517 = vmatpush1.bf16.msra.mxu0 0
        %1518 = vmatprep.subr.bf16.mxu0 0
        %1519 = vmatpush1.bf16.msra.mxu0 0
        %1520 = vmatprep.subr.bf16.mxu0 0
        %1521 = vmatpush1.bf16.msra.mxu0 0
        %1522 = vmatprep.subr.bf16.mxu0 0
        %1523 = vmatpush1.bf16.msra.mxu0 0
        %1524 = vmatprep.subr.bf16.mxu0 0
        %1525 = vmatpush1.bf16.msra.mxu0 0
        %1526 = vmatprep.subr.bf16.mxu0 0
        %1527 = vmatpush1.bf16.msra.mxu0 0
        %1528 = vmatprep.subr.bf16.mxu0 0
        %1529 = vmatpush1.bf16.msra.mxu0 0
        %1530 = vmatprep.subr.bf16.mxu0 0
        %1531 = vmatpush1.bf16.msra.mxu0 0
        %1532 = vmatprep.subr.bf16.mxu0 0
        %1533 = vmatpush1.bf16.msra.mxu0 0
        %1534 = vmatprep.subr.bf16.mxu0 0
        %1535 = vmatpush1.bf16.msra.mxu0 0
        %1536 = vmatprep.subr.bf16.mxu0 0
        %1537 = vmatpush1.bf16.msra.mxu0 0
        %1538 = vmatprep.mubr.bf16.mxu0 0
        %1539 = vmatmul.mubr.bf16.gmra.mrb[0].mxu0 %v1504
        %v1540 = vpop.f32.mrb[0].mxu0
        %v1541 = vadd.f32 %v1484, %v1540
        %v1542 = vpop.f32.mrb[0].mxu0
        %v1543 = vpop.f32.mrb[0].mxu0
        %v1544 = vadd.f32 %v1484, %v1543
        %v1545 = vpop.f32.mrb[0].mxu0
        %1546 = vdwg.mxu0
        %v1547 = vadd.f32 %v416, %v1541
        %v1548 = vadd.f32 %v417, %v1544
        %v1549 = vld [vmem:[%s6] sm:$0x1]
        %v1550 = vld [vmem:[%s7] sm:$0x1]
        %v1551 = vsel %vm420, %v1547, 0.0
        %1552 = vadd.xlane.f32.xlu0 %v1551
        %v1553 = vpop.xlane.xlu0 %1552
        %v1554 = vsel %vm420, %v1548, 0.0
        %1555 = vadd.xlane.f32.xlu0 %v1554
        %v1556 = vpop.xlane.xlu0 %1555
        %v1557 = vmul.f32 %v1553, %v427
        %v1558 = vmul.f32 %v1556, %v427
        %v1559 = vsub.f32 %v1547, %v1557
        %v1560 = vsub.f32 %v1548, %v1558
        %v1561 = vmul.f32 %v1559, %v1559
        %v1562 = vmul.f32 %v1560, %v1560
        %v1563 = vsel %vm420, %v1561, 0.0
        %1564 = vadd.xlane.f32.xlu0 %v1563
        %v1565 = vpop.xlane.xlu0 %1564
        %v1566 = vsel %vm420, %v1562, 0.0
        %1567 = vadd.xlane.f32.xlu0 %v1566
        %v1568 = vpop.xlane.xlu0 %1567
        %v1569 = vmul.f32 %v1565, %v427
        %v1570 = vmul.f32 %v1568, %v427
        %v1571 = vadd.f32 %v1569, 1e-05
        %v1572 = vadd.f32 %v1570, 1e-05
        %v1573 = vrsqrt.pop %v1571
        %v1574 = vrsqrt.pop %v1572
        %v1575 = vmul.f32 %v1559, %v1573
        %v1576 = vmul.f32 %v1560, %v1574
        %v1578 = vlaneseq
        %v1579 = vshrl.u32 %v1578, 7
        %v1580 = vsub.s32 0, %v1579
        %v1581 = vrot.slane %v1549, %v1580
        %v1583 = vmul.f32 %v1575, %v1581
        %v1584 = vmul.f32 %v1576, %v1581
        %v1586 = vlaneseq
        %v1587 = vshrl.u32 %v1586, 7
        %v1588 = vsub.s32 0, %v1587
        %v1589 = vrot.slane %v1550, %v1588
        %v1591 = vadd.f32 %v1583, %v1589
        %v1592 = vadd.f32 %v1584, %v1589
        %v1593 = vpack.c.bf16 %v1592, %v1591
        %v1594 = vld [vmem:[%s8] sm:$0xf]
        %v1595 = vld [vmem:[%s8 + $0x4] sm:$0xf]
        %v1596 = vld [vmem:[%s8 + $0x8] sm:$0xf]
        %v1597 = vld [vmem:[%s8 + $0xc] sm:$0xf]
        %v1598 = vld [vmem:[%s9] sm:$0x1]
        %v1600 = vlaneseq
        %v1601 = vshrl.u32 %v1600, 7
        %v1602 = vsub.s32 0, %v1601
        %v1603 = vrot.slane %v1598, %v1602
        %v1609 = vunpack.c.l.b16 %v1594
        %v1610 = vunpack.c.l.b16 %v1595
        %v1611 = vunpack.c.l.b16 %v1596
        %v1612 = vunpack.c.l.b16 %v1597
        %v1613 = vpack.c.b16 %v1610, %v1609
        %v1614 = vpack.c.b16 %v1612, %v1611
        %v1618 = vsel %vm420, %v1593, 0
        %1620 = vmatprep.subr.bf16.mxu0 0
        %1621 = vmatpush1.bf16.msra.mxu0 %v1613
        %1622 = vmatprep.subr.bf16.mxu0 0
        %1623 = vmatpush1.bf16.msra.mxu0 %v1614
        %1624 = vmatprep.subr.bf16.mxu0 0
        %1625 = vmatpush1.bf16.msra.mxu0 0
        %1626 = vmatprep.subr.bf16.mxu0 0
        %1627 = vmatpush1.bf16.msra.mxu0 0
        %1628 = vmatprep.subr.bf16.mxu0 0
        %1629 = vmatpush1.bf16.msra.mxu0 0
        %1630 = vmatprep.subr.bf16.mxu0 0
        %1631 = vmatpush1.bf16.msra.mxu0 0
        %1632 = vmatprep.subr.bf16.mxu0 0
        %1633 = vmatpush1.bf16.msra.mxu0 0
        %1634 = vmatprep.subr.bf16.mxu0 0
        %1635 = vmatpush1.bf16.msra.mxu0 0
        %1636 = vmatprep.subr.bf16.mxu0 0
        %1637 = vmatpush1.bf16.msra.mxu0 0
        %1638 = vmatprep.subr.bf16.mxu0 0
        %1639 = vmatpush1.bf16.msra.mxu0 0
        %1640 = vmatprep.subr.bf16.mxu0 0
        %1641 = vmatpush1.bf16.msra.mxu0 0
        %1642 = vmatprep.subr.bf16.mxu0 0
        %1643 = vmatpush1.bf16.msra.mxu0 0
        %1644 = vmatprep.subr.bf16.mxu0 0
        %1645 = vmatpush1.bf16.msra.mxu0 0
        %1646 = vmatprep.subr.bf16.mxu0 0
        %1647 = vmatpush1.bf16.msra.mxu0 0
        %1648 = vmatprep.subr.bf16.mxu0 0
        %1649 = vmatpush1.bf16.msra.mxu0 0
        %1650 = vmatprep.subr.bf16.mxu0 0
        %1651 = vmatpush1.bf16.msra.mxu0 0
        %1652 = vmatprep.mubr.bf16.mxu0 0
        %1653 = vmatmul.mubr.bf16.gmra.mrb[0].mxu0 %v1618
        %v1654 = vpop.f32.mrb[0].mxu0
        %v1655 = vadd.f32 %v1603, %v1654
        %v1656 = vpop.f32.mrb[0].mxu0
        %v1657 = vpop.f32.mrb[0].mxu0
        %v1658 = vadd.f32 %v1603, %v1657
        %v1659 = vpop.f32.mrb[0].mxu0
        %1660 = vdwg.mxu0
        %v1661 = vmax.f32 %v1655, 0.0
        %v1662 = vmax.f32 %v1658, 0.0
        %v1663 = vpack.c.bf16 %v1662, %v1661
        %v1664 = vld [vmem:[%s10] sm:$0xf]
        %v1665 = vld [vmem:[%s10 + $0x4] sm:$0xf]
        %v1666 = vld [vmem:[%s10 + $0x8] sm:$0xf]
        %v1667 = vld [vmem:[%s10 + $0xc] sm:$0xf]
        %v1668 = vld [vmem:[%s10 + $0x10] sm:$0xf]
        %v1669 = vld [vmem:[%s10 + $0x14] sm:$0xf]
        %v1670 = vld [vmem:[%s10 + $0x18] sm:$0xf]
        %v1671 = vld [vmem:[%s10 + $0x1c] sm:$0xf]
        %v1672 = vld [vmem:[%s10 + $0x20] sm:$0xf]
        %v1673 = vld [vmem:[%s10 + $0x24] sm:$0xf]
        %v1674 = vld [vmem:[%s10 + $0x28] sm:$0xf]
        %v1675 = vld [vmem:[%s10 + $0x2c] sm:$0xf]
        %v1676 = vld [vmem:[%s10 + $0x30] sm:$0xf]
        %v1677 = vld [vmem:[%s10 + $0x34] sm:$0xf]
        %v1678 = vld [vmem:[%s10 + $0x38] sm:$0xf]
        %v1679 = vld [vmem:[%s10 + $0x3c] sm:$0xf]
        %v1680 = vld [vmem:[%s11] sm:$0x1]
        %v1682 = vlaneseq
        %v1683 = vshrl.u32 %v1682, 7
        %v1684 = vsub.s32 0, %v1683
        %v1685 = vrot.slane %v1680, %v1684
        %v1703 = vunpack.c.l.b16 %v1664
        %v1704 = vunpack.c.l.b16 %v1665
        %v1705 = vunpack.c.l.b16 %v1666
        %v1706 = vunpack.c.l.b16 %v1667
        %v1707 = vunpack.c.l.b16 %v1668
        %v1708 = vunpack.c.l.b16 %v1669
        %v1709 = vunpack.c.l.b16 %v1670
        %v1710 = vunpack.c.l.b16 %v1671
        %v1711 = vunpack.c.l.b16 %v1672
        %v1712 = vunpack.c.l.b16 %v1673
        %v1713 = vunpack.c.l.b16 %v1674
        %v1714 = vunpack.c.l.b16 %v1675
        %v1715 = vunpack.c.l.b16 %v1676
        %v1716 = vunpack.c.l.b16 %v1677
        %v1717 = vunpack.c.l.b16 %v1678
        %v1718 = vunpack.c.l.b16 %v1679
        %v1719 = vpack.c.b16 %v1704, %v1703
        %v1720 = vpack.c.b16 %v1706, %v1705
        %v1721 = vpack.c.b16 %v1708, %v1707
        %v1722 = vpack.c.b16 %v1710, %v1709
        %v1723 = vpack.c.b16 %v1712, %v1711
        %v1724 = vpack.c.b16 %v1714, %v1713
        %v1725 = vpack.c.b16 %v1716, %v1715
        %v1726 = vpack.c.b16 %v1718, %v1717
        %1735 = vmatprep.subr.bf16.mxu0 0
        %1736 = vmatpush1.bf16.msra.mxu0 %v1719
        %1737 = vmatprep.subr.bf16.mxu0 0
        %1738 = vmatpush1.bf16.msra.mxu0 %v1720
        %1739 = vmatprep.subr.bf16.mxu0 0
        %1740 = vmatpush1.bf16.msra.mxu0 %v1721
        %1741 = vmatprep.subr.bf16.mxu0 0
        %1742 = vmatpush1.bf16.msra.mxu0 %v1722
        %1743 = vmatprep.subr.bf16.mxu0 0
        %1744 = vmatpush1.bf16.msra.mxu0 %v1723
        %1745 = vmatprep.subr.bf16.mxu0 0
        %1746 = vmatpush1.bf16.msra.mxu0 %v1724
        %1747 = vmatprep.subr.bf16.mxu0 0
        %1748 = vmatpush1.bf16.msra.mxu0 %v1725
        %1749 = vmatprep.subr.bf16.mxu0 0
        %1750 = vmatpush1.bf16.msra.mxu0 %v1726
        %1751 = vmatprep.subr.bf16.mxu0 0
        %1752 = vmatpush1.bf16.msra.mxu0 0
        %1753 = vmatprep.subr.bf16.mxu0 0
        %1754 = vmatpush1.bf16.msra.mxu0 0
        %1755 = vmatprep.subr.bf16.mxu0 0
        %1756 = vmatpush1.bf16.msra.mxu0 0
        %1757 = vmatprep.subr.bf16.mxu0 0
        %1758 = vmatpush1.bf16.msra.mxu0 0
        %1759 = vmatprep.subr.bf16.mxu0 0
        %1760 = vmatpush1.bf16.msra.mxu0 0
        %1761 = vmatprep.subr.bf16.mxu0 0
        %1762 = vmatpush1.bf16.msra.mxu0 0
        %1763 = vmatprep.subr.bf16.mxu0 0
        %1764 = vmatpush1.bf16.msra.mxu0 0
        %1765 = vmatprep.subr.bf16.mxu0 0
        %1766 = vmatpush1.bf16.msra.mxu0 0
        %1767 = vmatprep.mubr.bf16.mxu0 0
        %1768 = vmatmul.mubr.bf16.gmra.mrb[0].mxu0 %v1663
        %v1769 = vpop.f32.mrb[0].mxu0
        %v1770 = vadd.f32 %v1685, %v1769
        %v1771 = vpop.f32.mrb[0].mxu0
        %v1772 = vpop.f32.mrb[0].mxu0
        %v1773 = vadd.f32 %v1685, %v1772
        %v1774 = vpop.f32.mrb[0].mxu0
        %1775 = vdwg.mxu0
        %v1776 = vadd.f32 %v1547, %v1770
        %v1777 = vadd.f32 %v1548, %v1773
        %1778 = vst.msk [vmem:[%s407] sm:$0xff] %vm420, %v1776
        %1779 = vst.msk [vmem:[%s407 + $0x8] sm:$0xff] %vm420, %v1777
        %s1780 = sand.u32 %s291, 1
        %s1781 = scalar_lea.sflag [#allocation3], %s1780
        %s1782 = sand.u32 %s291, 1
        %s1783 = smul.addr %s1782, 16
        %s1784 = scalar_lea.vmem [#allocation2], %s1783
        // Predicated region
        $region69: #{tpu_custom_call.1} parent=67 // pred_check
          %p1785 = pneg %p301
        $region70: #{tpu_custom_call.1} parent=67 // pred_check_branch
          %1787 = sbr.rel (%p1785) target = $region72
        $region71: #{tpu_custom_call.1} parent=67 // pred_region
          %s1788 = smul.u32 2, %s26
          %s1790 = ssub.s32 256, 256
          %1791 = vsyncadd %s1781, %s1790
          %s1792 = smul.addr %s1788, 128
          %s1793 = scalar_lea.hbm %s12, %s1792
          %s1794 = sshll.u32 %s1784, 4
          %s1795 = int_to_ptr.vmem [resolvable:$true] %s1794
          %1800 = dma.vmem_to_hbm [thread:$0]  %s1795, 256, %s1793, %s1781, 128, 128, 8
        $region72: #{tpu_custom_call.1} parent=67 // pred_fallthru
          _
      $region68: #{tpu_custom_call.1} parent=5 // pred_fallthru
        _
      %p1801 = scmp.le.s32.totalorder 2, %s21
      // Predicated region
      $region73: #{tpu_custom_call.1} parent=5 // pred_check
        %p1802 = pneg %p1801
      $region74: #{tpu_custom_call.1} parent=5 // pred_check_branch
        %1804 = sbr.rel (%p1802) target = $region76
      $region75: #{tpu_custom_call.1} parent=5 // pred_region
        %s1805 = ssub.s32 %s21, 2
        // Predicated region
        $region77: #{tpu_custom_call.1} parent=75 // pred_check
          %p1806 = pneg %p307
        $region78: #{tpu_custom_call.1} parent=75 // pred_check_branch
          %1808 = sbr.rel (%p1806) target = $region80
        $region79: #{tpu_custom_call.1} parent=75 // pred_region
          %s1809 = sand.u32 %s292, 1
          %s1810 = scalar_lea.sflag [#allocation3], %s1809
          %s1811 = sand.u32 %s292, 1
          %s1812 = smul.addr %s1811, 16
          %s1813 = scalar_lea.vmem [#allocation2], %s1812
          %1814 = dma.done %s1810, 256
        $region80: #{tpu_custom_call.1} parent=75 // pred_fallthru
          _
      $region76: #{tpu_custom_call.1} parent=5 // pred_fallthru
        _
    $region6: #{tpu_custom_call.1} parent=1 // loop_footer
      %s25 = sadd.s32 1, %s21
    $region7: #{tpu_custom_call.1} parent=1 // loop_footer_branch
      %20 = sbr.rel target = $region3
    $region8: #{tpu_custom_call.1} parent=1 // loop_exit
      _
    %1815 = vsyncpa [#allocation3], 1
    %s1816 = scalar_lea.sflag [#allocation3], 1
    %1817 = vsyncpa %s1816, 1

// kernel: tpu_custom_call.1
$region0: #{tpu_custom_call.1}
  #allocation0 [shape = 'u32[]', space=smem, size = 0x4, offset = 0x4, fixed_abs, tag = 'smem constant byte address 0x4 - core index']
  #allocation1 [shape = 'u32[144,128]{1,0:T(1,128)}', space=vmem, size = 0x12000, scoped, tag = 'internal scratch']
  %s0 = inlined_call_operand.vmem [shape: f32[4,8,32], index: 0, kind: input, shape index: {}]
  %s1 = inlined_call_operand.vmem [shape: f32[1,32], index: 1, kind: input, shape index: {}]
  %s2 = inlined_call_operand.vmem [shape: f32[1,32], index: 2, kind: input, shape index: {}]
  %s3 = inlined_call_operand.vmem [shape: bf16[32,96], index: 3, kind: input, shape index: {}]
  %s4 = inlined_call_operand.vmem [shape: bf16[32,32], index: 4, kind: input, shape index: {}]
  %s5 = inlined_call_operand.vmem [shape: f32[1,32], index: 5, kind: input, shape index: {}]
  %s6 = inlined_call_operand.vmem [shape: f32[1,32], index: 6, kind: input, shape index: {}]
  %s7 = inlined_call_operand.vmem [shape: f32[1,32], index: 7, kind: input, shape index: {}]
  %s8 = inlined_call_operand.vmem [shape: bf16[32,128], index: 8, kind: input, shape index: {}]
  %s9 = inlined_call_operand.vmem [shape: f32[1,128], index: 9, kind: input, shape index: {}]
  %s10 = inlined_call_operand.vmem [shape: bf16[128,32], index: 10, kind: input, shape index: {}]
  %s11 = inlined_call_operand.vmem [shape: f32[1,32], index: 11, kind: input, shape index: {}]
  %s12 = inlined_call_operand.hbm [shape: f32[4,8,32], index: 12, kind: output, shape index: {}]
  %s13 = sld [smem:[#allocation0]]
  $region81: #{tpu_custom_call.1} parent=0
    _
  %s15 = ssub.s32 1, %s13
  %s16 = scalar_select 0, %s15, %s13
  $region1: #{tpu_custom_call.1} parent=0
    #allocation2 [shape = 'u8[16384]{0}', space=vmem, size = 0x4000, scoped, tag = 'output window, operand 0']
    #allocation3 [shape = 's32[2]{0}', space=sflag, size = 0x8, scoped, tag = 'scoped memory for tpu_custom_call.1']
    %17 = vsyncpa [#allocation3], 0
    %s18 = scalar_lea.sflag [#allocation3], 1
    %19 = vsyncpa %s18, 0
    loop: start=0, step=1, limit=4
    $region2: #{tpu_custom_call.1} parent=1 // loop_pre_header
      _
    $region3: #{tpu_custom_call.1} parent=1 // loop_header
      %s21 = sphi 0, %s25
      %p22 = scmp.ge.s32.totalorder %s21, 4
      %s31 = sphi 0, %s33
      %s34 = sphi 0, %s31
      %s35 = sphi 0, %s34
      %s51 = sphi 0, %s35
      %s55 = sphi 0, %s55
      %s57 = sphi 0, %s55
      %s58 = sphi 0, %s57
      %s72 = sphi 0, %s58
      %s76 = sphi 0, %s76
      %s78 = sphi 0, %s76
      %s79 = sphi 0, %s78
      %s93 = sphi 0, %s79
      %s97 = sphi 0, %s97
      %s99 = sphi 0, %s97
      %s100 = sphi 0, %s99
      %s114 = sphi 0, %s100
      %s118 = sphi 0, %s118
      %s120 = sphi 0, %s118
      %s121 = sphi 0, %s120
      %s135 = sphi 0, %s121
      %s139 = sphi 0, %s139
      %s141 = sphi 0, %s139
      %s142 = sphi 0, %s141
      %s156 = sphi 0, %s142
      %s160 = sphi 0, %s160
      %s162 = sphi 0, %s160
      %s163 = sphi 0, %s162
      %s177 = sphi 0, %s163
      %s181 = sphi 0, %s181
      %s183 = sphi 0, %s181
      %s184 = sphi 0, %s183
      %s198 = sphi 0, %s184
      %s202 = sphi 0, %s202
      %s204 = sphi 0, %s202
      %s205 = sphi 0, %s204
      %s219 = sphi 0, %s205
      %s223 = sphi 0, %s223
      %s225 = sphi 0, %s223
      %s226 = sphi 0, %s225
      %s240 = sphi 0, %s226
      %s244 = sphi 0, %s244
      %s246 = sphi 0, %s244
      %s247 = sphi 0, %s246
      %s261 = sphi 0, %s247
      %s265 = sphi 0, %s265
      %s267 = sphi 0, %s265
      %s268 = sphi 0, %s267
      %s282 = sphi 0, %s268
      %s288 = sphi 0, %s290
      %s291 = sphi 0, %s288
      %s292 = sphi 0, %s291
      %s308 = sphi 0, %s292
    $region4: #{tpu_custom_call.1} parent=1 // loop_header_branch
      %24 = sbr.rel (%p22) target = $region8
    $region5: #{tpu_custom_call.1} parent=1 // loop_body
      %s26 = ssub.s32 %s21, 1
      %s27 = ssub.s32 %s21, 2
      %s28 = sadd.s32 %s21, 1
      %s29 = ssub.s32 %s21, %s28
      %p30 = scmp.eq.s32.totalorder %s29, 0
      %s32 = sadd.s32 %s31, 1
      %s33 = scalar_select %p30, %s31, %s32
      %p36 = pneg %p30
      %p37 = scmp.eq.s32.totalorder %s21, 1
      %p38 = por %p36, %p37
      %p39 = scmp.ne.s32.totalorder %s31, %s34
      %p40 = scmp.eq.s32.totalorder %s21, 0
      %p41 = por %p39, %p40
      %p42 = scmp.ne.s32.totalorder %s31, %s34
      %p43 = scmp.eq.s32.totalorder %s26, 1
      %p44 = por %p42, %p43
      %p45 = scmp.ne.s32.totalorder %s34, %s35
      %p46 = scmp.eq.s32.totalorder %s26, 0
      %p47 = por %p45, %p46
      %p48 = scmp.ne.s32.totalorder %s34, %s35
      %p49 = scmp.eq.s32.totalorder %s27, 1
      %p50 = por %p48, %p49
      %p52 = scmp.ne.s32.totalorder %s35, %s51
      %p53 = scmp.eq.s32.totalorder %s27, 0
      %p54 = por %p52, %p53
      %s56 = sadd.s32 %s55, 1
      %p59 = scmp.eq.s32.totalorder %s21, 1
      %p60 = scmp.ne.s32.totalorder %s55, %s57
      %p61 = scmp.eq.s32.totalorder %s21, 0
      %p62 = por %p60, %p61
      %p63 = scmp.ne.s32.totalorder %s55, %s57
      %p64 = scmp.eq.s32.totalorder %s26, 1
      %p65 = por %p63, %p64
      %p66 = scmp.ne.s32.totalorder %s57, %s58
      %p67 = scmp.eq.s32.totalorder %s26, 0
      %p68 = por %p66, %p67
      %p69 = scmp.ne.s32.totalorder %s57, %s58
      %p70 = scmp.eq.s32.totalorder %s27, 1
      %p71 = por %p69, %p70
      %p73 = scmp.ne.s32.totalorder %s58, %s72
      %p74 = scmp.eq.s32.totalorder %s27, 0
      %p75 = por %p73, %p74
      %s77 = sadd.s32 %s76, 1
      %p80 = scmp.eq.s32.totalorder %s21, 1
      %p81 = scmp.ne.s32.totalorder %s76, %s78
      %p82 = scmp.eq.s32.totalorder %s21, 0
      %p83 = por %p81, %p82
      %p84 = scmp.ne.s32.totalorder %s76, %s78
      %p85 = scmp.eq.s32.totalorder %s26, 1
      %p86 = por %p84, %p85
      %p87 = scmp.ne.s32.totalorder %s78, %s79
      %p88 = scmp.eq.s32.totalorder %s26, 0
      %p89 = por %p87, %p88
      %p90 = scmp.ne.s32.totalorder %s78, %s79
      %p91 = scmp.eq.s32.totalorder %s27, 1
      %p92 = por %p90, %p91
      %p94 = scmp.ne.s32.totalorder %s79, %s93
      %p95 = scmp.eq.s32.totalorder %s27, 0
      %p96 = por %p94, %p95
      %s98 = sadd.s32 %s97, 1
      %p101 = scmp.eq.s32.totalorder %s21, 1
      %p102 = scmp.ne.s32.totalorder %s97, %s99
      %p103 = scmp.eq.s32.totalorder %s21, 0
      %p104 = por %p102, %p103
      %p105 = scmp.ne.s32.totalorder %s97, %s99
      %p106 = scmp.eq.s32.totalorder %s26, 1
      %p107 = por %p105, %p106
      %p108 = scmp.ne.s32.totalorder %s99, %s100
      %p109 = scmp.eq.s32.totalorder %s26, 0
      %p110 = por %p108, %p109
      %p111 = scmp.ne.s32.totalorder %s99, %s100
      %p112 = scmp.eq.s32.totalorder %s27, 1
      %p113 = por %p111, %p112
      %p115 = scmp.ne.s32.totalorder %s100, %s114
      %p116 = scmp.eq.s32.totalorder %s27, 0
      %p117 = por %p115, %p116
      %s119 = sadd.s32 %s118, 1
      %p122 = scmp.eq.s32.totalorder %s21, 1
      %p123 = scmp.ne.s32.totalorder %s118, %s120
      %p124 = scmp.eq.s32.totalorder %s21, 0
      %p125 = por %p123, %p124
      %p126 = scmp.ne.s32.totalorder %s118, %s120
      %p127 = scmp.eq.s32.totalorder %s26, 1
      %p128 = por %p126, %p127
      %p129 = scmp.ne.s32.totalorder %s120, %s121
      %p130 = scmp.eq.s32.totalorder %s26, 0
      %p131 = por %p129, %p130
      %p132 = scmp.ne.s32.totalorder %s120, %s121
      %p133 = scmp.eq.s32.totalorder %s27, 1
      %p134 = por %p132, %p133
      %p136 = scmp.ne.s32.totalorder %s121, %s135
      %p137 = scmp.eq.s32.totalorder %s27, 0
      %p138 = por %p136, %p137
      %s140 = sadd.s32 %s139, 1
      %p143 = scmp.eq.s32.totalorder %s21, 1
      %p144 = scmp.ne.s32.totalorder %s139, %s141
      %p145 = scmp.eq.s32.totalorder %s21, 0
      %p146 = por %p144, %p145
      %p147 = scmp.ne.s32.totalorder %s139, %s141
      %p148 = scmp.eq.s32.totalorder %s26, 1
      %p149 = por %p147, %p148
      %p150 = scmp.ne.s32.totalorder %s141, %s142
      %p151 = scmp.eq.s32.totalorder %s26, 0
      %p152 = por %p150, %p151
      %p153 = scmp.ne.s32.totalorder %s141, %s142
      %p154 = scmp.eq.s32.totalorder %s27, 1
      %p155 = por %p153, %p154
      %p157 = scmp.ne.s32.totalorder %s142, %s156
      %p158 = scmp.eq.s32.totalorder %s27, 0
      %p159 = por %p157, %p158
      %s161 = sadd.s32 %s160, 1
      %p164 = scmp.eq.s32.totalorder %s21, 1
      %p165 = scmp.ne.s32.totalorder %s160, %s162
      %p166 = scmp.eq.s32.totalorder %s21, 0
      %p167 = por %p165, %p166
      %p168 = scmp.ne.s32.totalorder %s160, %s162
      %p169 = scmp.eq.s32.totalorder %s26, 1
      %p170 = por %p168, %p169
      %p171 = scmp.ne.s32.totalorder %s162, %s163
      %p172 = scmp.eq.s32.totalorder %s26, 0
      %p173 = por %p171, %p172
      %p174 = scmp.ne.s32.totalorder %s162, %s163
      %p175 = scmp.eq.s32.totalorder %s27, 1
      %p176 = por %p174, %p175
      %p178 = scmp.ne.s32.totalorder %s163, %s177
      %p179 = scmp.eq.s32.totalorder %s27, 0
      %p180 = por %p178, %p179
      %s182 = sadd.s32 %s181, 1
      %p185 = scmp.eq.s32.totalorder %s21, 1
      %p186 = scmp.ne.s32.totalorder %s181, %s183
      %p187 = scmp.eq.s32.totalorder %s21, 0
      %p188 = por %p186, %p187
      %p189 = scmp.ne.s32.totalorder %s181, %s183
      %p190 = scmp.eq.s32.totalorder %s26, 1
      %p191 = por %p189, %p190
      %p192 = scmp.ne.s32.totalorder %s183, %s184
      %p193 = scmp.eq.s32.totalorder %s26, 0
      %p194 = por %p192, %p193
      %p195 = scmp.ne.s32.totalorder %s183, %s184
      %p196 = scmp.eq.s32.totalorder %s27, 1
      %p197 = por %p195, %p196
      %p199 = scmp.ne.s32.totalorder %s184, %s198
      %p200 = scmp.eq.s32.totalorder %s27, 0
      %p201 = por %p199, %p200
      %s203 = sadd.s32 %s202, 1
      %p206 = scmp.eq.s32.totalorder %s21, 1
      %p207 = scmp.ne.s32.totalorder %s202, %s204
      %p208 = scmp.eq.s32.totalorder %s21, 0
      %p209 = por %p207, %p208
      %p210 = scmp.ne.s32.totalorder %s202, %s204
      %p211 = scmp.eq.s32.totalorder %s26, 1
      %p212 = por %p210, %p211
      %p213 = scmp.ne.s32.totalorder %s204, %s205
      %p214 = scmp.eq.s32.totalorder %s26, 0
      %p215 = por %p213, %p214
      %p216 = scmp.ne.s32.totalorder %s204, %s205
      %p217 = scmp.eq.s32.totalorder %s27, 1
      %p218 = por %p216, %p217
      %p220 = scmp.ne.s32.totalorder %s205, %s219
      %p221 = scmp.eq.s32.totalorder %s27, 0
      %p222 = por %p220, %p221
      %s224 = sadd.s32 %s223, 1
      %p227 = scmp.eq.s32.totalorder %s21, 1
      %p228 = scmp.ne.s32.totalorder %s223, %s225
      %p229 = scmp.eq.s32.totalorder %s21, 0
      %p230 = por %p228, %p229
      %p231 = scmp.ne.s32.totalorder %s223, %s225
      %p232 = scmp.eq.s32.totalorder %s26, 1
      %p233 = por %p231, %p232
      %p234 = scmp.ne.s32.totalorder %s225, %s226
      %p235 = scmp.eq.s32.totalorder %s26, 0
      %p236 = por %p234, %p235
      %p237 = scmp.ne.s32.totalorder %s225, %s226
      %p238 = scmp.eq.s32.totalorder %s27, 1
      %p239 = por %p237, %p238
      %p241 = scmp.ne.s32.totalorder %s226, %s240
      %p242 = scmp.eq.s32.totalorder %s27, 0
      %p243 = por %p241, %p242
      %s245 = sadd.s32 %s244, 1
      %p248 = scmp.eq.s32.totalorder %s21, 1
      %p249 = scmp.ne.s32.totalorder %s244, %s246
      %p250 = scmp.eq.s32.totalorder %s21, 0
      %p251 = por %p249, %p250
      %p252 = scmp.ne.s32.totalorder %s244, %s246
      %p253 = scmp.eq.s32.totalorder %s26, 1
      %p254 = por %p252, %p253
      %p255 = scmp.ne.s32.totalorder %s246, %s247
      %p256 = scmp.eq.s32.totalorder %s26, 0
      %p257 = por %p255, %p256
      %p258 = scmp.ne.s32.totalorder %s246, %s247
      %p259 = scmp.eq.s32.totalorder %s27, 1
      %p260 = por %p258, %p259
      %p262 = scmp.ne.s32.totalorder %s247, %s261
      %p263 = scmp.eq.s32.totalorder %s27, 0
      %p264 = por %p262, %p263
      %s266 = sadd.s32 %s265, 1
      %p269 = scmp.eq.s32.totalorder %s21, 1
      %p270 = scmp.ne.s32.totalorder %s265, %s267
      %p271 = scmp.eq.s32.totalorder %s21, 0
      %p272 = por %p270, %p271
      %p273 = scmp.ne.s32.totalorder %s265, %s267
      %p274 = scmp.eq.s32.totalorder %s26, 1
      %p275 = por %p273, %p274
      %p276 = scmp.ne.s32.totalorder %s267, %s268
      %p277 = scmp.eq.s32.totalorder %s26, 0
      %p278 = por %p276, %p277
      %p279 = scmp.ne.s32.totalorder %s267, %s268
      %p280 = scmp.eq.s32.totalorder %s27, 1
      %p281 = por %p279, %p280
      %p283 = scmp.ne.s32.totalorder %s268, %s282
      %p284 = scmp.eq.s32.totalorder %s27, 0
      %p285 = por %p283, %p284
      %s286 = ssub.s32 %s21, %s28
      %p287 = scmp.eq.s32.totalorder %s286, 0
      %s289 = sadd.s32 %s288, 1
      %s290 = scalar_select %p287, %s288, %s289
      %p293 = pneg %p287
      %p294 = scmp.eq.s32.totalorder %s21, 1
      %p295 = por %p293, %p294
      %p296 = scmp.ne.s32.totalorder %s288, %s291
      %p297 = scmp.eq.s32.totalorder %s21, 0
      %p298 = por %p296, %p297
      %p299 = scmp.ne.s32.totalorder %s288, %s291
      %p300 = scmp.eq.s32.totalorder %s26, 1
      %p301 = por %p299, %p300
      %p302 = scmp.ne.s32.totalorder %s291, %s292
      %p303 = scmp.eq.s32.totalorder %s26, 0
      %p304 = por %p302, %p303
      %p305 = scmp.ne.s32.totalorder %s291, %s292
      %p306 = scmp.eq.s32.totalorder %s27, 1
      %p307 = por %p305, %p306
      %p309 = scmp.ne.s32.totalorder %s292, %s308
      %p310 = scmp.eq.s32.totalorder %s27, 0
      %p311 = por %p309, %p310
      %p312 = scmp.le.s32.totalorder 1, %s21
      %p313 = scmp.lt.s32.totalorder %s21, 3
      %p314 = pnand %p312, %p313
      %p315 = pneg %p314
      // Predicated region
      $region9: #{tpu_custom_call.1} parent=5 // pred_check
        _
      $region10: #{tpu_custom_call.1} parent=5 // pred_check_branch
        %317 = sbr.rel (%p314) target = $region12
      $region11: #{tpu_custom_call.1} parent=5 // pred_region
        %s318 = ssub.s32 %s21, 1
        // Predicated region
        $region13: #{tpu_custom_call.1} parent=11 // pred_check
          %p319 = pneg %p68
        $region14: #{tpu_custom_call.1} parent=11 // pred_check_branch
          %321 = sbr.rel (%p319) target = $region16
        $region15: #{tpu_custom_call.1} parent=11 // pred_region
          _
        $region16: #{tpu_custom_call.1} parent=11 // pred_fallthru
          _
        // Predicated region
        $region17: #{tpu_custom_call.1} parent=11 // pred_check
          %p322 = pneg %p89
        $region18: #{tpu_custom_call.1} parent=11 // pred_check_branch
          %324 = sbr.rel (%p322) target = $region20
        $region19: #{tpu_custom_call.1} parent=11 // pred_region
          _
        $region20: #{tpu_custom_call.1} parent=11 // pred_fallthru
          _
        // Predicated region
        $region21: #{tpu_custom_call.1} parent=11 // pred_check
          %p325 = pneg %p110
        $region22: #{tpu_custom_call.1} parent=11 // pred_check_branch
          %327 = sbr.rel (%p325) target = $region24
        $region23: #{tpu_custom_call.1} parent=11 // pred_region
          _
        $region24: #{tpu_custom_call.1} parent=11 // pred_fallthru
          _
        // Predicated region
        $region25: #{tpu_custom_call.1} parent=11 // pred_check
          %p328 = pneg %p131
        $region26: #{tpu_custom_call.1} parent=11 // pred_check_branch
          %330 = sbr.rel (%p328) target = $region28
        $region27: #{tpu_custom_call.1} parent=11 // pred_region
          _
        $region28: #{tpu_custom_call.1} parent=11 // pred_fallthru
          _
        // Predicated region
        $region29: #{tpu_custom_call.1} parent=11 // pred_check
          %p331 = pneg %p152
        $region30: #{tpu_custom_call.1} parent=11 // pred_check_branch
          %333 = sbr.rel (%p331) target = $region32
        $region31: #{tpu_custom_call.1} parent=11 // pred_region
          _
        $region32: #{tpu_custom_call.1} parent=11 // pred_fallthru
          _
        // Predicated region
        $region33: #{tpu_custom_call.1} parent=11 // pred_check
          %p334 = pneg %p173
        $region34: #{tpu_custom_call.1} parent=11 // pred_check_branch
          %336 = sbr.rel (%p334) target = $region36
        $region35: #{tpu_custom_call.1} parent=11 // pred_region
          _
        $region36: #{tpu_custom_call.1} parent=11 // pred_fallthru
          _
        // Predicated region
        $region37: #{tpu_custom_call.1} parent=11 // pred_check
          %p337 = pneg %p194
        $region38: #{tpu_custom_call.1} parent=11 // pred_check_branch
          %339 = sbr.rel (%p337) target = $region40
        $region39: #{tpu_custom_call.1} parent=11 // pred_region
          _
        $region40: #{tpu_custom_call.1} parent=11 // pred_fallthru
          _
        // Predicated region
        $region41: #{tpu_custom_call.1} parent=11 // pred_check
          %p340 = pneg %p215
        $region42: #{tpu_custom_call.1} parent=11 // pred_check_branch
          %342 = sbr.rel (%p340) target = $region44
        $region43: #{tpu_custom_call.1} parent=11 // pred_region
          _
        $region44: #{tpu_custom_call.1} parent=11 // pred_fallthru
          _
        // Predicated region
        $region45: #{tpu_custom_call.1} parent=11 // pred_check
          %p343 = pneg %p236
        $region46: #{tpu_custom_call.1} parent=11 // pred_check_branch
          %345 = sbr.rel (%p343) target = $region48
        $region47: #{tpu_custom_call.1} parent=11 // pred_region
          _
        $region48: #{tpu_custom_call.1} parent=11 // pred_fallthru
          _
        // Predicated region
        $region49: #{tpu_custom_call.1} parent=11 // pred_check
          %p346 = pneg %p257
        $region50: #{tpu_custom_call.1} parent=11 // pred_check_branch
          %348 = sbr.rel (%p346) target = $region52
        $region51: #{tpu_custom_call.1} parent=11 // pred_region
          _
        $region52: #{tpu_custom_call.1} parent=11 // pred_fallthru
          _
        // Predicated region
        $region53: #{tpu_custom_call.1} parent=11 // pred_check
          %p349 = pneg %p278
        $region54: #{tpu_custom_call.1} parent=11 // pred_check_branch
          %351 = sbr.rel (%p349) target = $region56
        $region55: #{tpu_custom_call.1} parent=11 // pred_region
          _
        $region56: #{tpu_custom_call.1} parent=11 // pred_fallthru
          _
      $region12: #{tpu_custom_call.1} parent=5 // pred_fallthru
        _
      %p352 = scmp.lt.s32.totalorder %s21, 2
      // Predicated region
      $region57: #{tpu_custom_call.1} parent=5 // pred_check
        %p353 = pneg %p352
      $region58: #{tpu_custom_call.1} parent=5 // pred_check_branch
        %355 = sbr.rel (%p353) target = $region60
      $region59: #{tpu_custom_call.1} parent=5 // pred_region
        // Predicated region
        $region61: #{tpu_custom_call.1} parent=59 // pred_check
          %p356 = pneg %p41
        $region62: #{tpu_custom_call.1} parent=59 // pred_check_branch
          %358 = sbr.rel (%p356) target = $region64
        $region63: #{tpu_custom_call.1} parent=59 // pred_region
          %s359 = smul.u32 2, %s21
          %p360 = scmp.lt.s32.totalorder %s359, 3
          %s361 = scalar_select %p360, %s359, 3
          %s362 = smul.addr %s361, 8
          %s363 = scalar_lea.vmem %s0, %s362
          %s364 = smul.u32 2, %s21
        $region64: #{tpu_custom_call.1} parent=59 // pred_fallthru
          _
      $region60: #{tpu_custom_call.1} parent=5 // pred_fallthru
        _
      %p365 = scmp.le.s32.totalorder 1, %s21
      %p366 = scmp.lt.s32.totalorder %s21, 3
      %p367 = pnand %p365, %p366
      %p368 = pneg %p367
      // Predicated region
      $region65: #{tpu_custom_call.1} parent=5 // pred_check
        _
      $region66: #{tpu_custom_call.1} parent=5 // pred_check_branch
        %370 = sbr.rel (%p367) target = $region68
      $region67: #{tpu_custom_call.1} parent=5 // pred_region
        %s371 = ssub.s32 %s21, 1
        %s372 = smul.u32 2, %s26
        %p373 = scmp.lt.s32.totalorder %s372, 3
        %s374 = scalar_select %p373, %s372, 3
        %s375 = smul.addr %s374, 8
        %s376 = scalar_lea.vmem %s0, %s375
        %p377 = pneg %p47
        %p378 = pneg %p44
        %p379 = pneg %p68
        %p380 = pneg %p65
        %p381 = pneg %p89
        %p382 = pneg %p86
        %p383 = pneg %p110
        %p384 = pneg %p107
        %p385 = pneg %p131
        %p386 = pneg %p128
        %p387 = pneg %p152
        %p388 = pneg %p149
        %p389 = pneg %p173
        %p390 = pneg %p170
        %p391 = pneg %p194
        %p392 = pneg %p191
        %p393 = pneg %p215
        %p394 = pneg %p212
        %p395 = pneg %p236
        %p396 = pneg %p233
        %p397 = pneg %p257
        %p398 = pneg %p254
        %p399 = pneg %p278
        %p400 = pneg %p275
        %p401 = pneg %p304
        %p402 = pneg %p301
        %s403 = sand.u32 %s291, 1
        %s404 = scalar_lea.sflag [#allocation3], %s403
        %s405 = sand.u32 %s291, 1
        %s406 = smul.addr %s405, 16
        %s407 = scalar_lea.vmem [#allocation2], %s406
        %s408 = smul.u32 2, %s26
        %p409 = scmp.lt.s32.totalorder %s408, 3
        %s410 = scalar_select %p409, %s408, 3
        %s411 = smul.addr %s410, 8
        %s412 = scalar_lea.vmem %s0, %s411
        %s413 = smul.u32 2, %s26
        %s414 = smul.u32 2, %s26
        %v416 = vld [vmem:[%s412] sm:$0xff]
        %v417 = vld [vmem:[%s412 + $0x8] sm:$0xff]
        %v418 = vld [vmem:[%s1] sm:$0x1]
        %v419 = vld [vmem:[%s2] sm:$0x1]
        %vm420 = vcmask 261120
        %v421 = vsel %vm420, %v416, 0.0
        %422 = vadd.xlane.f32.xlu0 %v421
        %v423 = vpop.xlane.xlu0 %422
        %v424 = vsel %vm420, %v417, 0.0
        %425 = vadd.xlane.f32.xlu0 %v424
        %v426 = vpop.xlane.xlu0 %425
        %v427 = vrcp.pop 32.0
        %v428 = vmul.f32 %v423, %v427
        %v429 = vmul.f32 %v426, %v427
        %v430 = vsub.f32 %v416, %v428
        %v431 = vsub.f32 %v417, %v429
        %v432 = vmul.f32 %v430, %v430
        %v433 = vmul.f32 %v431, %v431
        %v434 = vsel %vm420, %v432, 0.0
        %435 = vadd.xlane.f32.xlu0 %v434
        %v436 = vpop.xlane.xlu0 %435
        %v437 = vsel %vm420, %v433, 0.0
        %438 = vadd.xlane.f32.xlu0 %v437
        %v439 = vpop.xlane.xlu0 %438
        %v440 = vmul.f32 %v436, %v427
        %v441 = vmul.f32 %v439, %v427
        %v442 = vadd.f32 %v440, 1e-05
        %v443 = vadd.f32 %v441, 1e-05
        %v444 = vrsqrt.pop %v442
        %v445 = vrsqrt.pop %v443
        %v446 = vmul.f32 %v430, %v444
        %v447 = vmul.f32 %v431, %v445
        %v449 = vlaneseq
        %v450 = vshrl.u32 %v449, 7
        %v451 = vsub.s32 0, %v450
        %v452 = vrot.slane %v418, %v451
        %v454 = vmul.f32 %v446, %v452
        %v455 = vmul.f32 %v447, %v452
        %v457 = vlaneseq
        %v458 = vshrl.u32 %v457, 7
        %v459 = vsub.s32 0, %v458
        %v460 = vrot.slane %v419, %v459
        %v462 = vadd.f32 %v454, %v460
        %v463 = vadd.f32 %v455, %v460
        %v464 = vpack.c.bf16 %v463, %v462
        %v465 = vld [vmem:[%s3] sm:$0xf]
        %v466 = vld [vmem:[%s3 + $0x4] sm:$0xf]
        %v467 = vld [vmem:[%s3 + $0x8] sm:$0xf]
        %v468 = vld [vmem:[%s3 + $0xc] sm:$0xf]
        %v473 = vunpack.c.l.b16 %v465
        %v474 = vunpack.c.l.b16 %v466
        %v475 = vunpack.c.l.b16 %v467
        %v476 = vunpack.c.l.b16 %v468
        %v477 = vpack.c.b16 %v474, %v473
        %v478 = vpack.c.b16 %v476, %v475
        %v482 = vsel %vm420, %v464, 0
        %484 = vmatprep.subr.bf16.mxu0 0
        %485 = vmatpush1.bf16.msra.mxu0 %v477
        %486 = vmatprep.subr.bf16.mxu0 0
        %487 = vmatpush1.bf16.msra.mxu0 %v478
        %488 = vmatprep.subr.bf16.mxu0 0
        %489 = vmatpush1.bf16.msra.mxu0 0
        %490 = vmatprep.subr.bf16.mxu0 0
        %491 = vmatpush1.bf16.msra.mxu0 0
        %492 = vmatprep.subr.bf16.mxu0 0
        %493 = vmatpush1.bf16.msra.mxu0 0
        %494 = vmatprep.subr.bf16.mxu0 0
        %495 = vmatpush1.bf16.msra.mxu0 0
        %496 = vmatprep.subr.bf16.mxu0 0
        %497 = vmatpush1.bf16.msra.mxu0 0
        %498 = vmatprep.subr.bf16.mxu0 0
        %499 = vmatpush1.bf16.msra.mxu0 0
        %500 = vmatprep.subr.bf16.mxu0 0
        %501 = vmatpush1.bf16.msra.mxu0 0
        %502 = vmatprep.subr.bf16.mxu0 0
        %503 = vmatpush1.bf16.msra.mxu0 0
        %504 = vmatprep.subr.bf16.mxu0 0
        %505 = vmatpush1.bf16.msra.mxu0 0
        %506 = vmatprep.subr.bf16.mxu0 0
        %507 = vmatpush1.bf16.msra.mxu0 0
        %508 = vmatprep.subr.bf16.mxu0 0
        %509 = vmatpush1.bf16.msra.mxu0 0
        %510 = vmatprep.subr.bf16.mxu0 0
        %511 = vmatpush1.bf16.msra.mxu0 0
        %512 = vmatprep.subr.bf16.mxu0 0
        %513 = vmatpush1.bf16.msra.mxu0 0
        %514 = vmatprep.subr.bf16.mxu0 0
        %515 = vmatpush1.bf16.msra.mxu0 0
        %516 = vmatprep.mubr.bf16.mxu0 0
        %517 = vmatmul.mubr.bf16.gmra.mrb[0].mxu0 %v482
        %v518 = vpop.f32.mrb[0].mxu0
        %v519 = vadd.f32 0.0, %v518
        %v520 = vpop.f32.mrb[0].mxu0
        %v521 = vpop.f32.mrb[0].mxu0
        %v522 = vadd.f32 0.0, %v521
        %v523 = vpop.f32.mrb[0].mxu0
        %524 = vdwg.mxu0
        %527 = vrot.lane.b32.xlu0 %v519, 120
        %v528 = vpop.permute.xlu0 %527
        %529 = vrot.lane.b32.xlu0 %v522, 120
        %v530 = vpop.permute.xlu0 %529
        %533 = vrot.lane.b32.xlu0 %v519, 112
        %v534 = vpop.permute.xlu0 %533
        %535 = vrot.lane.b32.xlu0 %v522, 112
        %v536 = vpop.permute.xlu0 %535
        %539 = vrot.lane.b32.xlu0 %v519, 104
        %v540 = vpop.permute.xlu0 %539
        %541 = vrot.lane.b32.xlu0 %v522, 104
        %v542 = vpop.permute.xlu0 %541
        %v545 = vpack.c.bf16 %v519, %v519
        %v546 = vpack.c.bf16 %v522, %v522
        %v547 = vpack.c.bf16 %v528, %v528
        %v548 = vpack.c.bf16 %v530, %v530
        %v549 = vpack.c.bf16 %v534, %v534
        %v550 = vpack.c.bf16 %v536, %v536
        %v551 = vpack.c.bf16 %v540, %v540
        %v552 = vpack.c.bf16 %v542, %v542
        %v553 = vlaneseq
        %v554 = vshrl.u32 %v553, 7
        %v555 = vlaneseq
        %v556 = vand.u32 %v555, 127
        %vm557 = vcmp.ge.s32.totalorder %v554, %v556
        %v558 = vsel %vm557, 0.0, -1e+30
        %560 = vrot.lane.b32.xlu0 %v545, 96
        %v561 = vpop.permute.xlu0 %560
        %vm562 = vcmask 64512
        %v564 = vsel %vm562, %v545, 0
        %v567 = vsel %vm562, %v561, 0
        %569 = vmatprep.subr.bf16.mxu0 0
        %570 = vmatpush1.bf16.xpose.msra.mxu0 %v567
        %571 = vmatprep.subr.bf16.mxu0 0
        %572 = vmatpush1.bf16.xpose.msra.mxu0 0
        %573 = vmatprep.subr.bf16.mxu0 0
        %574 = vmatpush1.bf16.xpose.msra.mxu0 0
        %575 = vmatprep.subr.bf16.mxu0 0
        %576 = vmatpush1.bf16.xpose.msra.mxu0 0
        %577 = vmatprep.subr.bf16.mxu0 0
        %578 = vmatpush1.bf16.xpose.msra.mxu0 0
        %579 = vmatprep.subr.bf16.mxu0 0
        %580 = vmatpush1.bf16.xpose.msra.mxu0 0
        %581 = vmatprep.subr.bf16.mxu0 0
        %582 = vmatpush1.bf16.xpose.msra.mxu0 0
        %583 = vmatprep.subr.bf16.mxu0 0
        %584 = vmatpush1.bf16.xpose.msra.mxu0 0
        %585 = vmatprep.subr.bf16.mxu0 0
        %586 = vmatpush1.bf16.xpose.msra.mxu0 0
        %587 = vmatprep.subr.bf16.mxu0 0
        %588 = vmatpush1.bf16.xpose.msra.mxu0 0
        %589 = vmatprep.subr.bf16.mxu0 0
        %590 = vmatpush1.bf16.xpose.msra.mxu0 0
        %591 = vmatprep.subr.bf16.mxu0 0
        %592 = vmatpush1.bf16.xpose.msra.mxu0 0
        %593 = vmatprep.subr.bf16.mxu0 0
        %594 = vmatpush1.bf16.xpose.msra.mxu0 0
        %595 = vmatprep.subr.bf16.mxu0 0
        %596 = vmatpush1.bf16.xpose.msra.mxu0 0
        %597 = vmatprep.subr.bf16.mxu0 0
        %598 = vmatpush1.bf16.xpose.msra.mxu0 0
        %599 = vmatprep.subr.bf16.mxu0 0
        %600 = vmatpush1.bf16.xpose.msra.mxu0 0
        %601 = vmatprep.mubr.bf16.mxu0 0
        %602 = vmatmul.mubr.bf16.gmra.mrb[0].mxu0 %v564
        %v603 = vpop.f32.mrb[0].mxu0
        %v604 = vadd.f32 %v558, %v603
        %v605 = vpop.f32.mrb[0].mxu0
        %v606 = vpop.f32.mrb[0].mxu0
        %v607 = vpop.f32.mrb[0].mxu0
        %608 = vdwg.mxu0
        %610 = vrot.lane.b32.xlu0 %v546, 96
        %v611 = vpop.permute.xlu0 %610
        %v613 = vsel %vm562, %v546, 0
        %v616 = vsel %vm562, %v611, 0
        %618 = vmatprep.subr.bf16.mxu0 0
        %619 = vmatpush1.bf16.xpose.msra.mxu0 %v616
        %620 = vmatprep.subr.bf16.mxu0 0
        %621 = vmatpush1.bf16.xpose.msra.mxu0 0
        %622 = vmatprep.subr.bf16.mxu0 0
        %623 = vmatpush1.bf16.xpose.msra.mxu0 0
        %624 = vmatprep.subr.bf16.mxu0 0
        %625 = vmatpush1.bf16.xpose.msra.mxu0 0
        %626 = vmatprep.subr.bf16.mxu0 0
        %627 = vmatpush1.bf16.xpose.msra.mxu0 0
        %628 = vmatprep.subr.bf16.mxu0 0
        %629 = vmatpush1.bf16.xpose.msra.mxu0 0
        %630 = vmatprep.subr.bf16.mxu0 0
        %631 = vmatpush1.bf16.xpose.msra.mxu0 0
        %632 = vmatprep.subr.bf16.mxu0 0
        %633 = vmatpush1.bf16.xpose.msra.mxu0 0
        %634 = vmatprep.subr.bf16.mxu0 0
        %635 = vmatpush1.bf16.xpose.msra.mxu0 0
        %636 = vmatprep.subr.bf16.mxu0 0
        %637 = vmatpush1.bf16.xpose.msra.mxu0 0
        %638 = vmatprep.subr.bf16.mxu0 0
        %639 = vmatpush1.bf16.xpose.msra.mxu0 0
        %640 = vmatprep.subr.bf16.mxu0 0
        %641 = vmatpush1.bf16.xpose.msra.mxu0 0
        %642 = vmatprep.subr.bf16.mxu0 0
        %643 = vmatpush1.bf16.xpose.msra.mxu0 0
        %644 = vmatprep.subr.bf16.mxu0 0
        %645 = vmatpush1.bf16.xpose.msra.mxu0 0
        %646 = vmatprep.subr.bf16.mxu0 0
        %647 = vmatpush1.bf16.xpose.msra.mxu0 0
        %648 = vmatprep.subr.bf16.mxu0 0
        %649 = vmatpush1.bf16.xpose.msra.mxu0 0
        %650 = vmatprep.mubr.bf16.mxu0 0
        %651 = vmatmul.mubr.bf16.gmra.mrb[0].mxu0 %v613
        %v652 = vpop.f32.mrb[0].mxu0
        %v653 = vadd.f32 %v558, %v652
        %v654 = vpop.f32.mrb[0].mxu0
        %v655 = vpop.f32.mrb[0].mxu0
        %v656 = vpop.f32.mrb[0].mxu0
        %657 = vdwg.mxu0
        %659 = vrot.lane.b32.xlu0 %v547, 96
        %v660 = vpop.permute.xlu0 %659
        %v662 = vsel %vm562, %v547, 0
        %v665 = vsel %vm562, %v660, 0
        %667 = vmatprep.subr.bf16.mxu0 0
        %668 = vmatpush1.bf16.xpose.msra.mxu0 %v665
        %669 = vmatprep.subr.bf16.mxu0 0
        %670 = vmatpush1.bf16.xpose.msra.mxu0 0
        %671 = vmatprep.subr.bf16.mxu0 0
        %672 = vmatpush1.bf16.xpose.msra.mxu0 0
        %673 = vmatprep.subr.bf16.mxu0 0
        %674 = vmatpush1.bf16.xpose.msra.mxu0 0
        %675 = vmatprep.subr.bf16.mxu0 0
        %676 = vmatpush1.bf16.xpose.msra.mxu0 0
        %677 = vmatprep.subr.bf16.mxu0 0
        %678 = vmatpush1.bf16.xpose.msra.mxu0 0
        %679 = vmatprep.subr.bf16.mxu0 0
        %680 = vmatpush1.bf16.xpose.msra.mxu0 0
        %681 = vmatprep.subr.bf16.mxu0 0
        %682 = vmatpush1.bf16.xpose.msra.mxu0 0
        %683 = vmatprep.subr.bf16.mxu0 0
        %684 = vmatpush1.bf16.xpose.msra.mxu0 0
        %685 = vmatprep.subr.bf16.mxu0 0
        %686 = vmatpush1.bf16.xpose.msra.mxu0 0
        %687 = vmatprep.subr.bf16.mxu0 0
        %688 = vmatpush1.bf16.xpose.msra.mxu0 0
        %689 = vmatprep.subr.bf16.mxu0 0
        %690 = vmatpush1.bf16.xpose.msra.mxu0 0
        %691 = vmatprep.subr.bf16.mxu0 0
        %692 = vmatpush1.bf16.xpose.msra.mxu0 0
        %693 = vmatprep.subr.bf16.mxu0 0
        %694 = vmatpush1.bf16.xpose.msra.mxu0 0
        %695 = vmatprep.subr.bf16.mxu0 0
        %696 = vmatpush1.bf16.xpose.msra.mxu0 0
        %697 = vmatprep.subr.bf16.mxu0 0
        %698 = vmatpush1.bf16.xpose.msra.mxu0 0
        %699 = vmatprep.mubr.bf16.mxu0 0
        %700 = vmatmul.mubr.bf16.gmra.mrb[0].mxu0 %v662
        %v701 = vpop.f32.mrb[0].mxu0
        %v702 = vadd.f32 %v558, %v701
        %v703 = vpop.f32.mrb[0].mxu0
        %v704 = vpop.f32.mrb[0].mxu0
        %v705 = vpop.f32.mrb[0].mxu0
        %706 = vdwg.mxu0
        %708 = vrot.lane.b32.xlu0 %v548, 96
        %v709 = vpop.permute.xlu0 %708
        %v711 = vsel %vm562, %v548, 0
        %v714 = vsel %vm562, %v709, 0
        %716 = vmatprep.subr.bf16.mxu0 0
        %717 = vmatpush1.bf16.xpose.msra.mxu0 %v714
        %718 = vmatprep.subr.bf16.mxu0 0
        %719 = vmatpush1.bf16.xpose.msra.mxu0 0
        %720 = vmatprep.subr.bf16.mxu0 0
        %721 = vmatpush1.bf16.xpose.msra.mxu0 0
        %722 = vmatprep.subr.bf16.mxu0 0
        %723 = vmatpush1.bf16.xpose.msra.mxu0 0
        %724 = vmatprep.subr.bf16.mxu0 0
        %725 = vmatpush1.bf16.xpose.msra.mxu0 0
        %726 = vmatprep.subr.bf16.mxu0 0
        %727 = vmatpush1.bf16.xpose.msra.mxu0 0
        %728 = vmatprep.subr.bf16.mxu0 0
        %729 = vmatpush1.bf16.xpose.msra.mxu0 0
        %730 = vmatprep.subr.bf16.mxu0 0
        %731 = vmatpush1.bf16.xpose.msra.mxu0 0
        %732 = vmatprep.subr.bf16.mxu0 0
        %733 = vmatpush1.bf16.xpose.msra.mxu0 0
        %734 = vmatprep.subr.bf16.mxu0 0
        %735 = vmatpush1.bf16.xpose.msra.mxu0 0
        %736 = vmatprep.subr.bf16.mxu0 0
        %737 = vmatpush1.bf16.xpose.msra.mxu0 0
        %738 = vmatprep.subr.bf16.mxu0 0
        %739 = vmatpush1.bf16.xpose.msra.mxu0 0
        %740 = vmatprep.subr.bf16.mxu0 0
        %741 = vmatpush1.bf16.xpose.msra.mxu0 0
        %742 = vmatprep.subr.bf16.mxu0 0
        %743 = vmatpush1.bf16.xpose.msra.mxu0 0
        %744 = vmatprep.subr.bf16.mxu0 0
        %745 = vmatpush1.bf16.xpose.msra.mxu0 0
        %746 = vmatprep.subr.bf16.mxu0 0
        %747 = vmatpush1.bf16.xpose.msra.mxu0 0
        %748 = vmatprep.mubr.bf16.mxu0 0
        %749 = vmatmul.mubr.bf16.gmra.mrb[0].mxu0 %v711
        %v750 = vpop.f32.mrb[0].mxu0
        %v751 = vadd.f32 %v558, %v750
        %v752 = vpop.f32.mrb[0].mxu0
        %v753 = vpop.f32.mrb[0].mxu0
        %v754 = vpop.f32.mrb[0].mxu0
        %755 = vdwg.mxu0
        %757 = vrot.lane.b32.xlu0 %v549, 96
        %v758 = vpop.permute.xlu0 %757
        %v760 = vsel %vm562, %v549, 0
        %v763 = vsel %vm562, %v758, 0
        %765 = vmatprep.subr.bf16.mxu0 0
        %766 = vmatpush1.bf16.xpose.msra.mxu0 %v763
        %767 = vmatprep.subr.bf16.mxu0 0
        %768 = vmatpush1.bf16.xpose.msra.mxu0 0
        %769 = vmatprep.subr.bf16.mxu0 0
        %770 = vmatpush1.bf16.xpose.msra.mxu0 0
        %771 = vmatprep.subr.bf16.mxu0 0
        %772 = vmatpush1.bf16.xpose.msra.mxu0 0
        %773 = vmatprep.subr.bf16.mxu0 0
        %774 = vmatpush1.bf16.xpose.msra.mxu0 0
        %775 = vmatprep.subr.bf16.mxu0 0
        %776 = vmatpush1.bf16.xpose.msra.mxu0 0
        %777 = vmatprep.subr.bf16.mxu0 0
        %778 = vmatpush1.bf16.xpose.msra.mxu0 0
        %779 = vmatprep.subr.bf16.mxu0 0
        %780 = vmatpush1.bf16.xpose.msra.mxu0 0
        %781 = vmatprep.subr.bf16.mxu0 0
        %782 = vmatpush1.bf16.xpose.msra.mxu0 0
        %783 = vmatprep.subr.bf16.mxu0 0
        %784 = vmatpush1.bf16.xpose.msra.mxu0 0
        %785 = vmatprep.subr.bf16.mxu0 0
        %786 = vmatpush1.bf16.xpose.msra.mxu0 0
        %787 = vmatprep.subr.bf16.mxu0 0
        %788 = vmatpush1.bf16.xpose.msra.mxu0 0
        %789 = vmatprep.subr.bf16.mxu0 0
        %790 = vmatpush1.bf16.xpose.msra.mxu0 0
        %791 = vmatprep.subr.bf16.mxu0 0
        %792 = vmatpush1.bf16.xpose.msra.mxu0 0
        %793 = vmatprep.subr.bf16.mxu0 0
        %794 = vmatpush1.bf16.xpose.msra.mxu0 0
        %795 = vmatprep.subr.bf16.mxu0 0
        %796 = vmatpush1.bf16.xpose.msra.mxu0 0
        %797 = vmatprep.mubr.bf16.mxu0 0
        %798 = vmatmul.mubr.bf16.gmra.mrb[0].mxu0 %v760
        %v799 = vpop.f32.mrb[0].mxu0
        %v800 = vadd.f32 %v558, %v799
        %v801 = vpop.f32.mrb[0].mxu0
        %v802 = vpop.f32.mrb[0].mxu0
        %v803 = vpop.f32.mrb[0].mxu0
        %804 = vdwg.mxu0
        %806 = vrot.lane.b32.xlu0 %v550, 96
        %v807 = vpop.permute.xlu0 %806
        %v809 = vsel %vm562, %v550, 0
        %v812 = vsel %vm562, %v807, 0
        %814 = vmatprep.subr.bf16.mxu0 0
        %815 = vmatpush1.bf16.xpose.msra.mxu0 %v812
        %816 = vmatprep.subr.bf16.mxu0 0
        %817 = vmatpush1.bf16.xpose.msra.mxu0 0
        %818 = vmatprep.subr.bf16.mxu0 0
        %819 = vmatpush1.bf16.xpose.msra.mxu0 0
        %820 = vmatprep.subr.bf16.mxu0 0
        %821 = vmatpush1.bf16.xpose.msra.mxu0 0
        %822 = vmatprep.subr.bf16.mxu0 0
        %823 = vmatpush1.bf16.xpose.msra.mxu0 0
        %824 = vmatprep.subr.bf16.mxu0 0
        %825 = vmatpush1.bf16.xpose.msra.mxu0 0
        %826 = vmatprep.subr.bf16.mxu0 0
        %827 = vmatpush1.bf16.xpose.msra.mxu0 0
        %828 = vmatprep.subr.bf16.mxu0 0
        %829 = vmatpush1.bf16.xpose.msra.mxu0 0
        %830 = vmatprep.subr.bf16.mxu0 0
        %831 = vmatpush1.bf16.xpose.msra.mxu0 0
        %832 = vmatprep.subr.bf16.mxu0 0
        %833 = vmatpush1.bf16.xpose.msra.mxu0 0
        %834 = vmatprep.subr.bf16.mxu0 0
        %835 = vmatpush1.bf16.xpose.msra.mxu0 0
        %836 = vmatprep.subr.bf16.mxu0 0
        %837 = vmatpush1.bf16.xpose.msra.mxu0 0
        %838 = vmatprep.subr.bf16.mxu0 0
        %839 = vmatpush1.bf16.xpose.msra.mxu0 0
        %840 = vmatprep.subr.bf16.mxu0 0
        %841 = vmatpush1.bf16.xpose.msra.mxu0 0
        %842 = vmatprep.subr.bf16.mxu0 0
        %843 = vmatpush1.bf16.xpose.msra.mxu0 0
        %844 = vmatprep.subr.bf16.mxu0 0
        %845 = vmatpush1.bf16.xpose.msra.mxu0 0
        %846 = vmatprep.mubr.bf16.mxu0 0
        %847 = vmatmul.mubr.bf16.gmra.mrb[0].mxu0 %v809
        %v848 = vpop.f32.mrb[0].mxu0
        %v849 = vadd.f32 %v558, %v848
        %v850 = vpop.f32.mrb[0].mxu0
        %v851 = vpop.f32.mrb[0].mxu0
        %v852 = vpop.f32.mrb[0].mxu0
        %853 = vdwg.mxu0
        %855 = vrot.lane.b32.xlu0 %v551, 96
        %v856 = vpop.permute.xlu0 %855
        %v858 = vsel %vm562, %v551, 0
        %v861 = vsel %vm562, %v856, 0
        %863 = vmatprep.subr.bf16.mxu0 0
        %864 = vmatpush1.bf16.xpose.msra.mxu0 %v861
        %865 = vmatprep.subr.bf16.mxu0 0
        %866 = vmatpush1.bf16.xpose.msra.mxu0 0
        %867 = vmatprep.subr.bf16.mxu0 0
        %868 = vmatpush1.bf16.xpose.msra.mxu0 0
        %869 = vmatprep.subr.bf16.mxu0 0
        %870 = vmatpush1.bf16.xpose.msra.mxu0 0
        %871 = vmatprep.subr.bf16.mxu0 0
        %872 = vmatpush1.bf16.xpose.msra.mxu0 0
        %873 = vmatprep.subr.bf16.mxu0 0
        %874 = vmatpush1.bf16.xpose.msra.mxu0 0
        %875 = vmatprep.subr.bf16.mxu0 0
        %876 = vmatpush1.bf16.xpose.msra.mxu0 0
        %877 = vmatprep.subr.bf16.mxu0 0
        %878 = vmatpush1.bf16.xpose.msra.mxu0 0
        %879 = vmatprep.subr.bf16.mxu0 0
        %880 = vmatpush1.bf16.xpose.msra.mxu0 0
        %881 = vmatprep.subr.bf16.mxu0 0
        %882 = vmatpush1.bf16.xpose.msra.mxu0 0
        %883 = vmatprep.subr.bf16.mxu0 0
        %884 = vmatpush1.bf16.xpose.msra.mxu0 0
        %885 = vmatprep.subr.bf16.mxu0 0
        %886 = vmatpush1.bf16.xpose.msra.mxu0 0
        %887 = vmatprep.subr.bf16.mxu0 0
        %888 = vmatpush1.bf16.xpose.msra.mxu0 0
        %889 = vmatprep.subr.bf16.mxu0 0
        %890 = vmatpush1.bf16.xpose.msra.mxu0 0
        %891 = vmatprep.subr.bf16.mxu0 0
        %892 = vmatpush1.bf16.xpose.msra.mxu0 0
        %893 = vmatprep.subr.bf16.mxu0 0
        %894 = vmatpush1.bf16.xpose.msra.mxu0 0
        %895 = vmatprep.mubr.bf16.mxu0 0
        %896 = vmatmul.mubr.bf16.gmra.mrb[0].mxu0 %v858
        %v897 = vpop.f32.mrb[0].mxu0
        %v898 = vadd.f32 %v558, %v897
        %v899 = vpop.f32.mrb[0].mxu0
        %v900 = vpop.f32.mrb[0].mxu0
        %v901 = vpop.f32.mrb[0].mxu0
        %902 = vdwg.mxu0
        %904 = vrot.lane.b32.xlu0 %v552, 96
        %v905 = vpop.permute.xlu0 %904
        %v907 = vsel %vm562, %v552, 0
        %v910 = vsel %vm562, %v905, 0
        %912 = vmatprep.subr.bf16.mxu0 0
        %913 = vmatpush1.bf16.xpose.msra.mxu0 %v910
        %914 = vmatprep.subr.bf16.mxu0 0
        %915 = vmatpush1.bf16.xpose.msra.mxu0 0
        %916 = vmatprep.subr.bf16.mxu0 0
        %917 = vmatpush1.bf16.xpose.msra.mxu0 0
        %918 = vmatprep.subr.bf16.mxu0 0
        %919 = vmatpush1.bf16.xpose.msra.mxu0 0
        %920 = vmatprep.subr.bf16.mxu0 0
        %921 = vmatpush1.bf16.xpose.msra.mxu0 0
        %922 = vmatprep.subr.bf16.mxu0 0
        %923 = vmatpush1.bf16.xpose.msra.mxu0 0
        %924 = vmatprep.subr.bf16.mxu0 0
        %925 = vmatpush1.bf16.xpose.msra.mxu0 0
        %926 = vmatprep.subr.bf16.mxu0 0
        %927 = vmatpush1.bf16.xpose.msra.mxu0 0
        %928 = vmatprep.subr.bf16.mxu0 0
        %929 = vmatpush1.bf16.xpose.msra.mxu0 0
        %930 = vmatprep.subr.bf16.mxu0 0
        %931 = vmatpush1.bf16.xpose.msra.mxu0 0
        %932 = vmatprep.subr.bf16.mxu0 0
        %933 = vmatpush1.bf16.xpose.msra.mxu0 0
        %934 = vmatprep.subr.bf16.mxu0 0
        %935 = vmatpush1.bf16.xpose.msra.mxu0 0
        %936 = vmatprep.subr.bf16.mxu0 0
        %937 = vmatpush1.bf16.xpose.msra.mxu0 0
        %938 = vmatprep.subr.bf16.mxu0 0
        %939 = vmatpush1.bf16.xpose.msra.mxu0 0
        %940 = vmatprep.subr.bf16.mxu0 0
        %941 = vmatpush1.bf16.xpose.msra.mxu0 0
        %942 = vmatprep.subr.bf16.mxu0 0
        %943 = vmatpush1.bf16.xpose.msra.mxu0 0
        %944 = vmatprep.mubr.bf16.mxu0 0
        %945 = vmatmul.mubr.bf16.gmra.mrb[0].mxu0 %v907
        %v946 = vpop.f32.mrb[0].mxu0
        %v947 = vadd.f32 %v558, %v946
        %v948 = vpop.f32.mrb[0].mxu0
        %v949 = vpop.f32.mrb[0].mxu0
        %v950 = vpop.f32.mrb[0].mxu0
        %951 = vdwg.mxu0
        %v952 = vsel %vm562, %v604, -inf
        %953 = vmax.xlane.f32.xlu0 %v952
        %v954 = vpop.xlane.xlu0 %953
        %v955 = vsel %vm562, %v653, -inf
        %956 = vmax.xlane.f32.xlu0 %v955
        %v957 = vpop.xlane.xlu0 %956
        %v958 = vsel %vm562, %v702, -inf
        %959 = vmax.xlane.f32.xlu0 %v958
        %v960 = vpop.xlane.xlu0 %959
        %v961 = vsel %vm562, %v751, -inf
        %962 = vmax.xlane.f32.xlu0 %v961
        %v963 = vpop.xlane.xlu0 %962
        %v964 = vsel %vm562, %v800, -inf
        %965 = vmax.xlane.f32.xlu0 %v964
        %v966 = vpop.xlane.xlu0 %965
        %v967 = vsel %vm562, %v849, -inf
        %968 = vmax.xlane.f32.xlu0 %v967
        %v969 = vpop.xlane.xlu0 %968
        %v970 = vsel %vm562, %v898, -inf
        %971 = vmax.xlane.f32.xlu0 %v970
        %v972 = vpop.xlane.xlu0 %971
        %v973 = vsel %vm562, %v947, -inf
        %974 = vmax.xlane.f32.xlu0 %v973
        %v975 = vpop.xlane.xlu0 %974
        %v976 = vsub.f32 %v604, %v954
        %v977 = vsub.f32 %v653, %v957
        %v978 = vsub.f32 %v702, %v960
        %v979 = vsub.f32 %v751, %v963
        %v980 = vsub.f32 %v800, %v966
        %v981 = vsub.f32 %v849, %v969
        %v982 = vsub.f32 %v898, %v972
        %v983 = vsub.f32 %v947, %v975
        %v984 = vmul.f32 %v976, 1.442695
        %v985 = vpow.pop %v984
        %v986 = vmul.f32 %v977, 1.442695
        %v987 = vpow.pop %v986
        %v988 = vmul.f32 %v978, 1.442695
        %v989 = vpow.pop %v988
        %v990 = vmul.f32 %v979, 1.442695
        %v991 = vpow.pop %v990
        %v992 = vmul.f32 %v980, 1.442695
        %v993 = vpow.pop %v992
        %v994 = vmul.f32 %v981, 1.442695
        %v995 = vpow.pop %v994
        %v996 = vmul.f32 %v982, 1.442695
        %v997 = vpow.pop %v996
        %v998 = vmul.f32 %v983, 1.442695
        %v999 = vpow.pop %v998
        %v1000 = vsel %vm562, %v985, 0.0
        %1001 = vadd.xlane.f32.xlu0 %v1000
        %v1002 = vpop.xlane.xlu0 %1001
        %v1003 = vsel %vm562, %v987, 0.0
        %1004 = vadd.xlane.f32.xlu0 %v1003
        %v1005 = vpop.xlane.xlu0 %1004
        %v1006 = vsel %vm562, %v989, 0.0
        %1007 = vadd.xlane.f32.xlu0 %v1006
        %v1008 = vpop.xlane.xlu0 %1007
        %v1009 = vsel %vm562, %v991, 0.0
        %1010 = vadd.xlane.f32.xlu0 %v1009
        %v1011 = vpop.xlane.xlu0 %1010
        %v1012 = vsel %vm562, %v993, 0.0
        %1013 = vadd.xlane.f32.xlu0 %v1012
        %v1014 = vpop.xlane.xlu0 %1013
        %v1015 = vsel %vm562, %v995, 0.0
        %1016 = vadd.xlane.f32.xlu0 %v1015
        %v1017 = vpop.xlane.xlu0 %1016
        %v1018 = vsel %vm562, %v997, 0.0
        %1019 = vadd.xlane.f32.xlu0 %v1018
        %v1020 = vpop.xlane.xlu0 %1019
        %v1021 = vsel %vm562, %v999, 0.0
        %1022 = vadd.xlane.f32.xlu0 %v1021
        %v1023 = vpop.xlane.xlu0 %1022
        %v1024 = vpack.c.bf16 %v985, %v985
        %v1025 = vpack.c.bf16 %v987, %v987
        %v1026 = vpack.c.bf16 %v989, %v989
        %v1027 = vpack.c.bf16 %v991, %v991
        %v1028 = vpack.c.bf16 %v993, %v993
        %v1029 = vpack.c.bf16 %v995, %v995
        %v1030 = vpack.c.bf16 %v997, %v997
        %v1031 = vpack.c.bf16 %v999, %v999
        %1032 = vrot.lane.b32.xlu0 %v545, 64
        %v1033 = vpop.permute.xlu0 %1032
        %v1035 = vsel %vm562, %v1024, 0
        %vm1037 = vcmask 1043456
        %v1039 = vsel %vm1037, %v1033, 0
        %1041 = vmatprep.subr.bf16.mxu0 0
        %1042 = vmatpush1.bf16.msra.mxu0 %v1039
        %1043 = vmatprep.subr.bf16.mxu0 0
        %1044 = vmatpush1.bf16.msra.mxu0 0
        %1045 = vmatprep.subr.bf16.mxu0 0
        %1046 = vmatpush1.bf16.msra.mxu0 0
        %1047 = vmatprep.subr.bf16.mxu0 0
        %1048 = vmatpush1.bf16.msra.mxu0 0
        %1049 = vmatprep.subr.bf16.mxu0 0
        %1050 = vmatpush1.bf16.msra.mxu0 0
        %1051 = vmatprep.subr.bf16.mxu0 0
        %1052 = vmatpush1.bf16.msra.mxu0 0
        %1053 = vmatprep.subr.bf16.mxu0 0
        %1054 = vmatpush1.bf16.msra.mxu0 0
        %1055 = vmatprep.subr.bf16.mxu0 0
        %1056 = vmatpush1.bf16.msra.mxu0 0
        %1057 = vmatprep.subr.bf16.mxu0 0
        %1058 = vmatpush1.bf16.msra.mxu0 0
        %1059 = vmatprep.subr.bf16.mxu0 0
        %1060 = vmatpush1.bf16.msra.mxu0 0
        %1061 = vmatprep.subr.bf16.mxu0 0
        %1062 = vmatpush1.bf16.msra.mxu0 0
        %1063 = vmatprep.subr.bf16.mxu0 0
        %1064 = vmatpush1.bf16.msra.mxu0 0
        %1065 = vmatprep.subr.bf16.mxu0 0
        %1066 = vmatpush1.bf16.msra.mxu0 0
        %1067 = vmatprep.subr.bf16.mxu0 0
        %1068 = vmatpush1.bf16.msra.mxu0 0
        %1069 = vmatprep.subr.bf16.mxu0 0
        %1070 = vmatpush1.bf16.msra.mxu0 0
        %1071 = vmatprep.subr.bf16.mxu0 0
        %1072 = vmatpush1.bf16.msra.mxu0 0
        %1073 = vmatprep.mubr.bf16.mxu0 0
        %1074 = vmatmul.mubr.bf16.gmra.mrb[0].mxu0 %v1035
        %v1075 = vpop.f32.mrb[0].mxu0
        %v1076 = vadd.f32 0.0, %v1075
        %v1077 = vpop.f32.mrb[0].mxu0
        %v1078 = vpop.f32.mrb[0].mxu0
        %v1079 = vpop.f32.mrb[0].mxu0
        %1080 = vdwg.mxu0
        %1081 = vrot.lane.b32.xlu0 %v546, 64
        %v1082 = vpop.permute.xlu0 %1081
        %v1084 = vsel %vm562, %v1025, 0
        %v1087 = vsel %vm1037, %v1082, 0
        %1089 = vmatprep.subr.bf16.mxu0 0
        %1090 = vmatpush1.bf16.msra.mxu0 %v1087
        %1091 = vmatprep.subr.bf16.mxu0 0
        %1092 = vmatpush1.bf16.msra.mxu0 0
        %1093 = vmatprep.subr.bf16.mxu0 0
        %1094 = vmatpush1.bf16.msra.mxu0 0
        %1095 = vmatprep.subr.bf16.mxu0 0
        %1096 = vmatpush1.bf16.msra.mxu0 0
        %1097 = vmatprep.subr.bf16.mxu0 0
        %1098 = vmatpush1.bf16.msra.mxu0 0
        %1099 = vmatprep.subr.bf16.mxu0 0
        %1100 = vmatpush1.bf16.msra.mxu0 0
        %1101 = vmatprep.subr.bf16.mxu0 0
        %1102 = vmatpush1.bf16.msra.mxu0 0
        %1103 = vmatprep.subr.bf16.mxu0 0
        %1104 = vmatpush1.bf16.msra.mxu0 0
        %1105 = vmatprep.subr.bf16.mxu0 0
        %1106 = vmatpush1.bf16.msra.mxu0 0
        %1107 = vmatprep.subr.bf16.mxu0 0
        %1108 = vmatpush1.bf16.msra.mxu0 0
        %1109 = vmatprep.subr.bf16.mxu0 0
        %1110 = vmatpush1.bf16.msra.mxu0 0
        %1111 = vmatprep.subr.bf16.mxu0 0
        %1112 = vmatpush1.bf16.msra.mxu0 0
        %1113 = vmatprep.subr.bf16.mxu0 0
        %1114 = vmatpush1.bf16.msra.mxu0 0
        %1115 = vmatprep.subr.bf16.mxu0 0
        %1116 = vmatpush1.bf16.msra.mxu0 0
        %1117 = vmatprep.subr.bf16.mxu0 0
        %1118 = vmatpush1.bf16.msra.mxu0 0
        %1119 = vmatprep.subr.bf16.mxu0 0
        %1120 = vmatpush1.bf16.msra.mxu0 0
        %1121 = vmatprep.mubr.bf16.mxu0 0
        %1122 = vmatmul.mubr.bf16.gmra.mrb[0].mxu0 %v1084
        %v1123 = vpop.f32.mrb[0].mxu0
        %v1124 = vadd.f32 0.0, %v1123
        %v1125 = vpop.f32.mrb[0].mxu0
        %v1126 = vpop.f32.mrb[0].mxu0
        %v1127 = vpop.f32.mrb[0].mxu0
        %1128 = vdwg.mxu0
        %1129 = vrot.lane.b32.xlu0 %v547, 64
        %v1130 = vpop.permute.xlu0 %1129
        %v1132 = vsel %vm562, %v1026, 0
        %v1135 = vsel %vm1037, %v1130, 0
        %1137 = vmatprep.subr.bf16.mxu0 0
        %1138 = vmatpush1.bf16.msra.mxu0 %v1135
        %1139 = vmatprep.subr.bf16.mxu0 0
        %1140 = vmatpush1.bf16.msra.mxu0 0
        %1141 = vmatprep.subr.bf16.mxu0 0
        %1142 = vmatpush1.bf16.msra.mxu0 0
        %1143 = vmatprep.subr.bf16.mxu0 0
        %1144 = vmatpush1.bf16.msra.mxu0 0
        %1145 = vmatprep.subr.bf16.mxu0 0
        %1146 = vmatpush1.bf16.msra.mxu0 0
        %1147 = vmatprep.subr.bf16.mxu0 0
        %1148 = vmatpush1.bf16.msra.mxu0 0
        %1149 = vmatprep.subr.bf16.mxu0 0
        %1150 = vmatpush1.bf16.msra.mxu0 0
        %1151 = vmatprep.subr.bf16.mxu0 0
        %1152 = vmatpush1.bf16.msra.mxu0 0
        %1153 = vmatprep.subr.bf16.mxu0 0
        %1154 = vmatpush1.bf16.msra.mxu0 0
        %1155 = vmatprep.subr.bf16.mxu0 0
        %1156 = vmatpush1.bf16.msra.mxu0 0
        %1157 = vmatprep.subr.bf16.mxu0 0
        %1158 = vmatpush1.bf16.msra.mxu0 0
        %1159 = vmatprep.subr.bf16.mxu0 0
        %1160 = vmatpush1.bf16.msra.mxu0 0
        %1161 = vmatprep.subr.bf16.mxu0 0
        %1162 = vmatpush1.bf16.msra.mxu0 0
        %1163 = vmatprep.subr.bf16.mxu0 0
        %1164 = vmatpush1.bf16.msra.mxu0 0
        %1165 = vmatprep.subr.bf16.mxu0 0
        %1166 = vmatpush1.bf16.msra.mxu0 0
        %1167 = vmatprep.subr.bf16.mxu0 0
        %1168 = vmatpush1.bf16.msra.mxu0 0
        %1169 = vmatprep.mubr.bf16.mxu0 0
        %1170 = vmatmul.mubr.bf16.gmra.mrb[0].mxu0 %v1132
        %v1171 = vpop.f32.mrb[0].mxu0
        %v1172 = vadd.f32 0.0, %v1171
        %v1173 = vpop.f32.mrb[0].mxu0
        %v1174 = vpop.f32.mrb[0].mxu0
        %v1175 = vpop.f32.mrb[0].mxu0
        %1176 = vdwg.mxu0
        %1177 = vrot.lane.b32.xlu0 %v548, 64
        %v1178 = vpop.permute.xlu0 %1177
        %v1180 = vsel %vm562, %v1027, 0
        %v1183 = vsel %vm1037, %v1178, 0
        %1185 = vmatprep.subr.bf16.mxu0 0
        %1186 = vmatpush1.bf16.msra.mxu0 %v1183
        %1187 = vmatprep.subr.bf16.mxu0 0
        %1188 = vmatpush1.bf16.msra.mxu0 0
        %1189 = vmatprep.subr.bf16.mxu0 0
        %1190 = vmatpush1.bf16.msra.mxu0 0
        %1191 = vmatprep.subr.bf16.mxu0 0
        %1192 = vmatpush1.bf16.msra.mxu0 0
        %1193 = vmatprep.subr.bf16.mxu0 0
        %1194 = vmatpush1.bf16.msra.mxu0 0
        %1195 = vmatprep.subr.bf16.mxu0 0
        %1196 = vmatpush1.bf16.msra.mxu0 0
        %1197 = vmatprep.subr.bf16.mxu0 0
        %1198 = vmatpush1.bf16.msra.mxu0 0
        %1199 = vmatprep.subr.bf16.mxu0 0
        %1200 = vmatpush1.bf16.msra.mxu0 0
        %1201 = vmatprep.subr.bf16.mxu0 0
        %1202 = vmatpush1.bf16.msra.mxu0 0
        %1203 = vmatprep.subr.bf16.mxu0 0
        %1204 = vmatpush1.bf16.msra.mxu0 0
        %1205 = vmatprep.subr.bf16.mxu0 0
        %1206 = vmatpush1.bf16.msra.mxu0 0
        %1207 = vmatprep.subr.bf16.mxu0 0
        %1208 = vmatpush1.bf16.msra.mxu0 0
        %1209 = vmatprep.subr.bf16.mxu0 0
        %1210 = vmatpush1.bf16.msra.mxu0 0
        %1211 = vmatprep.subr.bf16.mxu0 0
        %1212 = vmatpush1.bf16.msra.mxu0 0
        %1213 = vmatprep.subr.bf16.mxu0 0
        %1214 = vmatpush1.bf16.msra.mxu0 0
        %1215 = vmatprep.subr.bf16.mxu0 0
        %1216 = vmatpush1.bf16.msra.mxu0 0
        %1217 = vmatprep.mubr.bf16.mxu0 0
        %1218 = vmatmul.mubr.bf16.gmra.mrb[0].mxu0 %v1180
        %v1219 = vpop.f32.mrb[0].mxu0
        %v1220 = vadd.f32 0.0, %v1219
        %v1221 = vpop.f32.mrb[0].mxu0
        %v1222 = vpop.f32.mrb[0].mxu0
        %v1223 = vpop.f32.mrb[0].mxu0
        %1224 = vdwg.mxu0
        %1225 = vrot.lane.b32.xlu0 %v549, 64
        %v1226 = vpop.permute.xlu0 %1225
        %v1228 = vsel %vm562, %v1028, 0
        %v1231 = vsel %vm1037, %v1226, 0
        %1233 = vmatprep.subr.bf16.mxu0 0
        %1234 = vmatpush1.bf16.msra.mxu0 %v1231
        %1235 = vmatprep.subr.bf16.mxu0 0
        %1236 = vmatpush1.bf16.msra.mxu0 0
        %1237 = vmatprep.subr.bf16.mxu0 0
        %1238 = vmatpush1.bf16.msra.mxu0 0
        %1239 = vmatprep.subr.bf16.mxu0 0
        %1240 = vmatpush1.bf16.msra.mxu0 0
        %1241 = vmatprep.subr.bf16.mxu0 0
        %1242 = vmatpush1.bf16.msra.mxu0 0
        %1243 = vmatprep.subr.bf16.mxu0 0
        %1244 = vmatpush1.bf16.msra.mxu0 0
        %1245 = vmatprep.subr.bf16.mxu0 0
        %1246 = vmatpush1.bf16.msra.mxu0 0
        %1247 = vmatprep.subr.bf16.mxu0 0
        %1248 = vmatpush1.bf16.msra.mxu0 0
        %1249 = vmatprep.subr.bf16.mxu0 0
        %1250 = vmatpush1.bf16.msra.mxu0 0
        %1251 = vmatprep.subr.bf16.mxu0 0
        %1252 = vmatpush1.bf16.msra.mxu0 0
        %1253 = vmatprep.subr.bf16.mxu0 0
        %1254 = vmatpush1.bf16.msra.mxu0 0
        %1255 = vmatprep.subr.bf16.mxu0 0
        %1256 = vmatpush1.bf16.msra.mxu0 0
        %1257 = vmatprep.subr.bf16.mxu0 0
        %1258 = vmatpush1.bf16.msra.mxu0 0
        %1259 = vmatprep.subr.bf16.mxu0 0
        %1260 = vmatpush1.bf16.msra.mxu0 0
        %1261 = vmatprep.subr.bf16.mxu0 0
        %1262 = vmatpush1.bf16.msra.mxu0 0
        %1263 = vmatprep.subr.bf16.mxu0 0
        %1264 = vmatpush1.bf16.msra.mxu0 0
        %1265 = vmatprep.mubr.bf16.mxu0 0
        %1266 = vmatmul.mubr.bf16.gmra.mrb[0].mxu0 %v1228
        %v1267 = vpop.f32.mrb[0].mxu0
        %v1268 = vadd.f32 0.0, %v1267
        %v1269 = vpop.f32.mrb[0].mxu0
        %v1270 = vpop.f32.mrb[0].mxu0
        %v1271 = vpop.f32.mrb[0].mxu0
        %1272 = vdwg.mxu0
        %1273 = vrot.lane.b32.xlu0 %v550, 64
        %v1274 = vpop.permute.xlu0 %1273
        %v1276 = vsel %vm562, %v1029, 0
        %v1279 = vsel %vm1037, %v1274, 0
        %1281 = vmatprep.subr.bf16.mxu0 0
        %1282 = vmatpush1.bf16.msra.mxu0 %v1279
        %1283 = vmatprep.subr.bf16.mxu0 0
        %1284 = vmatpush1.bf16.msra.mxu0 0
        %1285 = vmatprep.subr.bf16.mxu0 0
        %1286 = vmatpush1.bf16.msra.mxu0 0
        %1287 = vmatprep.subr.bf16.mxu0 0
        %1288 = vmatpush1.bf16.msra.mxu0 0
        %1289 = vmatprep.subr.bf16.mxu0 0
        %1290 = vmatpush1.bf16.msra.mxu0 0
        %1291 = vmatprep.subr.bf16.mxu0 0
        %1292 = vmatpush1.bf16.msra.mxu0 0
        %1293 = vmatprep.subr.bf16.mxu0 0
        %1294 = vmatpush1.bf16.msra.mxu0 0
        %1295 = vmatprep.subr.bf16.mxu0 0
        %1296 = vmatpush1.bf16.msra.mxu0 0
        %1297 = vmatprep.subr.bf16.mxu0 0
        %1298 = vmatpush1.bf16.msra.mxu0 0
        %1299 = vmatprep.subr.bf16.mxu0 0
        %1300 = vmatpush1.bf16.msra.mxu0 0
        %1301 = vmatprep.subr.bf16.mxu0 0
        %1302 = vmatpush1.bf16.msra.mxu0 0
        %1303 = vmatprep.subr.bf16.mxu0 0
        %1304 = vmatpush1.bf16.msra.mxu0 0
        %1305 = vmatprep.subr.bf16.mxu0 0
        %1306 = vmatpush1.bf16.msra.mxu0 0
        %1307 = vmatprep.subr.bf16.mxu0 0
        %1308 = vmatpush1.bf16.msra.mxu0 0
        %1309 = vmatprep.subr.bf16.mxu0 0
        %1310 = vmatpush1.bf16.msra.mxu0 0
        %1311 = vmatprep.subr.bf16.mxu0 0
        %1312 = vmatpush1.bf16.msra.mxu0 0
        %1313 = vmatprep.mubr.bf16.mxu0 0
        %1314 = vmatmul.mubr.bf16.gmra.mrb[0].mxu0 %v1276
        %v1315 = vpop.f32.mrb[0].mxu0
        %v1316 = vadd.f32 0.0, %v1315
        %v1317 = vpop.f32.mrb[0].mxu0
        %v1318 = vpop.f32.mrb[0].mxu0
        %v1319 = vpop.f32.mrb[0].mxu0
        %1320 = vdwg.mxu0
        %1321 = vrot.lane.b32.xlu0 %v551, 64
        %v1322 = vpop.permute.xlu0 %1321
        %v1324 = vsel %vm562, %v1030, 0
        %v1327 = vsel %vm1037, %v1322, 0
        %1329 = vmatprep.subr.bf16.mxu0 0
        %1330 = vmatpush1.bf16.msra.mxu0 %v1327
        %1331 = vmatprep.subr.bf16.mxu0 0
        %1332 = vmatpush1.bf16.msra.mxu0 0
        %1333 = vmatprep.subr.bf16.mxu0 0
        %1334 = vmatpush1.bf16.msra.mxu0 0
        %1335 = vmatprep.subr.bf16.mxu0 0
        %1336 = vmatpush1.bf16.msra.mxu0 0
        %1337 = vmatprep.subr.bf16.mxu0 0
        %1338 = vmatpush1.bf16.msra.mxu0 0
        %1339 = vmatprep.subr.bf16.mxu0 0
        %1340 = vmatpush1.bf16.msra.mxu0 0
        %1341 = vmatprep.subr.bf16.mxu0 0
        %1342 = vmatpush1.bf16.msra.mxu0 0
        %1343 = vmatprep.subr.bf16.mxu0 0
        %1344 = vmatpush1.bf16.msra.mxu0 0
        %1345 = vmatprep.subr.bf16.mxu0 0
        %1346 = vmatpush1.bf16.msra.mxu0 0
        %1347 = vmatprep.subr.bf16.mxu0 0
        %1348 = vmatpush1.bf16.msra.mxu0 0
        %1349 = vmatprep.subr.bf16.mxu0 0
        %1350 = vmatpush1.bf16.msra.mxu0 0
        %1351 = vmatprep.subr.bf16.mxu0 0
        %1352 = vmatpush1.bf16.msra.mxu0 0
        %1353 = vmatprep.subr.bf16.mxu0 0
        %1354 = vmatpush1.bf16.msra.mxu0 0
        %1355 = vmatprep.subr.bf16.mxu0 0
        %1356 = vmatpush1.bf16.msra.mxu0 0
        %1357 = vmatprep.subr.bf16.mxu0 0
        %1358 = vmatpush1.bf16.msra.mxu0 0
        %1359 = vmatprep.subr.bf16.mxu0 0
        %1360 = vmatpush1.bf16.msra.mxu0 0
        %1361 = vmatprep.mubr.bf16.mxu0 0
        %1362 = vmatmul.mubr.bf16.gmra.mrb[0].mxu0 %v1324
        %v1363 = vpop.f32.mrb[0].mxu0
        %v1364 = vadd.f32 0.0, %v1363
        %v1365 = vpop.f32.mrb[0].mxu0
        %v1366 = vpop.f32.mrb[0].mxu0
        %v1367 = vpop.f32.mrb[0].mxu0
        %1368 = vdwg.mxu0
        %1369 = vrot.lane.b32.xlu0 %v552, 64
        %v1370 = vpop.permute.xlu0 %1369
        %v1372 = vsel %vm562, %v1031, 0
        %v1375 = vsel %vm1037, %v1370, 0
        %1377 = vmatprep.subr.bf16.mxu0 0
        %1378 = vmatpush1.bf16.msra.mxu0 %v1375
        %1379 = vmatprep.subr.bf16.mxu0 0
        %1380 = vmatpush1.bf16.msra.mxu0 0
        %1381 = vmatprep.subr.bf16.mxu0 0
        %1382 = vmatpush1.bf16.msra.mxu0 0
        %1383 = vmatprep.subr.bf16.mxu0 0
        %1384 = vmatpush1.bf16.msra.mxu0 0
        %1385 = vmatprep.subr.bf16.mxu0 0
        %1386 = vmatpush1.bf16.msra.mxu0 0
        %1387 = vmatprep.subr.bf16.mxu0 0
        %1388 = vmatpush1.bf16.msra.mxu0 0
        %1389 = vmatprep.subr.bf16.mxu0 0
        %1390 = vmatpush1.bf16.msra.mxu0 0
        %1391 = vmatprep.subr.bf16.mxu0 0
        %1392 = vmatpush1.bf16.msra.mxu0 0
        %1393 = vmatprep.subr.bf16.mxu0 0
        %1394 = vmatpush1.bf16.msra.mxu0 0
        %1395 = vmatprep.subr.bf16.mxu0 0
        %1396 = vmatpush1.bf16.msra.mxu0 0
        %1397 = vmatprep.subr.bf16.mxu0 0
        %1398 = vmatpush1.bf16.msra.mxu0 0
        %1399 = vmatprep.subr.bf16.mxu0 0
        %1400 = vmatpush1.bf16.msra.mxu0 0
        %1401 = vmatprep.subr.bf16.mxu0 0
        %1402 = vmatpush1.bf16.msra.mxu0 0
        %1403 = vmatprep.subr.bf16.mxu0 0
        %1404 = vmatpush1.bf16.msra.mxu0 0
        %1405 = vmatprep.subr.bf16.mxu0 0
        %1406 = vmatpush1.bf16.msra.mxu0 0
        %1407 = vmatprep.subr.bf16.mxu0 0
        %1408 = vmatpush1.bf16.msra.mxu0 0
        %1409 = vmatprep.mubr.bf16.mxu0 0
        %1410 = vmatmul.mubr.bf16.gmra.mrb[0].mxu0 %v1372
        %v1411 = vpop.f32.mrb[0].mxu0
        %v1412 = vadd.f32 0.0, %v1411
        %v1413 = vpop.f32.mrb[0].mxu0
        %v1414 = vpop.f32.mrb[0].mxu0
        %v1415 = vpop.f32.mrb[0].mxu0
        %1416 = vdwg.mxu0
        %v1417 = vrcp.pop %v1002
        %v1418 = vrcp.pop %v1005
        %v1419 = vrcp.pop %v1008
        %v1420 = vrcp.pop %v1011
        %v1421 = vrcp.pop %v1014
        %v1422 = vrcp.pop %v1017
        %v1423 = vrcp.pop %v1020
        %v1424 = vrcp.pop %v1023
        %v1425 = vmul.f32 %v1076, %v1417
        %v1426 = vmul.f32 %v1124, %v1418
        %v1427 = vmul.f32 %v1172, %v1419
        %v1428 = vmul.f32 %v1220, %v1420
        %v1429 = vmul.f32 %v1268, %v1421
        %v1430 = vmul.f32 %v1316, %v1422
        %v1431 = vmul.f32 %v1364, %v1423
        %v1432 = vmul.f32 %v1412, %v1424
        %v1433 = vpack.c.bf16 %v1425, %v1425
        %v1434 = vpack.c.bf16 %v1426, %v1426
        %v1435 = vpack.c.bf16 %v1427, %v1427
        %v1436 = vpack.c.bf16 %v1428, %v1428
        %v1437 = vpack.c.bf16 %v1429, %v1429
        %v1438 = vpack.c.bf16 %v1430, %v1430
        %v1439 = vpack.c.bf16 %v1431, %v1431
        %v1440 = vpack.c.bf16 %v1432, %v1432
        %1443 = vrot.lane.b32.xlu0 %v1435, 8
        %v1444 = vpop.permute.xlu0 %1443
        %1445 = vrot.lane.b32.xlu0 %v1436, 8
        %v1446 = vpop.permute.xlu0 %1445
        %1449 = vrot.lane.b32.xlu0 %v1437, 16
        %v1450 = vpop.permute.xlu0 %1449
        %1451 = vrot.lane.b32.xlu0 %v1438, 16
        %v1452 = vpop.permute.xlu0 %1451
        %1455 = vrot.lane.b32.xlu0 %v1439, 24
        %v1456 = vpop.permute.xlu0 %1455
        %1457 = vrot.lane.b32.xlu0 %v1440, 24
        %v1458 = vpop.permute.xlu0 %1457
        %v1461 = vsel %vm562, %v1433, %v1444
        %v1464 = vsel %vm562, %v1434, %v1446
        %vm1465 = vcmask 130048
        %v1467 = vsel %vm1465, %v1461, %v1450
        %v1469 = vsel %vm1465, %v1464, %v1452
        %vm1470 = vcmask 195584
        %v1472 = vsel %vm1470, %v1467, %v1456
        %v1474 = vsel %vm1470, %v1469, %v1458
        %v1475 = vld [vmem:[%s4] sm:$0xf]
        %v1476 = vld [vmem:[%s4 + $0x4] sm:$0xf]
        %v1477 = vld [vmem:[%s4 + $0x8] sm:$0xf]
        %v1478 = vld [vmem:[%s4 + $0xc] sm:$0xf]
        %v1479 = vld [vmem:[%s5] sm:$0x1]
        %v1481 = vlaneseq
        %v1482 = vshrl.u32 %v1481, 7
        %v1483 = vsub.s32 0, %v1482
        %v1484 = vrot.slane %v1479, %v1483
        %v1488 = vunpack.c.l.b16 %v1472
        %v1489 = vunpack.c.l.b16 %v1474
        %v1490 = vpack.c.b16 %v1489, %v1488
        %v1495 = vunpack.c.l.b16 %v1475
        %v1496 = vunpack.c.l.b16 %v1476
        %v1497 = vunpack.c.l.b16 %v1477
        %v1498 = vunpack.c.l.b16 %v1478
        %v1499 = vpack.c.b16 %v1496, %v1495
        %v1500 = vpack.c.b16 %v1498, %v1497
        %v1504 = vsel %vm420, %v1490, 0
        %1506 = vmatprep.subr.bf16.mxu0 0
        %1507 = vmatpush1.bf16.msra.mxu0 %v1499
        %1508 = vmatprep.subr.bf16.mxu0 0
        %1509 = vmatpush1.bf16.msra.mxu0 %v1500
        %1510 = vmatprep.subr.bf16.mxu0 0
        %1511 = vmatpush1.bf16.msra.mxu0 0
        %1512 = vmatprep.subr.bf16.mxu0 0
        %1513 = vmatpush1.bf16.msra.mxu0 0
        %1514 = vmatprep.subr.bf16.mxu0 0
        %1515 = vmatpush1.bf16.msra.mxu0 0
        %1516 = vmatprep.subr.bf16.mxu0 0
        %1517 = vmatpush1.bf16.msra.mxu0 0
        %1518 = vmatprep.subr.bf16.mxu0 0
        %1519 = vmatpush1.bf16.msra.mxu0 0
        %1520 = vmatprep.subr.bf16.mxu0 0
        %1521 = vmatpush1.bf16.msra.mxu0 0
        %1522 = vmatprep.subr.bf16.mxu0 0
        %1523 = vmatpush1.bf16.msra.mxu0 0
        %1524 = vmatprep.subr.bf16.mxu0 0
        %1525 = vmatpush1.bf16.msra.mxu0 0
        %1526 = vmatprep.subr.bf16.mxu0 0
        %1527 = vmatpush1.bf16.msra.mxu0 0
        %1528 = vmatprep.subr.bf16.mxu0 0
        %1529 = vmatpush1.bf16.msra.mxu0 0
        %1530 = vmatprep.subr.bf16.mxu0 0
        %1531 = vmatpush1.bf16.msra.mxu0 0
        %1532 = vmatprep.subr.bf16.mxu0 0
        %1533 = vmatpush1.bf16.msra.mxu0 0
        %1534 = vmatprep.subr.bf16.mxu0 0
        %1535 = vmatpush1.bf16.msra.mxu0 0
        %1536 = vmatprep.subr.bf16.mxu0 0
        %1537 = vmatpush1.bf16.msra.mxu0 0
        %1538 = vmatprep.mubr.bf16.mxu0 0
        %1539 = vmatmul.mubr.bf16.gmra.mrb[0].mxu0 %v1504
        %v1540 = vpop.f32.mrb[0].mxu0
        %v1541 = vadd.f32 %v1484, %v1540
        %v1542 = vpop.f32.mrb[0].mxu0
        %v1543 = vpop.f32.mrb[0].mxu0
        %v1544 = vadd.f32 %v1484, %v1543
        %v1545 = vpop.f32.mrb[0].mxu0
        %1546 = vdwg.mxu0
        %v1547 = vadd.f32 %v416, %v1541
        %v1548 = vadd.f32 %v417, %v1544
        %v1549 = vld [vmem:[%s6] sm:$0x1]
        %v1550 = vld [vmem:[%s7] sm:$0x1]
        %v1551 = vsel %vm420, %v1547, 0.0
        %1552 = vadd.xlane.f32.xlu0 %v1551
        %v1553 = vpop.xlane.xlu0 %1552
        %v1554 = vsel %vm420, %v1548, 0.0
        %1555 = vadd.xlane.f32.xlu0 %v1554
        %v1556 = vpop.xlane.xlu0 %1555
        %v1557 = vmul.f32 %v1553, %v427
        %v1558 = vmul.f32 %v1556, %v427
        %v1559 = vsub.f32 %v1547, %v1557
        %v1560 = vsub.f32 %v1548, %v1558
        %v1561 = vmul.f32 %v1559, %v1559
        %v1562 = vmul.f32 %v1560, %v1560
        %v1563 = vsel %vm420, %v1561, 0.0
        %1564 = vadd.xlane.f32.xlu0 %v1563
        %v1565 = vpop.xlane.xlu0 %1564
        %v1566 = vsel %vm420, %v1562, 0.0
        %1567 = vadd.xlane.f32.xlu0 %v1566
        %v1568 = vpop.xlane.xlu0 %1567
        %v1569 = vmul.f32 %v1565, %v427
        %v1570 = vmul.f32 %v1568, %v427
        %v1571 = vadd.f32 %v1569, 1e-05
        %v1572 = vadd.f32 %v1570, 1e-05
        %v1573 = vrsqrt.pop %v1571
        %v1574 = vrsqrt.pop %v1572
        %v1575 = vmul.f32 %v1559, %v1573
        %v1576 = vmul.f32 %v1560, %v1574
        %v1578 = vlaneseq
        %v1579 = vshrl.u32 %v1578, 7
        %v1580 = vsub.s32 0, %v1579
        %v1581 = vrot.slane %v1549, %v1580
        %v1583 = vmul.f32 %v1575, %v1581
        %v1584 = vmul.f32 %v1576, %v1581
        %v1586 = vlaneseq
        %v1587 = vshrl.u32 %v1586, 7
        %v1588 = vsub.s32 0, %v1587
        %v1589 = vrot.slane %v1550, %v1588
        %v1591 = vadd.f32 %v1583, %v1589
        %v1592 = vadd.f32 %v1584, %v1589
        %v1593 = vpack.c.bf16 %v1592, %v1591
        %v1594 = vld [vmem:[%s8] sm:$0xf]
        %v1595 = vld [vmem:[%s8 + $0x4] sm:$0xf]
        %v1596 = vld [vmem:[%s8 + $0x8] sm:$0xf]
        %v1597 = vld [vmem:[%s8 + $0xc] sm:$0xf]
        %v1598 = vld [vmem:[%s9] sm:$0x1]
        %v1600 = vlaneseq
        %v1601 = vshrl.u32 %v1600, 7
        %v1602 = vsub.s32 0, %v1601
        %v1603 = vrot.slane %v1598, %v1602
        %v1609 = vunpack.c.l.b16 %v1594
        %v1610 = vunpack.c.l.b16 %v1595
        %v1611 = vunpack.c.l.b16 %v1596
        %v1612 = vunpack.c.l.b16 %v1597
        %v1613 = vpack.c.b16 %v1610, %v1609
        %v1614 = vpack.c.b16 %v1612, %v1611
        %v1618 = vsel %vm420, %v1593, 0
        %1620 = vmatprep.subr.bf16.mxu0 0
        %1621 = vmatpush1.bf16.msra.mxu0 %v1613
        %1622 = vmatprep.subr.bf16.mxu0 0
        %1623 = vmatpush1.bf16.msra.mxu0 %v1614
        %1624 = vmatprep.subr.bf16.mxu0 0
        %1625 = vmatpush1.bf16.msra.mxu0 0
        %1626 = vmatprep.subr.bf16.mxu0 0
        %1627 = vmatpush1.bf16.msra.mxu0 0
        %1628 = vmatprep.subr.bf16.mxu0 0
        %1629 = vmatpush1.bf16.msra.mxu0 0
        %1630 = vmatprep.subr.bf16.mxu0 0
        %1631 = vmatpush1.bf16.msra.mxu0 0
        %1632 = vmatprep.subr.bf16.mxu0 0
        %1633 = vmatpush1.bf16.msra.mxu0 0
        %1634 = vmatprep.subr.bf16.mxu0 0
        %1635 = vmatpush1.bf16.msra.mxu0 0
        %1636 = vmatprep.subr.bf16.mxu0 0
        %1637 = vmatpush1.bf16.msra.mxu0 0
        %1638 = vmatprep.subr.bf16.mxu0 0
        %1639 = vmatpush1.bf16.msra.mxu0 0
        %1640 = vmatprep.subr.bf16.mxu0 0
        %1641 = vmatpush1.bf16.msra.mxu0 0
        %1642 = vmatprep.subr.bf16.mxu0 0
        %1643 = vmatpush1.bf16.msra.mxu0 0
        %1644 = vmatprep.subr.bf16.mxu0 0
        %1645 = vmatpush1.bf16.msra.mxu0 0
        %1646 = vmatprep.subr.bf16.mxu0 0
        %1647 = vmatpush1.bf16.msra.mxu0 0
        %1648 = vmatprep.subr.bf16.mxu0 0
        %1649 = vmatpush1.bf16.msra.mxu0 0
        %1650 = vmatprep.subr.bf16.mxu0 0
        %1651 = vmatpush1.bf16.msra.mxu0 0
        %1652 = vmatprep.mubr.bf16.mxu0 0
        %1653 = vmatmul.mubr.bf16.gmra.mrb[0].mxu0 %v1618
        %v1654 = vpop.f32.mrb[0].mxu0
        %v1655 = vadd.f32 %v1603, %v1654
        %v1656 = vpop.f32.mrb[0].mxu0
        %v1657 = vpop.f32.mrb[0].mxu0
        %v1658 = vadd.f32 %v1603, %v1657
        %v1659 = vpop.f32.mrb[0].mxu0
        %1660 = vdwg.mxu0
        %v1661 = vmax.f32 %v1655, 0.0
        %v1662 = vmax.f32 %v1658, 0.0
        %v1663 = vpack.c.bf16 %v1662, %v1661
        %v1664 = vld [vmem:[%s10] sm:$0xf]
        %v1665 = vld [vmem:[%s10 + $0x4] sm:$0xf]
        %v1666 = vld [vmem:[%s10 + $0x8] sm:$0xf]
        %v1667 = vld [vmem:[%s10 + $0xc] sm:$0xf]
        %v1668 = vld [vmem:[%s10 + $0x10] sm:$0xf]
        %v1669 = vld [vmem:[%s10 + $0x14] sm:$0xf]
        %v1670 = vld [vmem:[%s10 + $0x18] sm:$0xf]
        %v1671 = vld [vmem:[%s10 + $0x1c] sm:$0xf]
        %v1672 = vld [vmem:[%s10 + $0x20] sm:$0xf]
        %v1673 = vld [vmem:[%s10 + $0x24] sm:$0xf]
        %v1674 = vld [vmem:[%s10 + $0x28] sm:$0xf]
        %v1675 = vld [vmem:[%s10 + $0x2c] sm:$0xf]
        %v1676 = vld [vmem:[%s10 + $0x30] sm:$0xf]
        %v1677 = vld [vmem:[%s10 + $0x34] sm:$0xf]
        %v1678 = vld [vmem:[%s10 + $0x38] sm:$0xf]
        %v1679 = vld [vmem:[%s10 + $0x3c] sm:$0xf]
        %v1680 = vld [vmem:[%s11] sm:$0x1]
        %v1682 = vlaneseq
        %v1683 = vshrl.u32 %v1682, 7
        %v1684 = vsub.s32 0, %v1683
        %v1685 = vrot.slane %v1680, %v1684
        %v1703 = vunpack.c.l.b16 %v1664
        %v1704 = vunpack.c.l.b16 %v1665
        %v1705 = vunpack.c.l.b16 %v1666
        %v1706 = vunpack.c.l.b16 %v1667
        %v1707 = vunpack.c.l.b16 %v1668
        %v1708 = vunpack.c.l.b16 %v1669
        %v1709 = vunpack.c.l.b16 %v1670
        %v1710 = vunpack.c.l.b16 %v1671
        %v1711 = vunpack.c.l.b16 %v1672
        %v1712 = vunpack.c.l.b16 %v1673
        %v1713 = vunpack.c.l.b16 %v1674
        %v1714 = vunpack.c.l.b16 %v1675
        %v1715 = vunpack.c.l.b16 %v1676
        %v1716 = vunpack.c.l.b16 %v1677
        %v1717 = vunpack.c.l.b16 %v1678
        %v1718 = vunpack.c.l.b16 %v1679
        %v1719 = vpack.c.b16 %v1704, %v1703
        %v1720 = vpack.c.b16 %v1706, %v1705
        %v1721 = vpack.c.b16 %v1708, %v1707
        %v1722 = vpack.c.b16 %v1710, %v1709
        %v1723 = vpack.c.b16 %v1712, %v1711
        %v1724 = vpack.c.b16 %v1714, %v1713
        %v1725 = vpack.c.b16 %v1716, %v1715
        %v1726 = vpack.c.b16 %v1718, %v1717
        %1735 = vmatprep.subr.bf16.mxu0 0
        %1736 = vmatpush1.bf16.msra.mxu0 %v1719
        %1737 = vmatprep.subr.bf16.mxu0 0
        %1738 = vmatpush1.bf16.msra.mxu0 %v1720
        %1739 = vmatprep.subr.bf16.mxu0 0
        %1740 = vmatpush1.bf16.msra.mxu0 %v1721
        %1741 = vmatprep.subr.bf16.mxu0 0
        %1742 = vmatpush1.bf16.msra.mxu0 %v1722
        %1743 = vmatprep.subr.bf16.mxu0 0
        %1744 = vmatpush1.bf16.msra.mxu0 %v1723
        %1745 = vmatprep.subr.bf16.mxu0 0
        %1746 = vmatpush1.bf16.msra.mxu0 %v1724
        %1747 = vmatprep.subr.bf16.mxu0 0
        %1748 = vmatpush1.bf16.msra.mxu0 %v1725
        %1749 = vmatprep.subr.bf16.mxu0 0
        %1750 = vmatpush1.bf16.msra.mxu0 %v1726
        %1751 = vmatprep.subr.bf16.mxu0 0
        %1752 = vmatpush1.bf16.msra.mxu0 0
        %1753 = vmatprep.subr.bf16.mxu0 0
        %1754 = vmatpush1.bf16.msra.mxu0 0
        %1755 = vmatprep.subr.bf16.mxu0 0
        %1756 = vmatpush1.bf16.msra.mxu0 0
        %1757 = vmatprep.subr.bf16.mxu0 0
        %1758 = vmatpush1.bf16.msra.mxu0 0
        %1759 = vmatprep.subr.bf16.mxu0 0
        %1760 = vmatpush1.bf16.msra.mxu0 0
        %1761 = vmatprep.subr.bf16.mxu0 0
        %1762 = vmatpush1.bf16.msra.mxu0 0
        %1763 = vmatprep.subr.bf16.mxu0 0
        %1764 = vmatpush1.bf16.msra.mxu0 0
        %1765 = vmatprep.subr.bf16.mxu0 0
        %1766 = vmatpush1.bf16.msra.mxu0 0
        %1767 = vmatprep.mubr.bf16.mxu0 0
        %1768 = vmatmul.mubr.bf16.gmra.mrb[0].mxu0 %v1663
        %v1769 = vpop.f32.mrb[0].mxu0
        %v1770 = vadd.f32 %v1685, %v1769
        %v1771 = vpop.f32.mrb[0].mxu0
        %v1772 = vpop.f32.mrb[0].mxu0
        %v1773 = vadd.f32 %v1685, %v1772
        %v1774 = vpop.f32.mrb[0].mxu0
        %1775 = vdwg.mxu0
        %v1776 = vadd.f32 %v1547, %v1770
        %v1777 = vadd.f32 %v1548, %v1773
        %1778 = vst.msk [vmem:[%s407] sm:$0xff] %vm420, %v1776
        %1779 = vst.msk [vmem:[%s407 + $0x8] sm:$0xff] %vm420, %v1777
        %s1780 = sand.u32 %s291, 1
        %s1781 = scalar_lea.sflag [#allocation3], %s1780
        %s1782 = sand.u32 %s291, 1
        %s1783 = smul.addr %s1782, 16
        %s1784 = scalar_lea.vmem [#allocation2], %s1783
        // Predicated region
        $region69: #{tpu_custom_call.1} parent=67 // pred_check
          %p1785 = pneg %p301
        $region70: #{tpu_custom_call.1} parent=67 // pred_check_branch
          %1787 = sbr.rel (%p1785) target = $region72
        $region71: #{tpu_custom_call.1} parent=67 // pred_region
          %s1788 = smul.u32 2, %s26
          %s1790 = ssub.s32 256, 256
          %1791 = vsyncadd %s1781, %s1790
          %s1792 = smul.addr %s1788, 128
          %s1793 = scalar_lea.hbm %s12, %s1792
          %s1794 = sshll.u32 %s1784, 4
          %s1795 = int_to_ptr.vmem [resolvable:$true] %s1794
          %1800 = dma.vmem_to_hbm [thread:$0]  %s1795, 256, %s1793, %s1781, 128, 128, 8
        $region72: #{tpu_custom_call.1} parent=67 // pred_fallthru
          _
      $region68: #{tpu_custom_call.1} parent=5 // pred_fallthru
        _
      %p1801 = scmp.le.s32.totalorder 2, %s21
      // Predicated region
      $region73: #{tpu_custom_call.1} parent=5 // pred_check
        %p1802 = pneg %p1801
      $region74: #{tpu_custom_call.1} parent=5 // pred_check_branch
        %1804 = sbr.rel (%p1802) target = $region76
      $region75: #{tpu_custom_call.1} parent=5 // pred_region
        %s1805 = ssub.s32 %s21, 2
        // Predicated region
        $region77: #{tpu_custom_call.1} parent=75 // pred_check
          %p1806 = pneg %p307
        $region78: #{tpu_custom_call.1} parent=75 // pred_check_branch
          %1808 = sbr.rel (%p1806) target = $region80
        $region79: #{tpu_custom_call.1} parent=75 // pred_region
          %s1809 = sand.u32 %s292, 1
          %s1810 = scalar_lea.sflag [#allocation3], %s1809
          %s1811 = sand.u32 %s292, 1
          %s1812 = smul.addr %s1811, 16
          %s1813 = scalar_lea.vmem [#allocation2], %s1812
          %1814 = dma.done %s1810, 256
        $region80: #{tpu_custom_call.1} parent=75 // pred_fallthru
          _
      $region76: #{tpu_custom_call.1} parent=5 // pred_fallthru
        _
    $region6: #{tpu_custom_call.1} parent=1 // loop_footer
      %s25 = sadd.s32 1, %s21
    $region7: #{tpu_custom_call.1} parent=1 // loop_footer_branch
      %20 = sbr.rel target = $region3
    $region8: #{tpu_custom_call.1} parent=1 // loop_exit
      _
    %1815 = vsyncpa [#allocation3], 1
    %s1816 = scalar_lea.sflag [#allocation3], 1
    %1817 = vsyncpa %s1816, 1

</llo_original>
